<compile_context>
chip_gen: v7x
topology: tpu7x:2x2x1
jax: 0.10.0
libtpu: 0.0.40
codegen_flags: <defaults>
</compile_context>

<pallas_src>
import functools
import math

import jax
import jax.numpy as jnp
from jax.experimental import pallas as pl
from jax.experimental.pallas import tpu as pltpu

EPS = 1e-5   # torch.nn.LayerNorm default


def _round_up(v, m):
    return ((v + m - 1) // m) * m


def _layernorm(x, g, b):
    # f32 statistics (parity with torch.nn.LayerNorm even though matmuls run in bf16)
    mu = jnp.mean(x, axis=-1, keepdims=True)
    var = jnp.mean(jnp.square(x - mu), axis=-1, keepdims=True)
    return (x - mu) * jax.lax.rsqrt(var + EPS) * g + b


def _gelu(x):
    # exact erf-based GELU (torch.nn.GELU() default)
    return 0.5 * x * (1.0 + jax.lax.erf(x * (1.0 / math.sqrt(2.0))))


# --------------------------- the single fused kernel ---------------------------
def _vit_kernel(patches_ref, wpatch_ref, consts_ref, proj_ref,
                small_ref, wqkv_ref, wo_ref, w1_ref, w2_ref,
                out_ref, act_ref, *, nheads, s_real):
    layer = pl.program_id(0)
    n_layers = pl.num_programs(0)

    B, S, D = act_ref.shape
    M = B * S
    dh = D // nheads

    # ---------- one-time: patch embed + cls/pos + ln_pre (layer 0 only) ----------
    @pl.when(layer == 0)
    def _():
        CPP = wpatch_ref.shape[0]
        # conv1 (stride = kernel = patch, no bias) == unfold + matmul; the cls slot
        # and pad rows of `patches` are zero, so this is one dense lane-aligned matmul.
        pm = patches_ref[...].reshape(M, CPP).astype(jnp.bfloat16)
        emb = jnp.dot(pm, wpatch_ref[...], preferred_element_type=jnp.float32)
        # consts rows 0..S-1: row0 = cls + pos[0], rows 1..N = pos[1..N], pad rows = 0
        emb = emb.reshape(B, S, D) + consts_ref[0:S, :][None]
        g = consts_ref[S:S + 1, :]
        b = consts_ref[S + 1:S + 2, :]
        # NOTE: padded rows become LN(0) = ln_pre bias; masked as keys, dropped by head.
        act_ref[...] = _layernorm(emb, g, b)

    # ---------- one transformer block per grid step ----------
    sm = small_ref[0]                                   # [6, 4D] packed per-layer params
    ln1_g, ln1_b = sm[0:1, 0:D], sm[0:1, D:2 * D]
    ln2_g, ln2_b = sm[0:1, 2 * D:3 * D], sm[0:1, 3 * D:4 * D]
    b_q, b_k = sm[1:2, 0:D], sm[1:2, D:2 * D]
    b_v, b_o = sm[1:2, 2 * D:3 * D], sm[1:2, 3 * D:4 * D]
    s_q, s_k = sm[2:3, 0:D], sm[2:3, D:2 * D]
    s_v, s_o = sm[2:3, 2 * D:3 * D], sm[2:3, 3 * D:4 * D]
    b_1, s_1 = sm[3:4, :], sm[4:5, :]
    b_2, s_2 = sm[5:6, 0:D], sm[5:6, D:2 * D]

    x = act_ref[...].reshape(M, D)                      # f32 residual stream

    # ---- multi-head self-attention on ln_1(x), int8 weights deq via column scales ----
    h = _layernorm(x, ln1_g, ln1_b)
    qkv = jnp.dot(h.astype(jnp.bfloat16), wqkv_ref[0].astype(jnp.bfloat16),
                  preferred_element_type=jnp.float32)   # [M, 3D] (still unscaled int sums)

    def heads_of(t):                                    # [M, D] f32 -> [B*H, S, dh] bf16
        t = t.reshape(B, S, nheads, dh)
        t = jnp.transpose(t, (0, 2, 1, 3))
        return t.reshape(B * nheads, S, dh).astype(jnp.bfloat16)

    # per-column quant scale + bias applied on the small [M, D] chunks we slice anyway;
    # the attention 1/sqrt(dh) is already folded into w_q / b_q at pack time.
    q = heads_of(qkv[:, 0 * D:1 * D] * s_q + b_q)
    k = heads_of(qkv[:, 1 * D:2 * D] * s_k + b_k)
    v = heads_of(qkv[:, 2 * D:3 * D] * s_v + b_v)

    sc = jnp.einsum('bqd,bkd->bqk', q, k, preferred_element_type=jnp.float32)
    kpos = jax.lax.broadcasted_iota(jnp.int32, (1, 1, S), 2)
    sc = jnp.where(kpos < s_real, sc, -1e30)            # mask padded keys
    sc = sc - jnp.max(sc, axis=-1, keepdims=True)
    prob = jnp.exp(sc)
    prob = prob * pl.reciprocal(jnp.sum(prob, axis=-1, keepdims=True), approx=True)

    ctx = jnp.einsum('bqk,bkd->bqd', prob.astype(jnp.bfloat16), v,
                     preferred_element_type=jnp.float32)           # [B*H, S, dh]
    ctx = jnp.transpose(ctx.reshape(B, nheads, S, dh), (0, 2, 1, 3)).reshape(M, D)

    attn = jnp.dot(ctx.astype(jnp.bfloat16), wo_ref[0].astype(jnp.bfloat16),
                   preferred_element_type=jnp.float32) * s_o + b_o
    x = x + attn

    # ---- MLP on ln_2(x) ----
    h2 = _layernorm(x, ln2_g, ln2_b)
    m = jnp.dot(h2.astype(jnp.bfloat16), w1_ref[0].astype(jnp.bfloat16),
                preferred_element_type=jnp.float32) * s_1 + b_1
    m = _gelu(m)
    m = jnp.dot(m.astype(jnp.bfloat16), w2_ref[0].astype(jnp.bfloat16),
                preferred_element_type=jnp.float32) * s_2 + b_2
    x = x + m

    act_ref[...] = x.reshape(B, S, D)                   # stays resident in VMEM scratch

    # ---------- one-time: ln_post + external proj (last layer only) ----------
    @pl.when(layer == n_layers - 1)
    def _():
        g = consts_ref[S + 2:S + 3, :]
        b = consts_ref[S + 3:S + 4, :]
        xn = _layernorm(x, g, b)
        y = jnp.dot(xn.astype(jnp.bfloat16), proj_ref[...],
                    preferred_element_type=jnp.float32)
        out_ref[...] = y.reshape(B, S, out_ref.shape[2])   # dense lane-aligned slab


# --------------------------------- parameters -----------------------------------
def init_params(key, *, channels, patch, img, width, layers, embed_dim, mlp_ratio=4):
    """Torch-layout f32 parameters (what a CLIP checkpoint load would produce)."""
    n = (img // patch) ** 2
    s_real = n + 1
    cpp = channels * patch * patch
    dm = mlp_ratio * width
    keys = jax.random.split(key, 8)

    def nrm(kk, shp, scale=0.02):
        return scale * jax.random.normal(kk, shp, jnp.float32)

    return dict(
        w_patch=nrm(keys[0], (cpp, width)),              # conv1 as matmul, no bias
        cls=nrm(keys[1], (1, width)),
        pos=nrm(keys[2], (s_real, width)),
        lnpre_g=jnp.ones((1, width), jnp.float32),
        lnpre_b=jnp.zeros((1, width), jnp.float32),
        lnpost_g=jnp.ones((1, width), jnp.float32),
        lnpost_b=jnp.zeros((1, width), jnp.float32),
        proj=width ** -0.5 * jax.random.normal(keys[3], (width, embed_dim), jnp.float32),
        blocks=dict(
            ln1_g=jnp.ones((layers, 1, width), jnp.float32),
            ln1_b=jnp.zeros((layers, 1, width), jnp.float32),
            w_qkv=nrm(keys[4], (layers, width, 3 * width)),
            b_qkv=jnp.zeros((layers, 1, 3 * width), jnp.float32),
            w_o=nrm(keys[5], (layers, width, width)),
            b_o=jnp.zeros((layers, 1, width), jnp.float32),
            ln2_g=jnp.ones((layers, 1, width), jnp.float32),
            ln2_b=jnp.zeros((layers, 1, width), jnp.float32),
            w_1=nrm(keys[6], (layers, width, dm)),
            b_1=jnp.zeros((layers, 1, dm), jnp.float32),
            w_2=nrm(keys[7], (layers, dm, width)),
            b_2=jnp.zeros((layers, 1, width), jnp.float32),
        ),
    )


def pack_params(p, *, heads):
    """One-time pack/quantize of torch-layout params into the kernel's streamed layout."""
    D = p['pos'].shape[1]
    s_real = p['pos'].shape[0]
    S = _round_up(max(s_real, 16), 16)            # pad sequence to a bf16-friendly multiple of 16
    blk = p['blocks']
    L, _, Dm = blk['w_1'].shape
    assert Dm == 4 * D, "packed small-param layout assumes MLP ratio 4 (CLIP default)"
    dh = D // heads

    # additive table: row0 = cls + pos[0], rows 1..N = pos[1..], pad rows = 0
    add = jnp.zeros((S, D), jnp.float32)
    add = add.at[0].set(p['cls'][0] + p['pos'][0])
    add = add.at[1:s_real].set(p['pos'][1:])
    consts = jnp.concatenate(
        [add, p['lnpre_g'], p['lnpre_b'], p['lnpost_g'], p['lnpost_b']], axis=0)   # [S+4, D]

    def quant(w):                                  # [L, K, N] -> int8 + per-column scale [L,1,N]
        s = jnp.maximum(jnp.max(jnp.abs(w), axis=-2, keepdims=True), 1e-6) / 127.0
        q = jnp.clip(jnp.round(w / s), -127.0, 127.0).astype(jnp.int8)
        return q, s

    qs = 1.0 / math.sqrt(dh)                       # fold attention scale into q (absorbed by quant)
    w_qkv = blk['w_qkv'].at[:, :, :D].multiply(qs)
    b_qkv = blk['b_qkv'].at[:, :, :D].multiply(qs)

    w_qkv_q, s_qkv = quant(w_qkv)
    w_o_q, s_o = quant(blk['w_o'])
    w_1_q, s_1 = quant(blk['w_1'])
    w_2_q, s_2 = quant(blk['w_2'])

    pad = jnp.zeros((L, 1, Dm - 2 * D), jnp.float32)
    small = jnp.concatenate([
        jnp.concatenate([blk['ln1_g'], blk['ln1_b'], blk['ln2_g'], blk['ln2_b']], axis=-1),
        jnp.concatenate([b_qkv, blk['b_o']], axis=-1),
        jnp.concatenate([s_qkv, s_o], axis=-1),
        blk['b_1'],
        s_1,
        jnp.concatenate([blk['b_2'], s_2, pad], axis=-1),
    ], axis=1)                                     # [L, 6, 4D]

    return dict(
        w_patch=p['w_patch'].astype(jnp.bfloat16),
        consts=consts,
        proj=p['proj'].astype(jnp.bfloat16),
        small=small,
        w_qkv=w_qkv_q, w_o=w_o_q, w_1=w_1_q, w_2=w_2_q,
    )


# ---------------------------------- forward --------------------------------------
def vision_transformer_med_forward(x, kp, *, patch, heads):
    B, C, H, W = x.shape
    gh, gw = H // patch, W // patch
    n = gh * gw
    cpp = C * patch * patch

    S = kp['consts'].shape[0] - 4
    D = kp['consts'].shape[1]
    E = kp['proj'].shape[1]
    L = kp['w_qkv'].shape[0]
    Dm = kp['w_1'].shape[2]
    assert n + 1 <= S

    # conv1 (stride = kernel = patch) == unfold; the matmul runs in-kernel.
    patches = x.reshape(B, C, gh, patch, gw, patch)
    patches = patches.transpose(0, 2, 4, 1, 3, 5).reshape(B, n, cpp)
    # row 0 = cls slot (zeros), trailing rows = sequence padding -> dense embed matmul.
    patches = jnp.pad(patches, ((0, 0), (1, S - n - 1), (0, 0)))

    # VMEM budget: 2x double-buffered per-layer streams + 2x resident invariants +
    # activations/output + headroom for matmul intermediates; capped at 48 MiB so the
    # same kernel also fits v7x (64 MiB physical VMEM).
    per_layer = sum(a.size * a.dtype.itemsize // a.shape[0]
                    for a in (kp['small'], kp['w_qkv'], kp['w_o'], kp['w_1'], kp['w_2']))
    invariant = sum(a.size * a.dtype.itemsize
                    for a in (patches, kp['w_patch'], kp['consts'], kp['proj']))
    vmem = 2 * per_layer + 2 * invariant + B * S * D * 4 + 2 * B * S * E * 4 + (16 << 20)
    vmem = int(max(min(vmem, 48 << 20), 20 << 20))

    def invariant_spec(shape):
        nd = len(shape)
        return pl.BlockSpec(shape, lambda l, nd=nd: (0,) * nd)

    def stream(shape):                             # per-layer weight stream, auto double-buffered
        nd = len(shape)
        return pl.BlockSpec((1,) + shape, lambda l, nd=nd: (l,) + (0,) * nd)

    out = pl.pallas_call(
        functools.partial(_vit_kernel, nheads=heads, s_real=n + 1),
        out_shape=jax.ShapeDtypeStruct((B, S, E), jnp.float32),
        grid=(L,),
        in_specs=[
            invariant_spec((B, S, cpp)),           # unfolded patches (cls/pad rows zero)
            invariant_spec((cpp, D)),              # patch-embed weight (bf16)
            invariant_spec((S + 4, D)),            # cls+pos table, ln_pre / ln_post params
            invariant_spec((D, E)),                # external proj (bf16)
            stream((6, Dm)),                       # packed per-layer LN/bias/scale rows (f32)
            stream((D, 3 * D)),                    # w_qkv int8
            stream((D, D)),                        # w_o  int8
            stream((D, Dm)),                       # w_1  int8
            stream((Dm, D)),                       # w_2  int8
        ],
        out_specs=pl.BlockSpec((B, S, E), lambda l: (0, 0, 0)),
        scratch_shapes=[pltpu.VMEM((B, S, D), jnp.float32)],      # resident activations
        compiler_params=pltpu.CompilerParams(
            # layers are sequential (scratch carry); a single stream also avoids
            # re-streaming the same weights on both v7x TensorCores at small batch.
            dimension_semantics=("arbitrary",),
            vmem_limit_bytes=vmem),
    )(patches, kp['w_patch'], kp['consts'], kp['proj'],
      kp['small'], kp['w_qkv'], kp['w_o'], kp['w_1'], kp['w_2'])

    tokens = out[:, 1:1 + n, :]                    # lane-dense slab sliced in the wrapper
    pooled = out[:, 0, :]
    # PyTorch module returns (tokens, pooled)
    return tokens, pooled


if __name__ == "__main__":
    # scaled-down config (real one: img 224, patch 32, width 768, 12 layers/heads, embed 512)
    B, C, IMG, PATCH = 2, 3, 32, 16
    WIDTH, HEADS, LAYERS, EMBED = 128, 4, 2, 128

    key = jax.random.PRNGKey(0)
    kx, kw = jax.random.split(key)
    x = jax.random.normal(kx, (B, C, IMG, IMG), jnp.float32)
    params = init_params(kw, channels=C, patch=PATCH, img=IMG,
                         width=WIDTH, layers=LAYERS, embed_dim=EMBED)
    kparams = pack_params(params, heads=HEADS)

    fwd = jax.jit(functools.partial(vision_transformer_med_forward,
                                    patch=PATCH, heads=HEADS))
    tokens, pooled = fwd(x, kparams)
    jax.block_until_ready((tokens, pooled))

    n_patches = (IMG // PATCH) ** 2
    assert tokens.shape == (B, n_patches, EMBED), tokens.shape
    assert pooled.shape == (B, EMBED), pooled.shape
    assert bool(jnp.all(jnp.isfinite(tokens))) and bool(jnp.all(jnp.isfinite(pooled)))
    print("KERNEL_OK")
</pallas_src>

<mosaic_0001>
module attributes {stable_mosaic.version = 11 : i64} {
  func.func @_vit_kernel(%arg0: i32, %arg1: memref<2x16x768xf32, #tpu.memory_space<vmem>>, %arg2: memref<768x128xbf16, #tpu.memory_space<vmem>>, %arg3: memref<20x128xf32, #tpu.memory_space<vmem>>, %arg4: memref<128x128xbf16, #tpu.memory_space<vmem>>, %arg5: memref<1x6x512xf32, #tpu.memory_space<vmem>>, %arg6: memref<1x128x384xi8, #tpu.memory_space<vmem>>, %arg7: memref<1x128x128xi8, #tpu.memory_space<vmem>>, %arg8: memref<1x128x512xi8, #tpu.memory_space<vmem>>, %arg9: memref<1x512x128xi8, #tpu.memory_space<vmem>>, %arg10: memref<2x16x128xf32, #tpu.memory_space<vmem>>, %arg11: memref<2x16x128xf32, #tpu.memory_space<vmem>>) attributes {dimension_semantics = [#tpu.dimension_semantics<arbitrary>], iteration_bounds = array<i64: 2>, scalar_prefetch = 0 : i64, scratch_operands = 1 : i64, tpu.core_type = #tpu.core_type<tc>, window_params = [{pipeline_mode = #tpu.pipeline_mode<synchronous>, transform_indices = @transform_0, window_bounds = array<i64: 2, 16, 768>}, {pipeline_mode = #tpu.pipeline_mode<synchronous>, transform_indices = @transform_1, window_bounds = array<i64: 768, 128>}, {pipeline_mode = #tpu.pipeline_mode<synchronous>, transform_indices = @transform_2, window_bounds = array<i64: 20, 128>}, {pipeline_mode = #tpu.pipeline_mode<synchronous>, transform_indices = @transform_3, window_bounds = array<i64: 128, 128>}, {transform_indices = @transform_4, window_bounds = array<i64: 1, 6, 512>}, {transform_indices = @transform_5, window_bounds = array<i64: 1, 128, 384>}, {transform_indices = @transform_6, window_bounds = array<i64: 1, 128, 128>}, {transform_indices = @transform_7, window_bounds = array<i64: 1, 128, 512>}, {transform_indices = @transform_8, window_bounds = array<i64: 1, 512, 128>}, {pipeline_mode = #tpu.pipeline_mode<synchronous>, transform_indices = @transform_9, window_bounds = array<i64: 2, 16, 128>}]} {
    %c0_i32 = arith.constant 0 : i32
    %0 = arith.cmpi eq, %arg0, %c0_i32 : i32
    %1 = arith.extui %0 : i1 to i32
    %c0_i32_0 = arith.constant 0 : i32
    %2 = arith.cmpi ne, %1, %c0_i32_0 : i32
    scf.if %2 {
      %c0_43 = arith.constant 0 : index
      %c0_44 = arith.constant 0 : index
      %c0_45 = arith.constant 0 : index
      %164 = vector.load %arg1[%c0_43, %c0_44, %c0_45] : memref<2x16x768xf32, #tpu.memory_space<vmem>>, vector<2x16x768xf32>
      %165 = vector.shape_cast %164 : vector<2x16x768xf32> to vector<32x768xf32>
      %166 = arith.truncf %165 : vector<32x768xf32> to vector<32x768xbf16>
      %c0_46 = arith.constant 0 : index
      %c0_47 = arith.constant 0 : index
      %167 = vector.load %arg2[%c0_46, %c0_47] : memref<768x128xbf16, #tpu.memory_space<vmem>>, vector<768x128xbf16>
      %cst_48 = arith.constant dense<0.000000e+00> : vector<32x128xf32>
      %168 = tpu.matmul %166, %167, %cst_48 {dimension_numbers = #tpu.dot_dimension_numbers<[1], [0], [0], [1], [0, 0, 1, 1], [], []>} : vector<32x768xbf16>, vector<768x128xbf16>, vector<32x128xf32> -> vector<32x128xf32>
      %169 = vector.shape_cast %168 : vector<32x128xf32> to vector<2x16x128xf32>
      %c0_49 = arith.constant 0 : index
      %c0_50 = arith.constant 0 : index
      %170 = vector.load %arg3[%c0_49, %c0_50] : memref<20x128xf32, #tpu.memory_space<vmem>>, vector<16x128xf32>
      %171 = vector.shape_cast %170 : vector<16x128xf32> to vector<1x16x128xf32>
      %172 = vector.broadcast %171 : vector<1x16x128xf32> to vector<2x16x128xf32>
      %173 = arith.addf %169, %172 : vector<2x16x128xf32>
      %c16 = arith.constant 16 : index
      %c0_51 = arith.constant 0 : index
      %174 = vector.load %arg3[%c16, %c0_51] : memref<20x128xf32, #tpu.memory_space<vmem>>, vector<1x128xf32>
      %c17 = arith.constant 17 : index
      %c0_52 = arith.constant 0 : index
      %175 = vector.load %arg3[%c17, %c0_52] : memref<20x128xf32, #tpu.memory_space<vmem>>, vector<1x128xf32>
      %cst_53 = arith.constant dense<0.000000e+00> : vector<2x16xf32>
      %176 = vector.multi_reduction <add>, %173, %cst_53 [2] : vector<2x16x128xf32> to vector<2x16xf32>
      %177 = vector.shape_cast %176 : vector<2x16xf32> to vector<2x16x1xf32>
      %cst_54 = arith.constant 1.280000e+02 : f32
      %178 = vector.broadcast %cst_54 : f32 to vector<2x16x1xf32>
      %179 = arith.divf %177, %178 : vector<2x16x1xf32>
      %180 = vector.broadcast %179 : vector<2x16x1xf32> to vector<2x16x128xf32>
      %181 = arith.subf %173, %180 : vector<2x16x128xf32>
      %182 = arith.mulf %181, %181 : vector<2x16x128xf32>
      %cst_55 = arith.constant dense<0.000000e+00> : vector<2x16xf32>
      %183 = vector.multi_reduction <add>, %182, %cst_55 [2] : vector<2x16x128xf32> to vector<2x16xf32>
      %184 = vector.shape_cast %183 : vector<2x16xf32> to vector<2x16x1xf32>
      %cst_56 = arith.constant 1.280000e+02 : f32
      %185 = vector.broadcast %cst_56 : f32 to vector<2x16x1xf32>
      %186 = arith.divf %184, %185 : vector<2x16x1xf32>
      %187 = vector.broadcast %179 : vector<2x16x1xf32> to vector<2x16x128xf32>
      %188 = arith.subf %173, %187 : vector<2x16x128xf32>
      %cst_57 = arith.constant 9.99999974E-6 : f32
      %189 = vector.broadcast %cst_57 : f32 to vector<2x16x1xf32>
      %190 = arith.addf %186, %189 : vector<2x16x1xf32>
      %191 = math.rsqrt %190 : vector<2x16x1xf32>
      %192 = vector.broadcast %191 : vector<2x16x1xf32> to vector<2x16x128xf32>
      %193 = arith.mulf %188, %192 : vector<2x16x128xf32>
      %194 = vector.shape_cast %174 : vector<1x128xf32> to vector<1x1x128xf32>
      %195 = vector.broadcast %194 : vector<1x1x128xf32> to vector<2x16x128xf32>
      %196 = arith.mulf %193, %195 : vector<2x16x128xf32>
      %197 = vector.shape_cast %175 : vector<1x128xf32> to vector<1x1x128xf32>
      %198 = vector.broadcast %197 : vector<1x1x128xf32> to vector<2x16x128xf32>
      %199 = arith.addf %196, %198 : vector<2x16x128xf32>
      %c0_58 = arith.constant 0 : index
      %c0_59 = arith.constant 0 : index
      %c0_60 = arith.constant 0 : index
      %200 = vector.load %arg11[%c0_58, %c0_59, %c0_60] : memref<2x16x128xf32, #tpu.memory_space<vmem>>, vector<2x16x128xf32>
      tpu.vector_store %arg11[%c0_58, %c0_59, %c0_60], %199 {strides = array<i32>} : memref<2x16x128xf32, #tpu.memory_space<vmem>>, vector<2x16x128xf32>,
    } else {
    }
    %c0 = arith.constant 0 : index
    %c0_1 = arith.constant 0 : index
    %c0_2 = arith.constant 0 : index
    %3 = vector.load %arg5[%c0, %c0_1, %c0_2] : memref<1x6x512xf32, #tpu.memory_space<vmem>>, vector<1x6x512xf32>
    %4 = vector.shape_cast %3 : vector<1x6x512xf32> to vector<6x512xf32>
    %5 = vector.extract_strided_slice %4 {offsets = [0, 0], sizes = [1, 128], strides = [1, 1]} : vector<6x512xf32> to vector<1x128xf32>
    %6 = vector.extract_strided_slice %4 {offsets = [0, 128], sizes = [1, 128], strides = [1, 1]} : vector<6x512xf32> to vector<1x128xf32>
    %7 = vector.extract_strided_slice %4 {offsets = [0, 256], sizes = [1, 128], strides = [1, 1]} : vector<6x512xf32> to vector<1x128xf32>
    %8 = vector.extract_strided_slice %4 {offsets = [0, 384], sizes = [1, 128], strides = [1, 1]} : vector<6x512xf32> to vector<1x128xf32>
    %9 = vector.extract_strided_slice %4 {offsets = [1, 0], sizes = [1, 128], strides = [1, 1]} : vector<6x512xf32> to vector<1x128xf32>
    %10 = vector.extract_strided_slice %4 {offsets = [1, 128], sizes = [1, 128], strides = [1, 1]} : vector<6x512xf32> to vector<1x128xf32>
    %11 = vector.extract_strided_slice %4 {offsets = [1, 256], sizes = [1, 128], strides = [1, 1]} : vector<6x512xf32> to vector<1x128xf32>
    %12 = vector.extract_strided_slice %4 {offsets = [1, 384], sizes = [1, 128], strides = [1, 1]} : vector<6x512xf32> to vector<1x128xf32>
    %13 = vector.extract_strided_slice %4 {offsets = [2, 0], sizes = [1, 128], strides = [1, 1]} : vector<6x512xf32> to vector<1x128xf32>
    %14 = vector.extract_strided_slice %4 {offsets = [2, 128], sizes = [1, 128], strides = [1, 1]} : vector<6x512xf32> to vector<1x128xf32>
    %15 = vector.extract_strided_slice %4 {offsets = [2, 256], sizes = [1, 128], strides = [1, 1]} : vector<6x512xf32> to vector<1x128xf32>
    %16 = vector.extract_strided_slice %4 {offsets = [2, 384], sizes = [1, 128], strides = [1, 1]} : vector<6x512xf32> to vector<1x128xf32>
    %17 = vector.extract_strided_slice %4 {offsets = [3, 0], sizes = [1, 512], strides = [1, 1]} : vector<6x512xf32> to vector<1x512xf32>
    %18 = vector.extract_strided_slice %4 {offsets = [4, 0], sizes = [1, 512], strides = [1, 1]} : vector<6x512xf32> to vector<1x512xf32>
    %19 = vector.extract_strided_slice %4 {offsets = [5, 0], sizes = [1, 128], strides = [1, 1]} : vector<6x512xf32> to vector<1x128xf32>
    %20 = vector.extract_strided_slice %4 {offsets = [5, 128], sizes = [1, 128], strides = [1, 1]} : vector<6x512xf32> to vector<1x128xf32>
    %c0_3 = arith.constant 0 : index
    %c0_4 = arith.constant 0 : index
    %c0_5 = arith.constant 0 : index
    %21 = vector.load %arg11[%c0_3, %c0_4, %c0_5] : memref<2x16x128xf32, #tpu.memory_space<vmem>>, vector<2x16x128xf32>
    %22 = vector.shape_cast %21 : vector<2x16x128xf32> to vector<32x128xf32>
    %cst = arith.constant dense<0.000000e+00> : vector<32xf32>
    %23 = vector.multi_reduction <add>, %22, %cst [1] : vector<32x128xf32> to vector<32xf32>
    %24 = vector.shape_cast %23 : vector<32xf32> to vector<32x1xf32>
    %cst_6 = arith.constant 1.280000e+02 : f32
    %25 = vector.broadcast %cst_6 : f32 to vector<32x1xf32>
    %26 = arith.divf %24, %25 : vector<32x1xf32>
    %27 = vector.broadcast %26 : vector<32x1xf32> to vector<32x128xf32>
    %28 = arith.subf %22, %27 : vector<32x128xf32>
    %29 = arith.mulf %28, %28 : vector<32x128xf32>
    %cst_7 = arith.constant dense<0.000000e+00> : vector<32xf32>
    %30 = vector.multi_reduction <add>, %29, %cst_7 [1] : vector<32x128xf32> to vector<32xf32>
    %31 = vector.shape_cast %30 : vector<32xf32> to vector<32x1xf32>
    %cst_8 = arith.constant 1.280000e+02 : f32
    %32 = vector.broadcast %cst_8 : f32 to vector<32x1xf32>
    %33 = arith.divf %31, %32 : vector<32x1xf32>
    %34 = vector.broadcast %26 : vector<32x1xf32> to vector<32x128xf32>
    %35 = arith.subf %22, %34 : vector<32x128xf32>
    %cst_9 = arith.constant 9.99999974E-6 : f32
    %36 = vector.broadcast %cst_9 : f32 to vector<32x1xf32>
    %37 = arith.addf %33, %36 : vector<32x1xf32>
    %38 = math.rsqrt %37 : vector<32x1xf32>
    %39 = vector.broadcast %38 : vector<32x1xf32> to vector<32x128xf32>
    %40 = arith.mulf %35, %39 : vector<32x128xf32>
    %41 = vector.broadcast %5 : vector<1x128xf32> to vector<32x128xf32>
    %42 = arith.mulf %40, %41 : vector<32x128xf32>
    %43 = vector.broadcast %6 : vector<1x128xf32> to vector<32x128xf32>
    %44 = arith.addf %42, %43 : vector<32x128xf32>
    %45 = arith.truncf %44 : vector<32x128xf32> to vector<32x128xbf16>
    %c0_10 = arith.constant 0 : index
    %c0_11 = arith.constant 0 : index
    %c0_12 = arith.constant 0 : index
    %46 = vector.load %arg6[%c0_10, %c0_11, %c0_12] : memref<1x128x384xi8, #tpu.memory_space<vmem>>, vector<1x128x384xi8>
    %47 = vector.shape_cast %46 : vector<1x128x384xi8> to vector<128x384xi8>
    %48 = arith.sitofp %47 : vector<128x384xi8> to vector<128x384xbf16>
    %cst_13 = arith.constant dense<0.000000e+00> : vector<32x384xf32>
    %49 = tpu.matmul %45, %48, %cst_13 {dimension_numbers = #tpu.dot_dimension_numbers<[1], [0], [0], [1], [0, 0, 1, 1], [], []>} : vector<32x128xbf16>, vector<128x384xbf16>, vector<32x384xf32> -> vector<32x384xf32>
    %50 = vector.extract_strided_slice %49 {offsets = [0, 0], sizes = [32, 128], strides = [1, 1]} : vector<32x384xf32> to vector<32x128xf32>
    %51 = vector.broadcast %13 : vector<1x128xf32> to vector<32x128xf32>
    %52 = arith.mulf %50, %51 : vector<32x128xf32>
    %53 = vector.broadcast %9 : vector<1x128xf32> to vector<32x128xf32>
    %54 = arith.addf %52, %53 : vector<32x128xf32>
    %55 = vector.shape_cast %54 : vector<32x128xf32> to vector<2x16x4x32xf32>
    %56 = tpu.transpose %55, [0, 2, 1, 3] : vector<2x16x4x32xf32> -> vector<2x4x16x32xf32>
    %57 = vector.shape_cast %56 : vector<2x4x16x32xf32> to vector<8x16x32xf32>
    %58 = arith.truncf %57 : vector<8x16x32xf32> to vector<8x16x32xbf16>
    %59 = vector.extract_strided_slice %49 {offsets = [0, 128], sizes = [32, 128], strides = [1, 1]} : vector<32x384xf32> to vector<32x128xf32>
    %60 = vector.broadcast %14 : vector<1x128xf32> to vector<32x128xf32>
    %61 = arith.mulf %59, %60 : vector<32x128xf32>
    %62 = vector.broadcast %10 : vector<1x128xf32> to vector<32x128xf32>
    %63 = arith.addf %61, %62 : vector<32x128xf32>
    %64 = vector.shape_cast %63 : vector<32x128xf32> to vector<2x16x4x32xf32>
    %65 = tpu.transpose %64, [0, 2, 1, 3] : vector<2x16x4x32xf32> -> vector<2x4x16x32xf32>
    %66 = vector.shape_cast %65 : vector<2x4x16x32xf32> to vector<8x16x32xf32>
    %67 = arith.truncf %66 : vector<8x16x32xf32> to vector<8x16x32xbf16>
    %68 = vector.extract_strided_slice %49 {offsets = [0, 256], sizes = [32, 128], strides = [1, 1]} : vector<32x384xf32> to vector<32x128xf32>
    %69 = vector.broadcast %15 : vector<1x128xf32> to vector<32x128xf32>
    %70 = arith.mulf %68, %69 : vector<32x128xf32>
    %71 = vector.broadcast %11 : vector<1x128xf32> to vector<32x128xf32>
    %72 = arith.addf %70, %71 : vector<32x128xf32>
    %73 = vector.shape_cast %72 : vector<32x128xf32> to vector<2x16x4x32xf32>
    %74 = tpu.transpose %73, [0, 2, 1, 3] : vector<2x16x4x32xf32> -> vector<2x4x16x32xf32>
    %75 = vector.shape_cast %74 : vector<2x4x16x32xf32> to vector<8x16x32xf32>
    %76 = arith.truncf %75 : vector<8x16x32xf32> to vector<8x16x32xbf16>
    "tpu.trace_start"() <{level = 10 : i32, message = "bqd,bkd->bqk"}> : () -> ()
    %cst_14 = arith.constant dense<0.000000e+00> : vector<8x16x16xf32>
    %77 = tpu.matmul %58, %67, %cst_14 {dimension_numbers = #tpu.dot_dimension_numbers<[2], [2], [1], [1], [0, 0, 0, 1, 1, 1], [0], [0]>} : vector<8x16x32xbf16>, vector<8x16x32xbf16>, vector<8x16x16xf32> -> vector<8x16x16xf32>
    "tpu.trace_stop"() : () -> ()
    %78 = tpu.iota {dimensions = array<i32: 2>} : vector<1x1x16xi32>
    %c5_i32 = arith.constant 5 : i32
    %79 = vector.broadcast %c5_i32 : i32 to vector<1x1x16xi32>
    %80 = arith.cmpi slt, %78, %79 : vector<1x1x16xi32>
    %cst_15 = arith.constant -1.000000e+30 : f32
    %81 = vector.shape_cast %80 : vector<1x1x16xi1> to vector<1x1x16xi1>
    %82 = vector.broadcast %81 : vector<1x1x16xi1> to vector<8x16x16xi1>
    %83 = vector.broadcast %cst_15 : f32 to vector<8x16x16xf32>
    %84 = arith.select %82, %77, %83 : vector<8x16x16xi1>, vector<8x16x16xf32>
    %cst_16 = arith.constant dense<0xFF800000> : vector<8x16xf32>
    %85 = vector.multi_reduction <maximumf>, %84, %cst_16 [2] : vector<8x16x16xf32> to vector<8x16xf32>
    %86 = vector.shape_cast %85 : vector<8x16xf32> to vector<8x16x1xf32>
    %87 = vector.broadcast %86 : vector<8x16x1xf32> to vector<8x16x16xf32>
    %88 = arith.subf %84, %87 : vector<8x16x16xf32>
    %89 = math.exp %88 : vector<8x16x16xf32>
    %cst_17 = arith.constant dense<0.000000e+00> : vector<8x16xf32>
    %90 = vector.multi_reduction <add>, %89, %cst_17 [2] : vector<8x16x16xf32> to vector<8x16xf32>
    %91 = vector.shape_cast %90 : vector<8x16xf32> to vector<8x16x1xf32>
    %92 = tpu.reciprocal %91 {approx = true} : vector<8x16x1xf32> -> vector<8x16x1xf32>
    %93 = vector.broadcast %92 : vector<8x16x1xf32> to vector<8x16x16xf32>
    %94 = arith.mulf %89, %93 : vector<8x16x16xf32>
    %95 = arith.truncf %94 : vector<8x16x16xf32> to vector<8x16x16xbf16>
    "tpu.trace_start"() <{level = 10 : i32, message = "bqk,bkd->bqd"}> : () -> ()
    %cst_18 = arith.constant dense<0.000000e+00> : vector<8x16x32xf32>
    %96 = tpu.matmul %95, %76, %cst_18 {dimension_numbers = #tpu.dot_dimension_numbers<[2], [1], [1], [2], [0, 0, 0, 1, 1, 2], [0], [0]>} : vector<8x16x16xbf16>, vector<8x16x32xbf16>, vector<8x16x32xf32> -> vector<8x16x32xf32>
    "tpu.trace_stop"() : () -> ()
    %97 = vector.shape_cast %96 : vector<8x16x32xf32> to vector<2x4x16x32xf32>
    %98 = tpu.transpose %97, [0, 2, 1, 3] : vector<2x4x16x32xf32> -> vector<2x16x4x32xf32>
    %99 = vector.shape_cast %98 : vector<2x16x4x32xf32> to vector<32x128xf32>
    %100 = arith.truncf %99 : vector<32x128xf32> to vector<32x128xbf16>
    %c0_19 = arith.constant 0 : index
    %c0_20 = arith.constant 0 : index
    %c0_21 = arith.constant 0 : index
    %101 = vector.load %arg7[%c0_19, %c0_20, %c0_21] : memref<1x128x128xi8, #tpu.memory_space<vmem>>, vector<1x128x128xi8>
    %102 = vector.shape_cast %101 : vector<1x128x128xi8> to vector<128x128xi8>
    %103 = arith.sitofp %102 : vector<128x128xi8> to vector<128x128xbf16>
    %cst_22 = arith.constant dense<0.000000e+00> : vector<32x128xf32>
    %104 = tpu.matmul %100, %103, %cst_22 {dimension_numbers = #tpu.dot_dimension_numbers<[1], [0], [0], [1], [0, 0, 1, 1], [], []>} : vector<32x128xbf16>, vector<128x128xbf16>, vector<32x128xf32> -> vector<32x128xf32>
    %105 = vector.broadcast %16 : vector<1x128xf32> to vector<32x128xf32>
    %106 = arith.mulf %104, %105 : vector<32x128xf32>
    %107 = vector.broadcast %12 : vector<1x128xf32> to vector<32x128xf32>
    %108 = arith.addf %106, %107 : vector<32x128xf32>
    %109 = arith.addf %22, %108 : vector<32x128xf32>
    %cst_23 = arith.constant dense<0.000000e+00> : vector<32xf32>
    %110 = vector.multi_reduction <add>, %109, %cst_23 [1] : vector<32x128xf32> to vector<32xf32>
    %111 = vector.shape_cast %110 : vector<32xf32> to vector<32x1xf32>
    %cst_24 = arith.constant 1.280000e+02 : f32
    %112 = vector.broadcast %cst_24 : f32 to vector<32x1xf32>
    %113 = arith.divf %111, %112 : vector<32x1xf32>
    %114 = vector.broadcast %113 : vector<32x1xf32> to vector<32x128xf32>
    %115 = arith.subf %109, %114 : vector<32x128xf32>
    %116 = arith.mulf %115, %115 : vector<32x128xf32>
    %cst_25 = arith.constant dense<0.000000e+00> : vector<32xf32>
    %117 = vector.multi_reduction <add>, %116, %cst_25 [1] : vector<32x128xf32> to vector<32xf32>
    %118 = vector.shape_cast %117 : vector<32xf32> to vector<32x1xf32>
    %cst_26 = arith.constant 1.280000e+02 : f32
    %119 = vector.broadcast %cst_26 : f32 to vector<32x1xf32>
    %120 = arith.divf %118, %119 : vector<32x1xf32>
    %121 = vector.broadcast %113 : vector<32x1xf32> to vector<32x128xf32>
    %122 = arith.subf %109, %121 : vector<32x128xf32>
    %cst_27 = arith.constant 9.99999974E-6 : f32
    %123 = vector.broadcast %cst_27 : f32 to vector<32x1xf32>
    %124 = arith.addf %120, %123 : vector<32x1xf32>
    %125 = math.rsqrt %124 : vector<32x1xf32>
    %126 = vector.broadcast %125 : vector<32x1xf32> to vector<32x128xf32>
    %127 = arith.mulf %122, %126 : vector<32x128xf32>
    %128 = vector.broadcast %7 : vector<1x128xf32> to vector<32x128xf32>
    %129 = arith.mulf %127, %128 : vector<32x128xf32>
    %130 = vector.broadcast %8 : vector<1x128xf32> to vector<32x128xf32>
    %131 = arith.addf %129, %130 : vector<32x128xf32>
    %132 = arith.truncf %131 : vector<32x128xf32> to vector<32x128xbf16>
    %c0_28 = arith.constant 0 : index
    %c0_29 = arith.constant 0 : index
    %c0_30 = arith.constant 0 : index
    %133 = vector.load %arg8[%c0_28, %c0_29, %c0_30] : memref<1x128x512xi8, #tpu.memory_space<vmem>>, vector<1x128x512xi8>
    %134 = vector.shape_cast %133 : vector<1x128x512xi8> to vector<128x512xi8>
    %135 = arith.sitofp %134 : vector<128x512xi8> to vector<128x512xbf16>
    %cst_31 = arith.constant dense<0.000000e+00> : vector<32x512xf32>
    %136 = tpu.matmul %132, %135, %cst_31 {dimension_numbers = #tpu.dot_dimension_numbers<[1], [0], [0], [1], [0, 0, 1, 1], [], []>} : vector<32x128xbf16>, vector<128x512xbf16>, vector<32x512xf32> -> vector<32x512xf32>
    %137 = vector.broadcast %18 : vector<1x512xf32> to vector<32x512xf32>
    %138 = arith.mulf %136, %137 : vector<32x512xf32>
    %139 = vector.broadcast %17 : vector<1x512xf32> to vector<32x512xf32>
    %140 = arith.addf %138, %139 : vector<32x512xf32>
    %cst_32 = arith.constant 5.000000e-01 : f32
    %141 = vector.broadcast %cst_32 : f32 to vector<32x512xf32>
    %142 = arith.mulf %141, %140 : vector<32x512xf32>
    %cst_33 = arith.constant 0.707106769 : f32
    %143 = vector.broadcast %cst_33 : f32 to vector<32x512xf32>
    %144 = arith.mulf %140, %143 : vector<32x512xf32>
    %145 = math.erf %144 : vector<32x512xf32>
    %cst_34 = arith.constant 1.000000e+00 : f32
    %146 = vector.broadcast %cst_34 : f32 to vector<32x512xf32>
    %147 = arith.addf %146, %145 : vector<32x512xf32>
    %148 = arith.mulf %142, %147 : vector<32x512xf32>
    %149 = arith.truncf %148 : vector<32x512xf32> to vector<32x512xbf16>
    %c0_35 = arith.constant 0 : index
    %c0_36 = arith.constant 0 : index
    %c0_37 = arith.constant 0 : index
    %150 = vector.load %arg9[%c0_35, %c0_36, %c0_37] : memref<1x512x128xi8, #tpu.memory_space<vmem>>, vector<1x512x128xi8>
    %151 = vector.shape_cast %150 : vector<1x512x128xi8> to vector<512x128xi8>
    %152 = arith.sitofp %151 : vector<512x128xi8> to vector<512x128xbf16>
    %cst_38 = arith.constant dense<0.000000e+00> : vector<32x128xf32>
    %153 = tpu.matmul %149, %152, %cst_38 {dimension_numbers = #tpu.dot_dimension_numbers<[1], [0], [0], [1], [0, 0, 1, 1], [], []>} : vector<32x512xbf16>, vector<512x128xbf16>, vector<32x128xf32> -> vector<32x128xf32>
    %154 = vector.broadcast %20 : vector<1x128xf32> to vector<32x128xf32>
    %155 = arith.mulf %153, %154 : vector<32x128xf32>
    %156 = vector.broadcast %19 : vector<1x128xf32> to vector<32x128xf32>
    %157 = arith.addf %155, %156 : vector<32x128xf32>
    %158 = arith.addf %109, %157 : vector<32x128xf32>
    %159 = vector.shape_cast %158 : vector<32x128xf32> to vector<2x16x128xf32>
    %c0_39 = arith.constant 0 : index
    %c0_40 = arith.constant 0 : index
    %c0_41 = arith.constant 0 : index
    %160 = vector.load %arg11[%c0_39, %c0_40, %c0_41] : memref<2x16x128xf32, #tpu.memory_space<vmem>>, vector<2x16x128xf32>
    tpu.vector_store %arg11[%c0_39, %c0_40, %c0_41], %159 {strides = array<i32>} : memref<2x16x128xf32, #tpu.memory_space<vmem>>, vector<2x16x128xf32>,
    %c1_i32 = arith.constant 1 : i32
    %161 = arith.cmpi eq, %arg0, %c1_i32 : i32
    %162 = arith.extui %161 : i1 to i32
    %c0_i32_42 = arith.constant 0 : i32
    %163 = arith.cmpi ne, %162, %c0_i32_42 : i32
    scf.if %163 {
      %c18 = arith.constant 18 : index
      %c0_43 = arith.constant 0 : index
      %164 = vector.load %arg3[%c18, %c0_43] : memref<20x128xf32, #tpu.memory_space<vmem>>, vector<1x128xf32>
      %c19 = arith.constant 19 : index
      %c0_44 = arith.constant 0 : index
      %165 = vector.load %arg3[%c19, %c0_44] : memref<20x128xf32, #tpu.memory_space<vmem>>, vector<1x128xf32>
      %cst_45 = arith.constant dense<0.000000e+00> : vector<32xf32>
      %166 = vector.multi_reduction <add>, %158, %cst_45 [1] : vector<32x128xf32> to vector<32xf32>
      %167 = vector.shape_cast %166 : vector<32xf32> to vector<32x1xf32>
      %cst_46 = arith.constant 1.280000e+02 : f32
      %168 = vector.broadcast %cst_46 : f32 to vector<32x1xf32>
      %169 = arith.divf %167, %168 : vector<32x1xf32>
      %170 = vector.broadcast %169 : vector<32x1xf32> to vector<32x128xf32>
      %171 = arith.subf %158, %170 : vector<32x128xf32>
      %172 = arith.mulf %171, %171 : vector<32x128xf32>
      %cst_47 = arith.constant dense<0.000000e+00> : vector<32xf32>
      %173 = vector.multi_reduction <add>, %172, %cst_47 [1] : vector<32x128xf32> to vector<32xf32>
      %174 = vector.shape_cast %173 : vector<32xf32> to vector<32x1xf32>
      %cst_48 = arith.constant 1.280000e+02 : f32
      %175 = vector.broadcast %cst_48 : f32 to vector<32x1xf32>
      %176 = arith.divf %174, %175 : vector<32x1xf32>
      %177 = vector.broadcast %169 : vector<32x1xf32> to vector<32x128xf32>
      %178 = arith.subf %158, %177 : vector<32x128xf32>
      %cst_49 = arith.constant 9.99999974E-6 : f32
      %179 = vector.broadcast %cst_49 : f32 to vector<32x1xf32>
      %180 = arith.addf %176, %179 : vector<32x1xf32>
      %181 = math.rsqrt %180 : vector<32x1xf32>
      %182 = vector.broadcast %181 : vector<32x1xf32> to vector<32x128xf32>
      %183 = arith.mulf %178, %182 : vector<32x128xf32>
      %184 = vector.broadcast %164 : vector<1x128xf32> to vector<32x128xf32>
      %185 = arith.mulf %183, %184 : vector<32x128xf32>
      %186 = vector.broadcast %165 : vector<1x128xf32> to vector<32x128xf32>
      %187 = arith.addf %185, %186 : vector<32x128xf32>
      %188 = arith.truncf %187 : vector<32x128xf32> to vector<32x128xbf16>
      %c0_50 = arith.constant 0 : index
      %c0_51 = arith.constant 0 : index
      %189 = vector.load %arg4[%c0_50, %c0_51] : memref<128x128xbf16, #tpu.memory_space<vmem>>, vector<128x128xbf16>
      %cst_52 = arith.constant dense<0.000000e+00> : vector<32x128xf32>
      %190 = tpu.matmul %188, %189, %cst_52 {dimension_numbers = #tpu.dot_dimension_numbers<[1], [0], [0], [1], [0, 0, 1, 1], [], []>} : vector<32x128xbf16>, vector<128x128xbf16>, vector<32x128xf32> -> vector<32x128xf32>
      %191 = vector.shape_cast %190 : vector<32x128xf32> to vector<2x16x128xf32>
      %c0_53 = arith.constant 0 : index
      %c0_54 = arith.constant 0 : index
      %c0_55 = arith.constant 0 : index
      %192 = vector.load %arg10[%c0_53, %c0_54, %c0_55] : memref<2x16x128xf32, #tpu.memory_space<vmem>>, vector<2x16x128xf32>
      tpu.vector_store %arg10[%c0_53, %c0_54, %c0_55], %191 {strides = array<i32>} : memref<2x16x128xf32, #tpu.memory_space<vmem>>, vector<2x16x128xf32>,
    } else {
    }
    return
  }
  func.func @transform_0(%arg0: i32) -> (i32, i32, i32) {
    %c0_i32 = arith.constant 0 : i32
    %c0_i32_0 = arith.constant 0 : i32
    %c0_i32_1 = arith.constant 0 : i32
    %c0_i32_2 = arith.constant 0 : i32
    return %c0_i32, %c0_i32_0, %c0_i32_1 : i32, i32, i32
  }
  func.func @transform_1(%arg0: i32) -> (i32, i32) {
    %c0_i32 = arith.constant 0 : i32
    %c0_i32_0 = arith.constant 0 : i32
    %c0_i32_1 = arith.constant 0 : i32
    return %c0_i32, %c0_i32_0 : i32, i32
  }
  func.func @transform_2(%arg0: i32) -> (i32, i32) {
    %c0_i32 = arith.constant 0 : i32
    %c0_i32_0 = arith.constant 0 : i32
    %c0_i32_1 = arith.constant 0 : i32
    return %c0_i32, %c0_i32_0 : i32, i32
  }
  func.func @transform_3(%arg0: i32) -> (i32, i32) {
    %c0_i32 = arith.constant 0 : i32
    %c0_i32_0 = arith.constant 0 : i32
    %c0_i32_1 = arith.constant 0 : i32
    return %c0_i32, %c0_i32_0 : i32, i32
  }
  func.func @transform_4(%arg0: i32) -> (i32, i32, i32) {
    %c0_i32 = arith.constant 0 : i32
    %c0_i32_0 = arith.constant 0 : i32
    %c0_i32_1 = arith.constant 0 : i32
    return %arg0, %c0_i32, %c0_i32_0 : i32, i32, i32
  }
  func.func @transform_5(%arg0: i32) -> (i32, i32, i32) {
    %c0_i32 = arith.constant 0 : i32
    %c0_i32_0 = arith.constant 0 : i32
    %c0_i32_1 = arith.constant 0 : i32
    return %arg0, %c0_i32, %c0_i32_0 : i32, i32, i32
  }
  func.func @transform_6(%arg0: i32) -> (i32, i32, i32) {
    %c0_i32 = arith.constant 0 : i32
    %c0_i32_0 = arith.constant 0 : i32
    %c0_i32_1 = arith.constant 0 : i32
    return %arg0, %c0_i32, %c0_i32_0 : i32, i32, i32
  }
  func.func @transform_7(%arg0: i32) -> (i32, i32, i32) {
    %c0_i32 = arith.constant 0 : i32
    %c0_i32_0 = arith.constant 0 : i32
    %c0_i32_1 = arith.constant 0 : i32
    return %arg0, %c0_i32, %c0_i32_0 : i32, i32, i32
  }
  func.func @transform_8(%arg0: i32) -> (i32, i32, i32) {
    %c0_i32 = arith.constant 0 : i32
    %c0_i32_0 = arith.constant 0 : i32
    %c0_i32_1 = arith.constant 0 : i32
    return %arg0, %c0_i32, %c0_i32_0 : i32, i32, i32
  }
  func.func @transform_9(%arg0: i32) -> (i32, i32, i32) {
    %c0_i32 = arith.constant 0 : i32
    %c0_i32_0 = arith.constant 0 : i32
    %c0_i32_1 = arith.constant 0 : i32
    %c0_i32_2 = arith.constant 0 : i32
    return %c0_i32, %c0_i32_0, %c0_i32_1 : i32, i32, i32
  }
}

</mosaic_0001>

<llo_original>
// kernel: vision_transformer_med_forward.1
$region0: #{vision_transformer_med_forward.1}
  #allocation0 [shape = 'u32[]', space=smem, size = 0x4, offset = 0x4, fixed_abs, tag = 'smem constant byte address 0x4 - core index']
  #allocation1 [shape = 'u32[144,128]{1,0:T(1,128)}', space=vmem, size = 0x12000, scoped, tag = 'internal scratch']
  #allocation2 [shape = 'f32[2,16,128]{2,1,0:T(8,128)}', space=vmem, size = 0x4000, scoped, tag = 'scratch operand']
  %s0 = inlined_call_operand.vmem [shape: f32[2,16,768], index: 0, kind: input, shape index: {}]
  %s1 = inlined_call_operand.vmem [shape: bf16[768,128], index: 1, kind: input, shape index: {}]
  %s2 = inlined_call_operand.vmem [shape: f32[20,128], index: 2, kind: input, shape index: {}]
  %s3 = inlined_call_operand.vmem [shape: bf16[128,128], index: 3, kind: input, shape index: {}]
  %s4 = inlined_call_operand.vmem [shape: f32[2,6,512], index: 4, kind: input, shape index: {}]
  %s5 = inlined_call_operand.vmem [shape: s8[2,128,384], index: 5, kind: input, shape index: {}]
  %s6 = inlined_call_operand.vmem [shape: s8[2,128,128], index: 6, kind: input, shape index: {}]
  %s7 = inlined_call_operand.vmem [shape: s8[2,128,512], index: 7, kind: input, shape index: {}]
  %s8 = inlined_call_operand.vmem [shape: s8[2,512,128], index: 8, kind: input, shape index: {}]
  %s9 = inlined_call_operand.vmem [shape: f32[2,16,128], index: 9, kind: output, shape index: {}]
  %s10 = sld [smem:[#allocation0]]
  $region77: #{vision_transformer_med_forward.1} parent=0
    _
  %s12 = ssub.s32 1, %s10
  %s13 = scalar_select 0, %s12, %s10
  loop: start=0, step=1, limit=4
  $region2: #{vision_transformer_med_forward.1} parent=0 // loop_pre_header
    _
  $region3: #{vision_transformer_med_forward.1} parent=0 // loop_header
    %s15 = sphi 0, %s19
    %p16 = scmp.ge.s32.totalorder %s15, 4
    %s23 = sphi 0, %s23
    %s25 = sphi 0, %s23
    %s26 = sphi 0, %s25
    %s40 = sphi 0, %s26
    %s44 = sphi 0, %s44
    %s46 = sphi 0, %s44
    %s47 = sphi 0, %s46
    %s61 = sphi 0, %s47
    %s65 = sphi 0, %s65
    %s67 = sphi 0, %s65
    %s68 = sphi 0, %s67
    %s82 = sphi 0, %s68
    %s86 = sphi 0, %s86
    %s88 = sphi 0, %s86
    %s89 = sphi 0, %s88
    %s103 = sphi 0, %s89
    %s109 = sphi 0, %s111
    %s112 = sphi 0, %s109
    %s113 = sphi 0, %s112
    %s129 = sphi 0, %s113
    %s135 = sphi 0, %s137
    %s138 = sphi 0, %s135
    %s139 = sphi 0, %s138
    %s155 = sphi 0, %s139
    %s161 = sphi 0, %s163
    %s164 = sphi 0, %s161
    %s165 = sphi 0, %s164
    %s181 = sphi 0, %s165
    %s187 = sphi 0, %s189
    %s190 = sphi 0, %s187
    %s191 = sphi 0, %s190
    %s207 = sphi 0, %s191
    %s213 = sphi 0, %s215
    %s216 = sphi 0, %s213
    %s217 = sphi 0, %s216
    %s233 = sphi 0, %s217
    %s237 = sphi 0, %s237
    %s239 = sphi 0, %s237
    %s240 = sphi 0, %s239
    %s254 = sphi 0, %s240
  $region4: #{vision_transformer_med_forward.1} parent=0 // loop_header_branch
    %18 = sbr.rel (%p16) target = $region8
  $region5: #{vision_transformer_med_forward.1} parent=0 // loop_body
    %s20 = ssub.s32 %s15, 1
    %s21 = ssub.s32 %s15, 2
    %s22 = sadd.s32 %s15, 1
    %s24 = sadd.s32 %s23, 1
    %p27 = scmp.eq.s32.totalorder %s15, 1
    %p28 = scmp.ne.s32.totalorder %s23, %s25
    %p29 = scmp.eq.s32.totalorder %s15, 0
    %p30 = por %p28, %p29
    %p31 = scmp.ne.s32.totalorder %s23, %s25
    %p32 = scmp.eq.s32.totalorder %s20, 1
    %p33 = por %p31, %p32
    %p34 = scmp.ne.s32.totalorder %s25, %s26
    %p35 = scmp.eq.s32.totalorder %s20, 0
    %p36 = por %p34, %p35
    %p37 = scmp.ne.s32.totalorder %s25, %s26
    %p38 = scmp.eq.s32.totalorder %s21, 1
    %p39 = por %p37, %p38
    %p41 = scmp.ne.s32.totalorder %s26, %s40
    %p42 = scmp.eq.s32.totalorder %s21, 0
    %p43 = por %p41, %p42
    %s45 = sadd.s32 %s44, 1
    %p48 = scmp.eq.s32.totalorder %s15, 1
    %p49 = scmp.ne.s32.totalorder %s44, %s46
    %p50 = scmp.eq.s32.totalorder %s15, 0
    %p51 = por %p49, %p50
    %p52 = scmp.ne.s32.totalorder %s44, %s46
    %p53 = scmp.eq.s32.totalorder %s20, 1
    %p54 = por %p52, %p53
    %p55 = scmp.ne.s32.totalorder %s46, %s47
    %p56 = scmp.eq.s32.totalorder %s20, 0
    %p57 = por %p55, %p56
    %p58 = scmp.ne.s32.totalorder %s46, %s47
    %p59 = scmp.eq.s32.totalorder %s21, 1
    %p60 = por %p58, %p59
    %p62 = scmp.ne.s32.totalorder %s47, %s61
    %p63 = scmp.eq.s32.totalorder %s21, 0
    %p64 = por %p62, %p63
    %s66 = sadd.s32 %s65, 1
    %p69 = scmp.eq.s32.totalorder %s15, 1
    %p70 = scmp.ne.s32.totalorder %s65, %s67
    %p71 = scmp.eq.s32.totalorder %s15, 0
    %p72 = por %p70, %p71
    %p73 = scmp.ne.s32.totalorder %s65, %s67
    %p74 = scmp.eq.s32.totalorder %s20, 1
    %p75 = por %p73, %p74
    %p76 = scmp.ne.s32.totalorder %s67, %s68
    %p77 = scmp.eq.s32.totalorder %s20, 0
    %p78 = por %p76, %p77
    %p79 = scmp.ne.s32.totalorder %s67, %s68
    %p80 = scmp.eq.s32.totalorder %s21, 1
    %p81 = por %p79, %p80
    %p83 = scmp.ne.s32.totalorder %s68, %s82
    %p84 = scmp.eq.s32.totalorder %s21, 0
    %p85 = por %p83, %p84
    %s87 = sadd.s32 %s86, 1
    %p90 = scmp.eq.s32.totalorder %s15, 1
    %p91 = scmp.ne.s32.totalorder %s86, %s88
    %p92 = scmp.eq.s32.totalorder %s15, 0
    %p93 = por %p91, %p92
    %p94 = scmp.ne.s32.totalorder %s86, %s88
    %p95 = scmp.eq.s32.totalorder %s20, 1
    %p96 = por %p94, %p95
    %p97 = scmp.ne.s32.totalorder %s88, %s89
    %p98 = scmp.eq.s32.totalorder %s20, 0
    %p99 = por %p97, %p98
    %p100 = scmp.ne.s32.totalorder %s88, %s89
    %p101 = scmp.eq.s32.totalorder %s21, 1
    %p102 = por %p100, %p101
    %p104 = scmp.ne.s32.totalorder %s89, %s103
    %p105 = scmp.eq.s32.totalorder %s21, 0
    %p106 = por %p104, %p105
    %s107 = ssub.s32 %s15, %s22
    %p108 = scmp.eq.s32.totalorder %s107, 0
    %s110 = sadd.s32 %s109, 1
    %s111 = scalar_select %p108, %s109, %s110
    %p114 = pneg %p108
    %p115 = scmp.eq.s32.totalorder %s15, 1
    %p116 = por %p114, %p115
    %p117 = scmp.ne.s32.totalorder %s109, %s112
    %p118 = scmp.eq.s32.totalorder %s15, 0
    %p119 = por %p117, %p118
    %p120 = scmp.ne.s32.totalorder %s109, %s112
    %p121 = scmp.eq.s32.totalorder %s20, 1
    %p122 = por %p120, %p121
    %p123 = scmp.ne.s32.totalorder %s112, %s113
    %p124 = scmp.eq.s32.totalorder %s20, 0
    %p125 = por %p123, %p124
    %p126 = scmp.ne.s32.totalorder %s112, %s113
    %p127 = scmp.eq.s32.totalorder %s21, 1
    %p128 = por %p126, %p127
    %p130 = scmp.ne.s32.totalorder %s113, %s129
    %p131 = scmp.eq.s32.totalorder %s21, 0
    %p132 = por %p130, %p131
    %s133 = ssub.s32 %s15, %s22
    %p134 = scmp.eq.s32.totalorder %s133, 0
    %s136 = sadd.s32 %s135, 1
    %s137 = scalar_select %p134, %s135, %s136
    %p140 = pneg %p134
    %p141 = scmp.eq.s32.totalorder %s15, 1
    %p142 = por %p140, %p141
    %p143 = scmp.ne.s32.totalorder %s135, %s138
    %p144 = scmp.eq.s32.totalorder %s15, 0
    %p145 = por %p143, %p144
    %p146 = scmp.ne.s32.totalorder %s135, %s138
    %p147 = scmp.eq.s32.totalorder %s20, 1
    %p148 = por %p146, %p147
    %p149 = scmp.ne.s32.totalorder %s138, %s139
    %p150 = scmp.eq.s32.totalorder %s20, 0
    %p151 = por %p149, %p150
    %p152 = scmp.ne.s32.totalorder %s138, %s139
    %p153 = scmp.eq.s32.totalorder %s21, 1
    %p154 = por %p152, %p153
    %p156 = scmp.ne.s32.totalorder %s139, %s155
    %p157 = scmp.eq.s32.totalorder %s21, 0
    %p158 = por %p156, %p157
    %s159 = ssub.s32 %s15, %s22
    %p160 = scmp.eq.s32.totalorder %s159, 0
    %s162 = sadd.s32 %s161, 1
    %s163 = scalar_select %p160, %s161, %s162
    %p166 = pneg %p160
    %p167 = scmp.eq.s32.totalorder %s15, 1
    %p168 = por %p166, %p167
    %p169 = scmp.ne.s32.totalorder %s161, %s164
    %p170 = scmp.eq.s32.totalorder %s15, 0
    %p171 = por %p169, %p170
    %p172 = scmp.ne.s32.totalorder %s161, %s164
    %p173 = scmp.eq.s32.totalorder %s20, 1
    %p174 = por %p172, %p173
    %p175 = scmp.ne.s32.totalorder %s164, %s165
    %p176 = scmp.eq.s32.totalorder %s20, 0
    %p177 = por %p175, %p176
    %p178 = scmp.ne.s32.totalorder %s164, %s165
    %p179 = scmp.eq.s32.totalorder %s21, 1
    %p180 = por %p178, %p179
    %p182 = scmp.ne.s32.totalorder %s165, %s181
    %p183 = scmp.eq.s32.totalorder %s21, 0
    %p184 = por %p182, %p183
    %s185 = ssub.s32 %s15, %s22
    %p186 = scmp.eq.s32.totalorder %s185, 0
    %s188 = sadd.s32 %s187, 1
    %s189 = scalar_select %p186, %s187, %s188
    %p192 = pneg %p186
    %p193 = scmp.eq.s32.totalorder %s15, 1
    %p194 = por %p192, %p193
    %p195 = scmp.ne.s32.totalorder %s187, %s190
    %p196 = scmp.eq.s32.totalorder %s15, 0
    %p197 = por %p195, %p196
    %p198 = scmp.ne.s32.totalorder %s187, %s190
    %p199 = scmp.eq.s32.totalorder %s20, 1
    %p200 = por %p198, %p199
    %p201 = scmp.ne.s32.totalorder %s190, %s191
    %p202 = scmp.eq.s32.totalorder %s20, 0
    %p203 = por %p201, %p202
    %p204 = scmp.ne.s32.totalorder %s190, %s191
    %p205 = scmp.eq.s32.totalorder %s21, 1
    %p206 = por %p204, %p205
    %p208 = scmp.ne.s32.totalorder %s191, %s207
    %p209 = scmp.eq.s32.totalorder %s21, 0
    %p210 = por %p208, %p209
    %s211 = ssub.s32 %s15, %s22
    %p212 = scmp.eq.s32.totalorder %s211, 0
    %s214 = sadd.s32 %s213, 1
    %s215 = scalar_select %p212, %s213, %s214
    %p218 = pneg %p212
    %p219 = scmp.eq.s32.totalorder %s15, 1
    %p220 = por %p218, %p219
    %p221 = scmp.ne.s32.totalorder %s213, %s216
    %p222 = scmp.eq.s32.totalorder %s15, 0
    %p223 = por %p221, %p222
    %p224 = scmp.ne.s32.totalorder %s213, %s216
    %p225 = scmp.eq.s32.totalorder %s20, 1
    %p226 = por %p224, %p225
    %p227 = scmp.ne.s32.totalorder %s216, %s217
    %p228 = scmp.eq.s32.totalorder %s20, 0
    %p229 = por %p227, %p228
    %p230 = scmp.ne.s32.totalorder %s216, %s217
    %p231 = scmp.eq.s32.totalorder %s21, 1
    %p232 = por %p230, %p231
    %p234 = scmp.ne.s32.totalorder %s217, %s233
    %p235 = scmp.eq.s32.totalorder %s21, 0
    %p236 = por %p234, %p235
    %s238 = sadd.s32 %s237, 1
    %p241 = scmp.eq.s32.totalorder %s15, 1
    %p242 = scmp.ne.s32.totalorder %s237, %s239
    %p243 = scmp.eq.s32.totalorder %s15, 0
    %p244 = por %p242, %p243
    %p245 = scmp.ne.s32.totalorder %s237, %s239
    %p246 = scmp.eq.s32.totalorder %s20, 1
    %p247 = por %p245, %p246
    %p248 = scmp.ne.s32.totalorder %s239, %s240
    %p249 = scmp.eq.s32.totalorder %s20, 0
    %p250 = por %p248, %p249
    %p251 = scmp.ne.s32.totalorder %s239, %s240
    %p252 = scmp.eq.s32.totalorder %s21, 1
    %p253 = por %p251, %p252
    %p255 = scmp.ne.s32.totalorder %s240, %s254
    %p256 = scmp.eq.s32.totalorder %s21, 0
    %p257 = por %p255, %p256
    %p258 = scmp.le.s32.totalorder 1, %s15
    %p259 = scmp.lt.s32.totalorder %s15, 3
    %p260 = pnand %p258, %p259
    %p261 = pneg %p260
    // Predicated region
    $region9: #{vision_transformer_med_forward.1} parent=5 // pred_check
      _
    $region10: #{vision_transformer_med_forward.1} parent=5 // pred_check_branch
      %263 = sbr.rel (%p260) target = $region12
    $region11: #{vision_transformer_med_forward.1} parent=5 // pred_region
      %s264 = ssub.s32 %s15, 1
      // Predicated region
      $region13: #{vision_transformer_med_forward.1} parent=11 // pred_check
        %p265 = pneg %p36
      $region14: #{vision_transformer_med_forward.1} parent=11 // pred_check_branch
        %267 = sbr.rel (%p265) target = $region16
      $region15: #{vision_transformer_med_forward.1} parent=11 // pred_region
        _
      $region16: #{vision_transformer_med_forward.1} parent=11 // pred_fallthru
        _
      // Predicated region
      $region17: #{vision_transformer_med_forward.1} parent=11 // pred_check
        %p268 = pneg %p57
      $region18: #{vision_transformer_med_forward.1} parent=11 // pred_check_branch
        %270 = sbr.rel (%p268) target = $region20
      $region19: #{vision_transformer_med_forward.1} parent=11 // pred_region
        _
      $region20: #{vision_transformer_med_forward.1} parent=11 // pred_fallthru
        _
      // Predicated region
      $region21: #{vision_transformer_med_forward.1} parent=11 // pred_check
        %p271 = pneg %p78
      $region22: #{vision_transformer_med_forward.1} parent=11 // pred_check_branch
        %273 = sbr.rel (%p271) target = $region24
      $region23: #{vision_transformer_med_forward.1} parent=11 // pred_region
        _
      $region24: #{vision_transformer_med_forward.1} parent=11 // pred_fallthru
        _
      // Predicated region
      $region25: #{vision_transformer_med_forward.1} parent=11 // pred_check
        %p274 = pneg %p99
      $region26: #{vision_transformer_med_forward.1} parent=11 // pred_check_branch
        %276 = sbr.rel (%p274) target = $region28
      $region27: #{vision_transformer_med_forward.1} parent=11 // pred_region
        _
      $region28: #{vision_transformer_med_forward.1} parent=11 // pred_fallthru
        _
    $region12: #{vision_transformer_med_forward.1} parent=5 // pred_fallthru
      _
    %p277 = scmp.lt.s32.totalorder %s15, 2
    // Predicated region
    $region29: #{vision_transformer_med_forward.1} parent=5 // pred_check
      %p278 = pneg %p277
    $region30: #{vision_transformer_med_forward.1} parent=5 // pred_check_branch
      %280 = sbr.rel (%p278) target = $region32
    $region31: #{vision_transformer_med_forward.1} parent=5 // pred_region
      // Predicated region
      $region33: #{vision_transformer_med_forward.1} parent=31 // pred_check
        %p281 = pneg %p119
      $region34: #{vision_transformer_med_forward.1} parent=31 // pred_check_branch
        %283 = sbr.rel (%p281) target = $region36
      $region35: #{vision_transformer_med_forward.1} parent=31 // pred_region
        %p284 = scmp.lt.s32.totalorder %s15, 1
        %s285 = scalar_select %p284, %s15, 1
        %s286 = smul.addr %s285, 4
        %s287 = smul.addr %s286, 8
        %s288 = scalar_lea.vmem %s4, %s287
      $region36: #{vision_transformer_med_forward.1} parent=31 // pred_fallthru
        _
      // Predicated region
      $region37: #{vision_transformer_med_forward.1} parent=31 // pred_check
        %p289 = pneg %p145
      $region38: #{vision_transformer_med_forward.1} parent=31 // pred_check_branch
        %291 = sbr.rel (%p289) target = $region40
      $region39: #{vision_transformer_med_forward.1} parent=31 // pred_region
        %p292 = scmp.lt.s32.totalorder %s15, 1
        %s293 = scalar_select %p292, %s15, 1
        %s294 = smul.addr %s293, 12
        %s295 = smul.addr %s294, 8
        %s296 = scalar_lea.vmem %s5, %s295
      $region40: #{vision_transformer_med_forward.1} parent=31 // pred_fallthru
        _
      // Predicated region
      $region41: #{vision_transformer_med_forward.1} parent=31 // pred_check
        %p297 = pneg %p171
      $region42: #{vision_transformer_med_forward.1} parent=31 // pred_check_branch
        %299 = sbr.rel (%p297) target = $region44
      $region43: #{vision_transformer_med_forward.1} parent=31 // pred_region
        %p300 = scmp.lt.s32.totalorder %s15, 1
        %s301 = scalar_select %p300, %s15, 1
        %s302 = smul.addr %s301, 4
        %s303 = smul.addr %s302, 8
        %s304 = scalar_lea.vmem %s6, %s303
      $region44: #{vision_transformer_med_forward.1} parent=31 // pred_fallthru
        _
      // Predicated region
      $region45: #{vision_transformer_med_forward.1} parent=31 // pred_check
        %p305 = pneg %p197
      $region46: #{vision_transformer_med_forward.1} parent=31 // pred_check_branch
        %307 = sbr.rel (%p305) target = $region48
      $region47: #{vision_transformer_med_forward.1} parent=31 // pred_region
        %p308 = scmp.lt.s32.totalorder %s15, 1
        %s309 = scalar_select %p308, %s15, 1
        %s310 = smul.addr %s309, 16
        %s311 = smul.addr %s310, 8
        %s312 = scalar_lea.vmem %s7, %s311
      $region48: #{vision_transformer_med_forward.1} parent=31 // pred_fallthru
        _
      // Predicated region
      $region49: #{vision_transformer_med_forward.1} parent=31 // pred_check
        %p313 = pneg %p223
      $region50: #{vision_transformer_med_forward.1} parent=31 // pred_check_branch
        %315 = sbr.rel (%p313) target = $region52
      $region51: #{vision_transformer_med_forward.1} parent=31 // pred_region
        %p316 = scmp.lt.s32.totalorder %s15, 1
        %s317 = scalar_select %p316, %s15, 1
        %s318 = smul.addr %s317, 16
        %s319 = smul.addr %s318, 8
        %s320 = scalar_lea.vmem %s8, %s319
      $region52: #{vision_transformer_med_forward.1} parent=31 // pred_fallthru
        _
    $region32: #{vision_transformer_med_forward.1} parent=5 // pred_fallthru
      _
    %p321 = scmp.le.s32.totalorder 1, %s15
    %p322 = scmp.lt.s32.totalorder %s15, 3
    %p323 = pnand %p321, %p322
    %p324 = pneg %p323
    // Predicated region
    $region53: #{vision_transformer_med_forward.1} parent=5 // pred_check
      _
    $region54: #{vision_transformer_med_forward.1} parent=5 // pred_check_branch
      %326 = sbr.rel (%p323) target = $region56
    $region55: #{vision_transformer_med_forward.1} parent=5 // pred_region
      %s327 = ssub.s32 %s15, 1
      %p328 = pneg %p36
      %p329 = pneg %p33
      %p330 = pneg %p57
      %p331 = pneg %p54
      %p332 = pneg %p78
      %p333 = pneg %p75
      %p334 = pneg %p99
      %p335 = pneg %p96
      %p336 = scmp.lt.s32.totalorder %s20, 1
      %s337 = scalar_select %p336, %s20, 1
      %s338 = smul.addr %s337, 4
      %s339 = smul.addr %s338, 8
      %s340 = scalar_lea.vmem %s4, %s339
      %p341 = pneg %p125
      %p342 = pneg %p122
      %p343 = scmp.lt.s32.totalorder %s20, 1
      %s344 = scalar_select %p343, %s20, 1
      %s345 = smul.addr %s344, 12
      %s346 = smul.addr %s345, 8
      %s347 = scalar_lea.vmem %s5, %s346
      %p348 = pneg %p151
      %p349 = pneg %p148
      %p350 = scmp.lt.s32.totalorder %s20, 1
      %s351 = scalar_select %p350, %s20, 1
      %s352 = smul.addr %s351, 4
      %s353 = smul.addr %s352, 8
      %s354 = scalar_lea.vmem %s6, %s353
      %p355 = pneg %p177
      %p356 = pneg %p174
      %p357 = scmp.lt.s32.totalorder %s20, 1
      %s358 = scalar_select %p357, %s20, 1
      %s359 = smul.addr %s358, 16
      %s360 = smul.addr %s359, 8
      %s361 = scalar_lea.vmem %s7, %s360
      %p362 = pneg %p203
      %p363 = pneg %p200
      %p364 = scmp.lt.s32.totalorder %s20, 1
      %s365 = scalar_select %p364, %s20, 1
      %s366 = smul.addr %s365, 16
      %s367 = smul.addr %s366, 8
      %s368 = scalar_lea.vmem %s8, %s367
      %p369 = pneg %p229
      %p370 = pneg %p226
      %p371 = pneg %p250
      %p372 = pneg %p247
      %p373 = scmp.lt.s32.totalorder %s20, 1
      %s374 = scalar_select %p373, %s20, 1
      %s375 = smul.addr %s374, 4
      %s376 = smul.addr %s375, 8
      %s377 = scalar_lea.vmem %s4, %s376
      %p378 = scmp.lt.s32.totalorder %s20, 1
      %s379 = scalar_select %p378, %s20, 1
      %s380 = smul.addr %s379, 12
      %s381 = smul.addr %s380, 8
      %s382 = scalar_lea.vmem %s5, %s381
      %p383 = scmp.lt.s32.totalorder %s20, 1
      %s384 = scalar_select %p383, %s20, 1
      %s385 = smul.addr %s384, 4
      %s386 = smul.addr %s385, 8
      %s387 = scalar_lea.vmem %s6, %s386
      %p388 = scmp.lt.s32.totalorder %s20, 1
      %s389 = scalar_select %p388, %s20, 1
      %s390 = smul.addr %s389, 16
      %s391 = smul.addr %s390, 8
      %s392 = scalar_lea.vmem %s7, %s391
      %p393 = scmp.lt.s32.totalorder %s20, 1
      %s394 = scalar_select %p393, %s20, 1
      %s395 = smul.addr %s394, 16
      %s396 = smul.addr %s395, 8
      %s397 = scalar_lea.vmem %s8, %s396
      %p399 = scmp.eq.s32.totalorder %s20, 0
      // Predicated region
      $region57: #{vision_transformer_med_forward.1} parent=55 // pred_check
        %p400 = pneg %p399
      $region58: #{vision_transformer_med_forward.1} parent=55 // pred_check_branch
        %402 = sbr.rel (%p400) target = $region60
      $region59: #{vision_transformer_med_forward.1} parent=55 // pred_region
        %v403 = vld [vmem:[%s0] sm:$0xff]
        %v404 = vld [vmem:[%s0 + $0x8] sm:$0xff]
        %v405 = vld [vmem:[%s0 + $0x10] sm:$0xff]
        %v406 = vld [vmem:[%s0 + $0x18] sm:$0xff]
        %v407 = vld [vmem:[%s0 + $0x20] sm:$0xff]
        %v408 = vld [vmem:[%s0 + $0x28] sm:$0xff]
        %v409 = vld [vmem:[%s0 + $0x30] sm:$0xff]
        %v410 = vld [vmem:[%s0 + $0x38] sm:$0xff]
        %v411 = vld [vmem:[%s0 + $0x40] sm:$0xff]
        %v412 = vld [vmem:[%s0 + $0x48] sm:$0xff]
        %v413 = vld [vmem:[%s0 + $0x50] sm:$0xff]
        %v414 = vld [vmem:[%s0 + $0x58] sm:$0xff]
        %v415 = vld [vmem:[%s0 + $0x60] sm:$0xff]
        %v416 = vld [vmem:[%s0 + $0x68] sm:$0xff]
        %v417 = vld [vmem:[%s0 + $0x70] sm:$0xff]
        %v418 = vld [vmem:[%s0 + $0x78] sm:$0xff]
        %v419 = vld [vmem:[%s0 + $0x80] sm:$0xff]
        %v420 = vld [vmem:[%s0 + $0x88] sm:$0xff]
        %v421 = vld [vmem:[%s0 + $0x90] sm:$0xff]
        %v422 = vld [vmem:[%s0 + $0x98] sm:$0xff]
        %v423 = vld [vmem:[%s0 + $0xa0] sm:$0xff]
        %v424 = vld [vmem:[%s0 + $0xa8] sm:$0xff]
        %v425 = vld [vmem:[%s0 + $0xb0] sm:$0xff]
        %v426 = vld [vmem:[%s0 + $0xb8] sm:$0xff]
        %v427 = vpack.c.bf16 %v409, %v403
        %v428 = vpack.c.bf16 %v410, %v404
        %v429 = vpack.c.bf16 %v411, %v405
        %v430 = vpack.c.bf16 %v412, %v406
        %v431 = vpack.c.bf16 %v413, %v407
        %v432 = vpack.c.bf16 %v414, %v408
        %v433 = vpack.c.bf16 %v421, %v415
        %v434 = vpack.c.bf16 %v422, %v416
        %v435 = vpack.c.bf16 %v423, %v417
        %v436 = vpack.c.bf16 %v424, %v418
        %v437 = vpack.c.bf16 %v425, %v419
        %v438 = vpack.c.bf16 %v426, %v420
        %v439 = vld [vmem:[%s1] sm:$0xf]
        %v440 = vld [vmem:[%s1 + $0x4] sm:$0xf]
        %v441 = vld [vmem:[%s1 + $0x8] sm:$0xf]
        %v442 = vld [vmem:[%s1 + $0xc] sm:$0xf]
        %v443 = vld [vmem:[%s1 + $0x10] sm:$0xf]
        %v444 = vld [vmem:[%s1 + $0x14] sm:$0xf]
        %v445 = vld [vmem:[%s1 + $0x18] sm:$0xf]
        %v446 = vld [vmem:[%s1 + $0x1c] sm:$0xf]
        %v447 = vld [vmem:[%s1 + $0x20] sm:$0xf]
        %v448 = vld [vmem:[%s1 + $0x24] sm:$0xf]
        %v449 = vld [vmem:[%s1 + $0x28] sm:$0xf]
        %v450 = vld [vmem:[%s1 + $0x2c] sm:$0xf]
        %v451 = vld [vmem:[%s1 + $0x30] sm:$0xf]
        %v452 = vld [vmem:[%s1 + $0x34] sm:$0xf]
        %v453 = vld [vmem:[%s1 + $0x38] sm:$0xf]
        %v454 = vld [vmem:[%s1 + $0x3c] sm:$0xf]
        %v455 = vld [vmem:[%s1 + $0x40] sm:$0xf]
        %v456 = vld [vmem:[%s1 + $0x44] sm:$0xf]
        %v457 = vld [vmem:[%s1 + $0x48] sm:$0xf]
        %v458 = vld [vmem:[%s1 + $0x4c] sm:$0xf]
        %v459 = vld [vmem:[%s1 + $0x50] sm:$0xf]
        %v460 = vld [vmem:[%s1 + $0x54] sm:$0xf]
        %v461 = vld [vmem:[%s1 + $0x58] sm:$0xf]
        %v462 = vld [vmem:[%s1 + $0x5c] sm:$0xf]
        %v463 = vld [vmem:[%s1 + $0x60] sm:$0xf]
        %v464 = vld [vmem:[%s1 + $0x64] sm:$0xf]
        %v465 = vld [vmem:[%s1 + $0x68] sm:$0xf]
        %v466 = vld [vmem:[%s1 + $0x6c] sm:$0xf]
        %v467 = vld [vmem:[%s1 + $0x70] sm:$0xf]
        %v468 = vld [vmem:[%s1 + $0x74] sm:$0xf]
        %v469 = vld [vmem:[%s1 + $0x78] sm:$0xf]
        %v470 = vld [vmem:[%s1 + $0x7c] sm:$0xf]
        %v471 = vld [vmem:[%s1 + $0x80] sm:$0xf]
        %v472 = vld [vmem:[%s1 + $0x84] sm:$0xf]
        %v473 = vld [vmem:[%s1 + $0x88] sm:$0xf]
        %v474 = vld [vmem:[%s1 + $0x8c] sm:$0xf]
        %v475 = vld [vmem:[%s1 + $0x90] sm:$0xf]
        %v476 = vld [vmem:[%s1 + $0x94] sm:$0xf]
        %v477 = vld [vmem:[%s1 + $0x98] sm:$0xf]
        %v478 = vld [vmem:[%s1 + $0x9c] sm:$0xf]
        %v479 = vld [vmem:[%s1 + $0xa0] sm:$0xf]
        %v480 = vld [vmem:[%s1 + $0xa4] sm:$0xf]
        %v481 = vld [vmem:[%s1 + $0xa8] sm:$0xf]
        %v482 = vld [vmem:[%s1 + $0xac] sm:$0xf]
        %v483 = vld [vmem:[%s1 + $0xb0] sm:$0xf]
        %v484 = vld [vmem:[%s1 + $0xb4] sm:$0xf]
        %v485 = vld [vmem:[%s1 + $0xb8] sm:$0xf]
        %v486 = vld [vmem:[%s1 + $0xbc] sm:$0xf]
        %v487 = vld [vmem:[%s1 + $0xc0] sm:$0xf]
        %v488 = vld [vmem:[%s1 + $0xc4] sm:$0xf]
        %v489 = vld [vmem:[%s1 + $0xc8] sm:$0xf]
        %v490 = vld [vmem:[%s1 + $0xcc] sm:$0xf]
        %v491 = vld [vmem:[%s1 + $0xd0] sm:$0xf]
        %v492 = vld [vmem:[%s1 + $0xd4] sm:$0xf]
        %v493 = vld [vmem:[%s1 + $0xd8] sm:$0xf]
        %v494 = vld [vmem:[%s1 + $0xdc] sm:$0xf]
        %v495 = vld [vmem:[%s1 + $0xe0] sm:$0xf]
        %v496 = vld [vmem:[%s1 + $0xe4] sm:$0xf]
        %v497 = vld [vmem:[%s1 + $0xe8] sm:$0xf]
        %v498 = vld [vmem:[%s1 + $0xec] sm:$0xf]
        %v499 = vld [vmem:[%s1 + $0xf0] sm:$0xf]
        %v500 = vld [vmem:[%s1 + $0xf4] sm:$0xf]
        %v501 = vld [vmem:[%s1 + $0xf8] sm:$0xf]
        %v502 = vld [vmem:[%s1 + $0xfc] sm:$0xf]
        %v503 = vld [vmem:[%s1 + $0x100] sm:$0xf]
        %v504 = vld [vmem:[%s1 + $0x104] sm:$0xf]
        %v505 = vld [vmem:[%s1 + $0x108] sm:$0xf]
        %v506 = vld [vmem:[%s1 + $0x10c] sm:$0xf]
        %v507 = vld [vmem:[%s1 + $0x110] sm:$0xf]
        %v508 = vld [vmem:[%s1 + $0x114] sm:$0xf]
        %v509 = vld [vmem:[%s1 + $0x118] sm:$0xf]
        %v510 = vld [vmem:[%s1 + $0x11c] sm:$0xf]
        %v511 = vld [vmem:[%s1 + $0x120] sm:$0xf]
        %v512 = vld [vmem:[%s1 + $0x124] sm:$0xf]
        %v513 = vld [vmem:[%s1 + $0x128] sm:$0xf]
        %v514 = vld [vmem:[%s1 + $0x12c] sm:$0xf]
        %v515 = vld [vmem:[%s1 + $0x130] sm:$0xf]
        %v516 = vld [vmem:[%s1 + $0x134] sm:$0xf]
        %v517 = vld [vmem:[%s1 + $0x138] sm:$0xf]
        %v518 = vld [vmem:[%s1 + $0x13c] sm:$0xf]
        %v519 = vld [vmem:[%s1 + $0x140] sm:$0xf]
        %v520 = vld [vmem:[%s1 + $0x144] sm:$0xf]
        %v521 = vld [vmem:[%s1 + $0x148] sm:$0xf]
        %v522 = vld [vmem:[%s1 + $0x14c] sm:$0xf]
        %v523 = vld [vmem:[%s1 + $0x150] sm:$0xf]
        %v524 = vld [vmem:[%s1 + $0x154] sm:$0xf]
        %v525 = vld [vmem:[%s1 + $0x158] sm:$0xf]
        %v526 = vld [vmem:[%s1 + $0x15c] sm:$0xf]
        %v527 = vld [vmem:[%s1 + $0x160] sm:$0xf]
        %v528 = vld [vmem:[%s1 + $0x164] sm:$0xf]
        %v529 = vld [vmem:[%s1 + $0x168] sm:$0xf]
        %v530 = vld [vmem:[%s1 + $0x16c] sm:$0xf]
        %v531 = vld [vmem:[%s1 + $0x170] sm:$0xf]
        %v532 = vld [vmem:[%s1 + $0x174] sm:$0xf]
        %v533 = vld [vmem:[%s1 + $0x178] sm:$0xf]
        %v534 = vld [vmem:[%s1 + $0x17c] sm:$0xf]
        %v631 = vunpack.c.l.b16 %v439
        %v632 = vunpack.c.l.b16 %v440
        %v633 = vunpack.c.l.b16 %v441
        %v634 = vunpack.c.l.b16 %v442
        %v635 = vunpack.c.l.b16 %v443
        %v636 = vunpack.c.l.b16 %v444
        %v637 = vunpack.c.l.b16 %v445
        %v638 = vunpack.c.l.b16 %v446
        %v639 = vunpack.c.l.b16 %v447
        %v640 = vunpack.c.l.b16 %v448
        %v641 = vunpack.c.l.b16 %v449
        %v642 = vunpack.c.l.b16 %v450
        %v643 = vunpack.c.l.b16 %v451
        %v644 = vunpack.c.l.b16 %v452
        %v645 = vunpack.c.l.b16 %v453
        %v646 = vunpack.c.l.b16 %v454
        %v647 = vunpack.c.l.b16 %v455
        %v648 = vunpack.c.l.b16 %v456
        %v649 = vunpack.c.l.b16 %v457
        %v650 = vunpack.c.l.b16 %v458
        %v651 = vunpack.c.l.b16 %v459
        %v652 = vunpack.c.l.b16 %v460
        %v653 = vunpack.c.l.b16 %v461
        %v654 = vunpack.c.l.b16 %v462
        %v655 = vunpack.c.l.b16 %v463
        %v656 = vunpack.c.l.b16 %v464
        %v657 = vunpack.c.l.b16 %v465
        %v658 = vunpack.c.l.b16 %v466
        %v659 = vunpack.c.l.b16 %v467
        %v660 = vunpack.c.l.b16 %v468
        %v661 = vunpack.c.l.b16 %v469
        %v662 = vunpack.c.l.b16 %v470
        %v663 = vunpack.c.l.b16 %v471
        %v664 = vunpack.c.l.b16 %v472
        %v665 = vunpack.c.l.b16 %v473
        %v666 = vunpack.c.l.b16 %v474
        %v667 = vunpack.c.l.b16 %v475
        %v668 = vunpack.c.l.b16 %v476
        %v669 = vunpack.c.l.b16 %v477
        %v670 = vunpack.c.l.b16 %v478
        %v671 = vunpack.c.l.b16 %v479
        %v672 = vunpack.c.l.b16 %v480
        %v673 = vunpack.c.l.b16 %v481
        %v674 = vunpack.c.l.b16 %v482
        %v675 = vunpack.c.l.b16 %v483
        %v676 = vunpack.c.l.b16 %v484
        %v677 = vunpack.c.l.b16 %v485
        %v678 = vunpack.c.l.b16 %v486
        %v679 = vunpack.c.l.b16 %v487
        %v680 = vunpack.c.l.b16 %v488
        %v681 = vunpack.c.l.b16 %v489
        %v682 = vunpack.c.l.b16 %v490
        %v683 = vunpack.c.l.b16 %v491
        %v684 = vunpack.c.l.b16 %v492
        %v685 = vunpack.c.l.b16 %v493
        %v686 = vunpack.c.l.b16 %v494
        %v687 = vunpack.c.l.b16 %v495
        %v688 = vunpack.c.l.b16 %v496
        %v689 = vunpack.c.l.b16 %v497
        %v690 = vunpack.c.l.b16 %v498
        %v691 = vunpack.c.l.b16 %v499
        %v692 = vunpack.c.l.b16 %v500
        %v693 = vunpack.c.l.b16 %v501
        %v694 = vunpack.c.l.b16 %v502
        %v695 = vunpack.c.l.b16 %v503
        %v696 = vunpack.c.l.b16 %v504
        %v697 = vunpack.c.l.b16 %v505
        %v698 = vunpack.c.l.b16 %v506
        %v699 = vunpack.c.l.b16 %v507
        %v700 = vunpack.c.l.b16 %v508
        %v701 = vunpack.c.l.b16 %v509
        %v702 = vunpack.c.l.b16 %v510
        %v703 = vunpack.c.l.b16 %v511
        %v704 = vunpack.c.l.b16 %v512
        %v705 = vunpack.c.l.b16 %v513
        %v706 = vunpack.c.l.b16 %v514
        %v707 = vunpack.c.l.b16 %v515
        %v708 = vunpack.c.l.b16 %v516
        %v709 = vunpack.c.l.b16 %v517
        %v710 = vunpack.c.l.b16 %v518
        %v711 = vunpack.c.l.b16 %v519
        %v712 = vunpack.c.l.b16 %v520
        %v713 = vunpack.c.l.b16 %v521
        %v714 = vunpack.c.l.b16 %v522
        %v715 = vunpack.c.l.b16 %v523
        %v716 = vunpack.c.l.b16 %v524
        %v717 = vunpack.c.l.b16 %v525
        %v718 = vunpack.c.l.b16 %v526
        %v719 = vunpack.c.l.b16 %v527
        %v720 = vunpack.c.l.b16 %v528
        %v721 = vunpack.c.l.b16 %v529
        %v722 = vunpack.c.l.b16 %v530
        %v723 = vunpack.c.l.b16 %v531
        %v724 = vunpack.c.l.b16 %v532
        %v725 = vunpack.c.l.b16 %v533
        %v726 = vunpack.c.l.b16 %v534
        %v727 = vpack.c.b16 %v632, %v631
        %v728 = vpack.c.b16 %v634, %v633
        %v729 = vpack.c.b16 %v636, %v635
        %v730 = vpack.c.b16 %v638, %v637
        %v731 = vpack.c.b16 %v640, %v639
        %v732 = vpack.c.b16 %v642, %v641
        %v733 = vpack.c.b16 %v644, %v643
        %v734 = vpack.c.b16 %v646, %v645
        %v735 = vpack.c.b16 %v648, %v647
        %v736 = vpack.c.b16 %v650, %v649
        %v737 = vpack.c.b16 %v652, %v651
        %v738 = vpack.c.b16 %v654, %v653
        %v739 = vpack.c.b16 %v656, %v655
        %v740 = vpack.c.b16 %v658, %v657
        %v741 = vpack.c.b16 %v660, %v659
        %v742 = vpack.c.b16 %v662, %v661
        %v743 = vpack.c.b16 %v664, %v663
        %v744 = vpack.c.b16 %v666, %v665
        %v745 = vpack.c.b16 %v668, %v667
        %v746 = vpack.c.b16 %v670, %v669
        %v747 = vpack.c.b16 %v672, %v671
        %v748 = vpack.c.b16 %v674, %v673
        %v749 = vpack.c.b16 %v676, %v675
        %v750 = vpack.c.b16 %v678, %v677
        %v751 = vpack.c.b16 %v680, %v679
        %v752 = vpack.c.b16 %v682, %v681
        %v753 = vpack.c.b16 %v684, %v683
        %v754 = vpack.c.b16 %v686, %v685
        %v755 = vpack.c.b16 %v688, %v687
        %v756 = vpack.c.b16 %v690, %v689
        %v757 = vpack.c.b16 %v692, %v691
        %v758 = vpack.c.b16 %v694, %v693
        %v759 = vpack.c.b16 %v696, %v695
        %v760 = vpack.c.b16 %v698, %v697
        %v761 = vpack.c.b16 %v700, %v699
        %v762 = vpack.c.b16 %v702, %v701
        %v763 = vpack.c.b16 %v704, %v703
        %v764 = vpack.c.b16 %v706, %v705
        %v765 = vpack.c.b16 %v708, %v707
        %v766 = vpack.c.b16 %v710, %v709
        %v767 = vpack.c.b16 %v712, %v711
        %v768 = vpack.c.b16 %v714, %v713
        %v769 = vpack.c.b16 %v716, %v715
        %v770 = vpack.c.b16 %v718, %v717
        %v771 = vpack.c.b16 %v720, %v719
        %v772 = vpack.c.b16 %v722, %v721
        %v773 = vpack.c.b16 %v724, %v723
        %v774 = vpack.c.b16 %v726, %v725
        %823 = vmatprep.subr.bf16.mxu0 0
        %824 = vmatpush1.bf16.msra.mxu0 %v727
        %825 = vmatprep.subr.bf16.mxu0 0
        %826 = vmatpush1.bf16.msra.mxu0 %v728
        %827 = vmatprep.subr.bf16.mxu0 0
        %828 = vmatpush1.bf16.msra.mxu0 %v729
        %829 = vmatprep.subr.bf16.mxu0 0
        %830 = vmatpush1.bf16.msra.mxu0 %v730
        %831 = vmatprep.subr.bf16.mxu0 0
        %832 = vmatpush1.bf16.msra.mxu0 %v731
        %833 = vmatprep.subr.bf16.mxu0 0
        %834 = vmatpush1.bf16.msra.mxu0 %v732
        %835 = vmatprep.subr.bf16.mxu0 0
        %836 = vmatpush1.bf16.msra.mxu0 %v733
        %837 = vmatprep.subr.bf16.mxu0 0
        %838 = vmatpush1.bf16.msra.mxu0 %v734
        %839 = vmatprep.subr.bf16.mxu0 0
        %840 = vmatpush1.bf16.msra.mxu0 %v735
        %841 = vmatprep.subr.bf16.mxu0 0
        %842 = vmatpush1.bf16.msra.mxu0 %v736
        %843 = vmatprep.subr.bf16.mxu0 0
        %844 = vmatpush1.bf16.msra.mxu0 %v737
        %845 = vmatprep.subr.bf16.mxu0 0
        %846 = vmatpush1.bf16.msra.mxu0 %v738
        %847 = vmatprep.subr.bf16.mxu0 0
        %848 = vmatpush1.bf16.msra.mxu0 %v739
        %849 = vmatprep.subr.bf16.mxu0 0
        %850 = vmatpush1.bf16.msra.mxu0 %v740
        %851 = vmatprep.subr.bf16.mxu0 0
        %852 = vmatpush1.bf16.msra.mxu0 %v741
        %853 = vmatprep.subr.bf16.mxu0 0
        %854 = vmatpush1.bf16.msra.mxu0 %v742
        %855 = vmatprep.mubr.bf16.mxu0 %v428
        %856 = vmatmul.mubr.bf16.gmra.mrb[0].mxu0 %v427
        %v857 = vpop.f32.mrb[0].mxu0
        %v858 = vadd.f32 0.0, %v857
        %v859 = vpop.f32.mrb[0].mxu0
        %v860 = vpop.f32.mrb[0].mxu0
        %v861 = vadd.f32 0.0, %v860
        %v862 = vpop.f32.mrb[0].mxu0
        %863 = vmatprep.mubr.bf16.mxu0 %v434
        %864 = vmatmul.mubr.bf16.gmra.mrb[0].mxu0 %v433
        %v865 = vpop.f32.mrb[0].mxu0
        %v866 = vadd.f32 0.0, %v865
        %v867 = vpop.f32.mrb[0].mxu0
        %v868 = vpop.f32.mrb[0].mxu0
        %v869 = vadd.f32 0.0, %v868
        %v870 = vpop.f32.mrb[0].mxu0
        %871 = vdwg.mxu0
        %872 = vmatprep.subr.bf16.mxu0 0
        %873 = vmatpush1.bf16.msra.mxu0 %v743
        %874 = vmatprep.subr.bf16.mxu0 0
        %875 = vmatpush1.bf16.msra.mxu0 %v744
        %876 = vmatprep.subr.bf16.mxu0 0
        %877 = vmatpush1.bf16.msra.mxu0 %v745
        %878 = vmatprep.subr.bf16.mxu0 0
        %879 = vmatpush1.bf16.msra.mxu0 %v746
        %880 = vmatprep.subr.bf16.mxu0 0
        %881 = vmatpush1.bf16.msra.mxu0 %v747
        %882 = vmatprep.subr.bf16.mxu0 0
        %883 = vmatpush1.bf16.msra.mxu0 %v748
        %884 = vmatprep.subr.bf16.mxu0 0
        %885 = vmatpush1.bf16.msra.mxu0 %v749
        %886 = vmatprep.subr.bf16.mxu0 0
        %887 = vmatpush1.bf16.msra.mxu0 %v750
        %888 = vmatprep.subr.bf16.mxu0 0
        %889 = vmatpush1.bf16.msra.mxu0 %v751
        %890 = vmatprep.subr.bf16.mxu0 0
        %891 = vmatpush1.bf16.msra.mxu0 %v752
        %892 = vmatprep.subr.bf16.mxu0 0
        %893 = vmatpush1.bf16.msra.mxu0 %v753
        %894 = vmatprep.subr.bf16.mxu0 0
        %895 = vmatpush1.bf16.msra.mxu0 %v754
        %896 = vmatprep.subr.bf16.mxu0 0
        %897 = vmatpush1.bf16.msra.mxu0 %v755
        %898 = vmatprep.subr.bf16.mxu0 0
        %899 = vmatpush1.bf16.msra.mxu0 %v756
        %900 = vmatprep.subr.bf16.mxu0 0
        %901 = vmatpush1.bf16.msra.mxu0 %v757
        %902 = vmatprep.subr.bf16.mxu0 0
        %903 = vmatpush1.bf16.msra.mxu0 %v758
        %904 = vmatprep.mubr.bf16.mxu0 %v430
        %905 = vmatmul.mubr.bf16.gmra.mrb[0].mxu0 %v429
        %v906 = vpop.f32.mrb[0].mxu0
        %v907 = vadd.f32 %v858, %v906
        %v908 = vpop.f32.mrb[0].mxu0
        %v909 = vpop.f32.mrb[0].mxu0
        %v910 = vadd.f32 %v861, %v909
        %v911 = vpop.f32.mrb[0].mxu0
        %912 = vmatprep.mubr.bf16.mxu0 %v436
        %913 = vmatmul.mubr.bf16.gmra.mrb[0].mxu0 %v435
        %v914 = vpop.f32.mrb[0].mxu0
        %v915 = vadd.f32 %v866, %v914
        %v916 = vpop.f32.mrb[0].mxu0
        %v917 = vpop.f32.mrb[0].mxu0
        %v918 = vadd.f32 %v869, %v917
        %v919 = vpop.f32.mrb[0].mxu0
        %920 = vdwg.mxu0
        %921 = vmatprep.subr.bf16.mxu0 0
        %922 = vmatpush1.bf16.msra.mxu0 %v759
        %923 = vmatprep.subr.bf16.mxu0 0
        %924 = vmatpush1.bf16.msra.mxu0 %v760
        %925 = vmatprep.subr.bf16.mxu0 0
        %926 = vmatpush1.bf16.msra.mxu0 %v761
        %927 = vmatprep.subr.bf16.mxu0 0
        %928 = vmatpush1.bf16.msra.mxu0 %v762
        %929 = vmatprep.subr.bf16.mxu0 0
        %930 = vmatpush1.bf16.msra.mxu0 %v763
        %931 = vmatprep.subr.bf16.mxu0 0
        %932 = vmatpush1.bf16.msra.mxu0 %v764
        %933 = vmatprep.subr.bf16.mxu0 0
        %934 = vmatpush1.bf16.msra.mxu0 %v765
        %935 = vmatprep.subr.bf16.mxu0 0
        %936 = vmatpush1.bf16.msra.mxu0 %v766
        %937 = vmatprep.subr.bf16.mxu0 0
        %938 = vmatpush1.bf16.msra.mxu0 %v767
        %939 = vmatprep.subr.bf16.mxu0 0
        %940 = vmatpush1.bf16.msra.mxu0 %v768
        %941 = vmatprep.subr.bf16.mxu0 0
        %942 = vmatpush1.bf16.msra.mxu0 %v769
        %943 = vmatprep.subr.bf16.mxu0 0
        %944 = vmatpush1.bf16.msra.mxu0 %v770
        %945 = vmatprep.subr.bf16.mxu0 0
        %946 = vmatpush1.bf16.msra.mxu0 %v771
        %947 = vmatprep.subr.bf16.mxu0 0
        %948 = vmatpush1.bf16.msra.mxu0 %v772
        %949 = vmatprep.subr.bf16.mxu0 0
        %950 = vmatpush1.bf16.msra.mxu0 %v773
        %951 = vmatprep.subr.bf16.mxu0 0
        %952 = vmatpush1.bf16.msra.mxu0 %v774
        %953 = vmatprep.mubr.bf16.mxu0 %v432
        %954 = vmatmul.mubr.bf16.gmra.mrb[0].mxu0 %v431
        %v955 = vpop.f32.mrb[0].mxu0
        %v956 = vadd.f32 %v907, %v955
        %v957 = vpop.f32.mrb[0].mxu0
        %v958 = vpop.f32.mrb[0].mxu0
        %v959 = vadd.f32 %v910, %v958
        %v960 = vpop.f32.mrb[0].mxu0
        %961 = vmatprep.mubr.bf16.mxu0 %v438
        %962 = vmatmul.mubr.bf16.gmra.mrb[0].mxu0 %v437
        %v963 = vpop.f32.mrb[0].mxu0
        %v964 = vadd.f32 %v915, %v963
        %v965 = vpop.f32.mrb[0].mxu0
        %v966 = vpop.f32.mrb[0].mxu0
        %v967 = vadd.f32 %v918, %v966
        %v968 = vpop.f32.mrb[0].mxu0
        %969 = vdwg.mxu0
        %v970 = vld [vmem:[%s2] sm:$0xff]
        %v971 = vld [vmem:[%s2 + $0x8] sm:$0xff]
        %v972 = vadd.f32 %v956, %v970
        %v973 = vadd.f32 %v959, %v971
        %v974 = vadd.f32 %v964, %v970
        %v975 = vadd.f32 %v967, %v971
        %v976 = vld [vmem:[%s2 + $0x10] sm:$0x1]
        %v977 = vld [vmem:[%s2 + $0x11] sm:$0x1]
        %978 = vadd.xlane.f32.xlu0 %v972
        %v979 = vpop.xlane.xlu0 %978
        %980 = vadd.xlane.f32.xlu0 %v973
        %v981 = vpop.xlane.xlu0 %980
        %982 = vadd.xlane.f32.xlu0 %v974
        %v983 = vpop.xlane.xlu0 %982
        %984 = vadd.xlane.f32.xlu0 %v975
        %v985 = vpop.xlane.xlu0 %984
        %v986 = vrcp.pop 128.0
        %v987 = vmul.f32 %v979, %v986
        %v988 = vmul.f32 %v981, %v986
        %v989 = vmul.f32 %v983, %v986
        %v990 = vmul.f32 %v985, %v986
        %v991 = vsub.f32 %v972, %v987
        %v992 = vsub.f32 %v973, %v988
        %v993 = vsub.f32 %v974, %v989
        %v994 = vsub.f32 %v975, %v990
        %v995 = vmul.f32 %v991, %v991
        %v996 = vmul.f32 %v992, %v992
        %v997 = vmul.f32 %v993, %v993
        %v998 = vmul.f32 %v994, %v994
        %999 = vadd.xlane.f32.xlu0 %v995
        %v1000 = vpop.xlane.xlu0 %999
        %1001 = vadd.xlane.f32.xlu0 %v996
        %v1002 = vpop.xlane.xlu0 %1001
        %1003 = vadd.xlane.f32.xlu0 %v997
        %v1004 = vpop.xlane.xlu0 %1003
        %1005 = vadd.xlane.f32.xlu0 %v998
        %v1006 = vpop.xlane.xlu0 %1005
        %v1007 = vmul.f32 %v1000, %v986
        %v1008 = vmul.f32 %v1002, %v986
        %v1009 = vmul.f32 %v1004, %v986
        %v1010 = vmul.f32 %v1006, %v986
        %v1011 = vadd.f32 %v1007, 1e-05
        %v1012 = vadd.f32 %v1008, 1e-05
        %v1013 = vadd.f32 %v1009, 1e-05
        %v1014 = vadd.f32 %v1010, 1e-05
        %v1015 = vrsqrt.pop %v1011
        %v1016 = vrsqrt.pop %v1012
        %v1017 = vrsqrt.pop %v1013
        %v1018 = vrsqrt.pop %v1014
        %v1019 = vmul.f32 %v991, %v1015
        %v1020 = vmul.f32 %v992, %v1016
        %v1021 = vmul.f32 %v993, %v1017
        %v1022 = vmul.f32 %v994, %v1018
        %v1023 = vlaneseq
        %v1024 = vshrl.u32 %v1023, 7
        %v1025 = vsub.s32 0, %v1024
        %v1026 = vrot.slane %v976, %v1025
        %v1027 = vmul.f32 %v1019, %v1026
        %v1028 = vmul.f32 %v1020, %v1026
        %v1029 = vmul.f32 %v1021, %v1026
        %v1030 = vmul.f32 %v1022, %v1026
        %v1031 = vlaneseq
        %v1032 = vshrl.u32 %v1031, 7
        %v1033 = vsub.s32 0, %v1032
        %v1034 = vrot.slane %v977, %v1033
        %v1035 = vadd.f32 %v1027, %v1034
        %v1036 = vadd.f32 %v1028, %v1034
        %v1037 = vadd.f32 %v1029, %v1034
        %v1038 = vadd.f32 %v1030, %v1034
        %1039 = vst [vmem:[#allocation2] sm:$0xff] %v1035
        %1040 = vst [vmem:[#allocation2 + $0x8] sm:$0xff] %v1036
        %1041 = vst [vmem:[#allocation2 + $0x10] sm:$0xff] %v1037
        %1042 = vst [vmem:[#allocation2 + $0x18] sm:$0xff] %v1038
      $region60: #{vision_transformer_med_forward.1} parent=55 // pred_fallthru
        _
      %v1043 = vld [vmem:[%s377] sm:$0x3f]
      %v1044 = vld [vmem:[%s377 + $0x8] sm:$0x3f]
      %v1045 = vld [vmem:[%s377 + $0x10] sm:$0x3f]
      %v1046 = vld [vmem:[%s377 + $0x18] sm:$0x3f]
      %v1047 = vld [vmem:[#allocation2] sm:$0xff]
      %v1048 = vld [vmem:[#allocation2 + $0x8] sm:$0xff]
      %v1049 = vld [vmem:[#allocation2 + $0x10] sm:$0xff]
      %v1050 = vld [vmem:[#allocation2 + $0x18] sm:$0xff]
      %1051 = vadd.xlane.f32.xlu0 %v1047
      %v1052 = vpop.xlane.xlu0 %1051
      %1053 = vadd.xlane.f32.xlu0 %v1048
      %v1054 = vpop.xlane.xlu0 %1053
      %1055 = vadd.xlane.f32.xlu0 %v1049
      %v1056 = vpop.xlane.xlu0 %1055
      %1057 = vadd.xlane.f32.xlu0 %v1050
      %v1058 = vpop.xlane.xlu0 %1057
      %v1059 = vrcp.pop 128.0
      %v1060 = vmul.f32 %v1052, %v1059
      %v1061 = vmul.f32 %v1054, %v1059
      %v1062 = vmul.f32 %v1056, %v1059
      %v1063 = vmul.f32 %v1058, %v1059
      %v1064 = vsub.f32 %v1047, %v1060
      %v1065 = vsub.f32 %v1048, %v1061
      %v1066 = vsub.f32 %v1049, %v1062
      %v1067 = vsub.f32 %v1050, %v1063
      %v1068 = vmul.f32 %v1064, %v1064
      %v1069 = vmul.f32 %v1065, %v1065
      %v1070 = vmul.f32 %v1066, %v1066
      %v1071 = vmul.f32 %v1067, %v1067
      %1072 = vadd.xlane.f32.xlu0 %v1068
      %v1073 = vpop.xlane.xlu0 %1072
      %1074 = vadd.xlane.f32.xlu0 %v1069
      %v1075 = vpop.xlane.xlu0 %1074
      %1076 = vadd.xlane.f32.xlu0 %v1070
      %v1077 = vpop.xlane.xlu0 %1076
      %1078 = vadd.xlane.f32.xlu0 %v1071
      %v1079 = vpop.xlane.xlu0 %1078
      %v1080 = vmul.f32 %v1073, %v1059
      %v1081 = vmul.f32 %v1075, %v1059
      %v1082 = vmul.f32 %v1077, %v1059
      %v1083 = vmul.f32 %v1079, %v1059
      %v1084 = vadd.f32 %v1080, 1e-05
      %v1085 = vadd.f32 %v1081, 1e-05
      %v1086 = vadd.f32 %v1082, 1e-05
      %v1087 = vadd.f32 %v1083, 1e-05
      %v1088 = vrsqrt.pop %v1084
      %v1089 = vrsqrt.pop %v1085
      %v1090 = vrsqrt.pop %v1086
      %v1091 = vrsqrt.pop %v1087
      %v1092 = vmul.f32 %v1064, %v1088
      %v1093 = vmul.f32 %v1065, %v1089
      %v1094 = vmul.f32 %v1066, %v1090
      %v1095 = vmul.f32 %v1067, %v1091
      %v1096 = vlaneseq
      %v1097 = vshrl.u32 %v1096, 7
      %v1098 = vsub.s32 0, %v1097
      %v1099 = vrot.slane %v1043, %v1098
      %v1100 = vmul.f32 %v1092, %v1099
      %v1101 = vmul.f32 %v1093, %v1099
      %v1102 = vmul.f32 %v1094, %v1099
      %v1103 = vmul.f32 %v1095, %v1099
      %v1104 = vlaneseq
      %v1105 = vshrl.u32 %v1104, 7
      %v1106 = vsub.s32 0, %v1105
      %v1107 = vrot.slane %v1044, %v1106
      %v1108 = vadd.f32 %v1100, %v1107
      %v1109 = vadd.f32 %v1101, %v1107
      %v1110 = vadd.f32 %v1102, %v1107
      %v1111 = vadd.f32 %v1103, %v1107
      %v1112 = vpack.c.bf16 %v1109, %v1108
      %v1113 = vpack.c.bf16 %v1111, %v1110
      %v1114 = vld [vmem:[%s382] sm:$0xff]
      %v1115 = vld [vmem:[%s382 + $0x8] sm:$0xff]
      %v1116 = vld [vmem:[%s382 + $0x10] sm:$0xff]
      %v1117 = vld [vmem:[%s382 + $0x18] sm:$0xff]
      %v1118 = vld [vmem:[%s382 + $0x20] sm:$0xff]
      %v1119 = vld [vmem:[%s382 + $0x28] sm:$0xff]
      %v1120 = vld [vmem:[%s382 + $0x30] sm:$0xff]
      %v1121 = vld [vmem:[%s382 + $0x38] sm:$0xff]
      %v1122 = vld [vmem:[%s382 + $0x40] sm:$0xff]
      %v1123 = vld [vmem:[%s382 + $0x48] sm:$0xff]
      %v1124 = vld [vmem:[%s382 + $0x50] sm:$0xff]
      %v1125 = vld [vmem:[%s382 + $0x58] sm:$0xff]
      %v1126 = vunpack.c.l.s8.bf16 %v1114
      %v1127 = vunpack.c.l.s8.bf16 %v1115
      %v1128 = vunpack.c.l.s8.bf16 %v1116
      %v1129 = vunpack.c.h.s8.bf16 %v1114
      %v1130 = vunpack.c.h.s8.bf16 %v1115
      %v1131 = vunpack.c.h.s8.bf16 %v1116
      %v1132 = vunpack.c.l.s8.bf16 %v1117
      %v1133 = vunpack.c.l.s8.bf16 %v1118
      %v1134 = vunpack.c.l.s8.bf16 %v1119
      %v1135 = vunpack.c.h.s8.bf16 %v1117
      %v1136 = vunpack.c.h.s8.bf16 %v1118
      %v1137 = vunpack.c.h.s8.bf16 %v1119
      %v1138 = vunpack.c.l.s8.bf16 %v1120
      %v1139 = vunpack.c.l.s8.bf16 %v1121
      %v1140 = vunpack.c.l.s8.bf16 %v1122
      %v1141 = vunpack.c.h.s8.bf16 %v1120
      %v1142 = vunpack.c.h.s8.bf16 %v1121
      %v1143 = vunpack.c.h.s8.bf16 %v1122
      %v1144 = vunpack.c.l.s8.bf16 %v1123
      %v1145 = vunpack.c.l.s8.bf16 %v1124
      %v1146 = vunpack.c.l.s8.bf16 %v1125
      %v1147 = vunpack.c.h.s8.bf16 %v1123
      %v1148 = vunpack.c.h.s8.bf16 %v1124
      %v1149 = vunpack.c.h.s8.bf16 %v1125
      %1150 = vmatprep.subr.bf16.mxu0 %v1127
      %1151 = vmatpush1.bf16.msra.mxu0 %v1126
      %1152 = vmatprep.subr.bf16.mxu0 %v1130
      %1153 = vmatpush1.bf16.msra.mxu0 %v1129
      %1154 = vmatprep.subr.bf16.mxu0 %v1133
      %1155 = vmatpush1.bf16.msra.mxu0 %v1132
      %1156 = vmatprep.subr.bf16.mxu0 %v1136
      %1157 = vmatpush1.bf16.msra.mxu0 %v1135
      %1158 = vmatprep.subr.bf16.mxu0 %v1139
      %1159 = vmatpush1.bf16.msra.mxu0 %v1138
      %1160 = vmatprep.subr.bf16.mxu0 %v1142
      %1161 = vmatpush1.bf16.msra.mxu0 %v1141
      %1162 = vmatprep.subr.bf16.mxu0 %v1145
      %1163 = vmatpush1.bf16.msra.mxu0 %v1144
      %1164 = vmatprep.subr.bf16.mxu0 %v1148
      %1165 = vmatpush1.bf16.msra.mxu0 %v1147
      %1166 = vmatprep.subr.bf16.mxu0 0
      %1167 = vmatpush1.bf16.msra.mxu0 0
      %1168 = vmatprep.subr.bf16.mxu0 0
      %1169 = vmatpush1.bf16.msra.mxu0 0
      %1170 = vmatprep.subr.bf16.mxu0 0
      %1171 = vmatpush1.bf16.msra.mxu0 0
      %1172 = vmatprep.subr.bf16.mxu0 0
      %1173 = vmatpush1.bf16.msra.mxu0 0
      %1174 = vmatprep.subr.bf16.mxu0 0
      %1175 = vmatpush1.bf16.msra.mxu0 0
      %1176 = vmatprep.subr.bf16.mxu0 0
      %1177 = vmatpush1.bf16.msra.mxu0 0
      %1178 = vmatprep.subr.bf16.mxu0 0
      %1179 = vmatpush1.bf16.msra.mxu0 0
      %1180 = vmatprep.subr.bf16.mxu0 0
      %1181 = vmatpush1.bf16.msra.mxu0 0
      %1182 = vmatprep.mubr.bf16.mxu0 0
      %1183 = vmatmul.mubr.bf16.gmra.mrb[0].mxu0 %v1112
      %v1184 = vpop.f32.mrb[0].mxu0
      %v1185 = vadd.f32 0.0, %v1184
      %v1186 = vpop.f32.mrb[0].mxu0
      %v1187 = vadd.f32 0.0, %v1186
      %v1188 = vpop.f32.mrb[0].mxu0
      %v1189 = vadd.f32 0.0, %v1188
      %v1190 = vpop.f32.mrb[0].mxu0
      %v1191 = vadd.f32 0.0, %v1190
      %1192 = vmatprep.mubr.bf16.mxu0 0
      %1193 = vmatmul.mubr.bf16.gmra.mrb[0].mxu0 %v1113
      %v1194 = vpop.f32.mrb[0].mxu0
      %v1195 = vadd.f32 0.0, %v1194
      %v1196 = vpop.f32.mrb[0].mxu0
      %v1197 = vadd.f32 0.0, %v1196
      %v1198 = vpop.f32.mrb[0].mxu0
      %v1199 = vadd.f32 0.0, %v1198
      %v1200 = vpop.f32.mrb[0].mxu0
      %v1201 = vadd.f32 0.0, %v1200
      %1202 = vdwg.mxu0
      %1203 = vmatprep.subr.bf16.mxu0 0
      %1204 = vmatpush1.bf16.msra.mxu0 %v1128
      %1205 = vmatprep.subr.bf16.mxu0 0
      %1206 = vmatpush1.bf16.msra.mxu0 %v1131
      %1207 = vmatprep.subr.bf16.mxu0 0
      %1208 = vmatpush1.bf16.msra.mxu0 %v1134
      %1209 = vmatprep.subr.bf16.mxu0 0
      %1210 = vmatpush1.bf16.msra.mxu0 %v1137
      %1211 = vmatprep.subr.bf16.mxu0 0
      %1212 = vmatpush1.bf16.msra.mxu0 %v1140
      %1213 = vmatprep.subr.bf16.mxu0 0
      %1214 = vmatpush1.bf16.msra.mxu0 %v1143
      %1215 = vmatprep.subr.bf16.mxu0 0
      %1216 = vmatpush1.bf16.msra.mxu0 %v1146
      %1217 = vmatprep.subr.bf16.mxu0 0
      %1218 = vmatpush1.bf16.msra.mxu0 %v1149
      %1219 = vmatprep.subr.bf16.mxu0 0
      %1220 = vmatpush1.bf16.msra.mxu0 0
      %1221 = vmatprep.subr.bf16.mxu0 0
      %1222 = vmatpush1.bf16.msra.mxu0 0
      %1223 = vmatprep.subr.bf16.mxu0 0
      %1224 = vmatpush1.bf16.msra.mxu0 0
      %1225 = vmatprep.subr.bf16.mxu0 0
      %1226 = vmatpush1.bf16.msra.mxu0 0
      %1227 = vmatprep.subr.bf16.mxu0 0
      %1228 = vmatpush1.bf16.msra.mxu0 0
      %1229 = vmatprep.subr.bf16.mxu0 0
      %1230 = vmatpush1.bf16.msra.mxu0 0
      %1231 = vmatprep.subr.bf16.mxu0 0
      %1232 = vmatpush1.bf16.msra.mxu0 0
      %1233 = vmatprep.subr.bf16.mxu0 0
      %1234 = vmatpush1.bf16.msra.mxu0 0
      %1235 = vmatprep.mubr.bf16.mxu0 0
      %1236 = vmatmul.mubr.bf16.gmra.mrb[0].mxu0 %v1112
      %v1237 = vpop.f32.mrb[0].mxu0
      %v1238 = vadd.f32 0.0, %v1237
      %v1239 = vpop.f32.mrb[0].mxu0
      %v1240 = vpop.f32.mrb[0].mxu0
      %v1241 = vadd.f32 0.0, %v1240
      %v1242 = vpop.f32.mrb[0].mxu0
      %1243 = vmatprep.mubr.bf16.mxu0 0
      %1244 = vmatmul.mubr.bf16.gmra.mrb[0].mxu0 %v1113
      %v1245 = vpop.f32.mrb[0].mxu0
      %v1246 = vadd.f32 0.0, %v1245
      %v1247 = vpop.f32.mrb[0].mxu0
      %v1248 = vpop.f32.mrb[0].mxu0
      %v1249 = vadd.f32 0.0, %v1248
      %v1250 = vpop.f32.mrb[0].mxu0
      %1251 = vdwg.mxu0
      %v1252 = vlaneseq
      %v1253 = vshrl.u32 %v1252, 7
      %v1254 = vsub.s32 2, %v1253
      %v1255 = vrot.slane %v1043, %v1254
      %v1256 = vmul.f32 %v1185, %v1255
      %v1257 = vmul.f32 %v1189, %v1255
      %v1258 = vmul.f32 %v1195, %v1255
      %v1259 = vmul.f32 %v1199, %v1255
      %v1260 = vlaneseq
      %v1261 = vshrl.u32 %v1260, 7
      %v1262 = vsub.s32 1, %v1261
      %v1263 = vrot.slane %v1043, %v1262
      %v1264 = vadd.f32 %v1256, %v1263
      %v1265 = vadd.f32 %v1257, %v1263
      %v1266 = vadd.f32 %v1258, %v1263
      %v1267 = vadd.f32 %v1259, %v1263
      %1272 = vrot.lane.b32.xlu0 %v1264, 96
      %v1273 = vpop.permute.xlu0 %1272
      %1274 = vrot.lane.b32.xlu0 %v1265, 96
      %v1275 = vpop.permute.xlu0 %1274
      %1276 = vrot.lane.b32.xlu0 %v1266, 96
      %v1277 = vpop.permute.xlu0 %1276
      %1278 = vrot.lane.b32.xlu0 %v1267, 96
      %v1279 = vpop.permute.xlu0 %1278
      %1284 = vrot.lane.b32.xlu0 %v1264, 64
      %v1285 = vpop.permute.xlu0 %1284
      %1286 = vrot.lane.b32.xlu0 %v1265, 64
      %v1287 = vpop.permute.xlu0 %1286
      %1288 = vrot.lane.b32.xlu0 %v1266, 64
      %v1289 = vpop.permute.xlu0 %1288
      %1290 = vrot.lane.b32.xlu0 %v1267, 64
      %v1291 = vpop.permute.xlu0 %1290
      %1296 = vrot.lane.b32.xlu0 %v1264, 32
      %v1297 = vpop.permute.xlu0 %1296
      %1298 = vrot.lane.b32.xlu0 %v1265, 32
      %v1299 = vpop.permute.xlu0 %1298
      %1300 = vrot.lane.b32.xlu0 %v1266, 32
      %v1301 = vpop.permute.xlu0 %1300
      %1302 = vrot.lane.b32.xlu0 %v1267, 32
      %v1303 = vpop.permute.xlu0 %1302
      %v1308 = vcombine.low %v1264, %v1285
      %v1309 = vcombine.high %v1264, %v1285
      %v1311 = vunpack.c.l.s4 1983009808
      %v1312 = vunpack.c.0.s8 %v1311
      %v1313 = vlaneseq
      %v1314 = vshrl.u32 %v1313, 7
      %v1315 = vsub.s32 %v1312, %v1314
      %v1316 = vrot.slane %v1308, %v1315
      %v1318 = vunpack.c.l.s4 1983009808
      %v1319 = vunpack.c.0.s8 %v1318
      %v1320 = vlaneseq
      %v1321 = vshrl.u32 %v1320, 7
      %v1322 = vsub.s32 %v1319, %v1321
      %v1323 = vrot.slane %v1309, %v1322
      %v1324 = vcombine.low %v1273, %v1297
      %v1325 = vcombine.high %v1273, %v1297
      %v1327 = vunpack.c.l.s4 1983009808
      %v1328 = vunpack.c.0.s8 %v1327
      %v1329 = vlaneseq
      %v1330 = vshrl.u32 %v1329, 7
      %v1331 = vsub.s32 %v1328, %v1330
      %v1332 = vrot.slane %v1324, %v1331
      %v1334 = vunpack.c.l.s4 1983009808
      %v1335 = vunpack.c.0.s8 %v1334
      %v1336 = vlaneseq
      %v1337 = vshrl.u32 %v1336, 7
      %v1338 = vsub.s32 %v1335, %v1337
      %v1339 = vrot.slane %v1325, %v1338
      %v1340 = vcombine.low %v1316, %v1332
      %v1341 = vcombine.high %v1316, %v1332
      %v1343 = vunpack.c.l.s4 1934713408
      %v1344 = vunpack.c.0.s8 %v1343
      %v1345 = vlaneseq
      %v1346 = vshrl.u32 %v1345, 7
      %v1347 = vsub.s32 %v1344, %v1346
      %v1348 = vrot.slane %v1340, %v1347
      %v1350 = vunpack.c.l.s4 1934713408
      %v1351 = vunpack.c.0.s8 %v1350
      %v1352 = vlaneseq
      %v1353 = vshrl.u32 %v1352, 7
      %v1354 = vsub.s32 %v1351, %v1353
      %v1355 = vrot.slane %v1341, %v1354
      %v1356 = vcombine.low %v1323, %v1339
      %v1357 = vcombine.high %v1323, %v1339
      %v1359 = vunpack.c.l.s4 1934713408
      %v1360 = vunpack.c.0.s8 %v1359
      %v1361 = vlaneseq
      %v1362 = vshrl.u32 %v1361, 7
      %v1363 = vsub.s32 %v1360, %v1362
      %v1364 = vrot.slane %v1356, %v1363
      %v1366 = vunpack.c.l.s4 1934713408
      %v1367 = vunpack.c.0.s8 %v1366
      %v1368 = vlaneseq
      %v1369 = vshrl.u32 %v1368, 7
      %v1370 = vsub.s32 %v1367, %v1369
      %v1371 = vrot.slane %v1357, %v1370
      %v1372 = vcombine.high %v1348, 0.0
      %v1373 = vcombine.high %v1355, 0.0
      %v1374 = vcombine.high %v1364, 0.0
      %v1375 = vcombine.high %v1371, 0.0
      %v1376 = vcombine.low %v1265, %v1287
      %v1377 = vcombine.high %v1265, %v1287
      %v1379 = vunpack.c.l.s4 1983009808
      %v1380 = vunpack.c.0.s8 %v1379
      %v1381 = vlaneseq
      %v1382 = vshrl.u32 %v1381, 7
      %v1383 = vsub.s32 %v1380, %v1382
      %v1384 = vrot.slane %v1376, %v1383
      %v1386 = vunpack.c.l.s4 1983009808
      %v1387 = vunpack.c.0.s8 %v1386
      %v1388 = vlaneseq
      %v1389 = vshrl.u32 %v1388, 7
      %v1390 = vsub.s32 %v1387, %v1389
      %v1391 = vrot.slane %v1377, %v1390
      %v1392 = vcombine.low %v1275, %v1299
      %v1393 = vcombine.high %v1275, %v1299
      %v1395 = vunpack.c.l.s4 1983009808
      %v1396 = vunpack.c.0.s8 %v1395
      %v1397 = vlaneseq
      %v1398 = vshrl.u32 %v1397, 7
      %v1399 = vsub.s32 %v1396, %v1398
      %v1400 = vrot.slane %v1392, %v1399
      %v1402 = vunpack.c.l.s4 1983009808
      %v1403 = vunpack.c.0.s8 %v1402
      %v1404 = vlaneseq
      %v1405 = vshrl.u32 %v1404, 7
      %v1406 = vsub.s32 %v1403, %v1405
      %v1407 = vrot.slane %v1393, %v1406
      %v1408 = vcombine.low %v1384, %v1400
      %v1409 = vcombine.high %v1384, %v1400
      %v1411 = vunpack.c.l.s4 1934713408
      %v1412 = vunpack.c.0.s8 %v1411
      %v1413 = vlaneseq
      %v1414 = vshrl.u32 %v1413, 7
      %v1415 = vsub.s32 %v1412, %v1414
      %v1416 = vrot.slane %v1408, %v1415
      %v1418 = vunpack.c.l.s4 1934713408
      %v1419 = vunpack.c.0.s8 %v1418
      %v1420 = vlaneseq
      %v1421 = vshrl.u32 %v1420, 7
      %v1422 = vsub.s32 %v1419, %v1421
      %v1423 = vrot.slane %v1409, %v1422
      %v1424 = vcombine.low %v1391, %v1407
      %v1425 = vcombine.high %v1391, %v1407
      %v1427 = vunpack.c.l.s4 1934713408
      %v1428 = vunpack.c.0.s8 %v1427
      %v1429 = vlaneseq
      %v1430 = vshrl.u32 %v1429, 7
      %v1431 = vsub.s32 %v1428, %v1430
      %v1432 = vrot.slane %v1424, %v1431
      %v1434 = vunpack.c.l.s4 1934713408
      %v1435 = vunpack.c.0.s8 %v1434
      %v1436 = vlaneseq
      %v1437 = vshrl.u32 %v1436, 7
      %v1438 = vsub.s32 %v1435, %v1437
      %v1439 = vrot.slane %v1425, %v1438
      %v1440 = vcombine.high %v1416, 0.0
      %v1441 = vcombine.high %v1423, 0.0
      %v1442 = vcombine.high %v1432, 0.0
      %v1443 = vcombine.high %v1439, 0.0
      %v1444 = vcombine.low %v1266, %v1289
      %v1445 = vcombine.high %v1266, %v1289
      %v1447 = vunpack.c.l.s4 1983009808
      %v1448 = vunpack.c.0.s8 %v1447
      %v1449 = vlaneseq
      %v1450 = vshrl.u32 %v1449, 7
      %v1451 = vsub.s32 %v1448, %v1450
      %v1452 = vrot.slane %v1444, %v1451
      %v1454 = vunpack.c.l.s4 1983009808
      %v1455 = vunpack.c.0.s8 %v1454
      %v1456 = vlaneseq
      %v1457 = vshrl.u32 %v1456, 7
      %v1458 = vsub.s32 %v1455, %v1457
      %v1459 = vrot.slane %v1445, %v1458
      %v1460 = vcombine.low %v1277, %v1301
      %v1461 = vcombine.high %v1277, %v1301
      %v1463 = vunpack.c.l.s4 1983009808
      %v1464 = vunpack.c.0.s8 %v1463
      %v1465 = vlaneseq
      %v1466 = vshrl.u32 %v1465, 7
      %v1467 = vsub.s32 %v1464, %v1466
      %v1468 = vrot.slane %v1460, %v1467
      %v1470 = vunpack.c.l.s4 1983009808
      %v1471 = vunpack.c.0.s8 %v1470
      %v1472 = vlaneseq
      %v1473 = vshrl.u32 %v1472, 7
      %v1474 = vsub.s32 %v1471, %v1473
      %v1475 = vrot.slane %v1461, %v1474
      %v1476 = vcombine.low %v1452, %v1468
      %v1477 = vcombine.high %v1452, %v1468
      %v1479 = vunpack.c.l.s4 1934713408
      %v1480 = vunpack.c.0.s8 %v1479
      %v1481 = vlaneseq
      %v1482 = vshrl.u32 %v1481, 7
      %v1483 = vsub.s32 %v1480, %v1482
      %v1484 = vrot.slane %v1476, %v1483
      %v1486 = vunpack.c.l.s4 1934713408
      %v1487 = vunpack.c.0.s8 %v1486
      %v1488 = vlaneseq
      %v1489 = vshrl.u32 %v1488, 7
      %v1490 = vsub.s32 %v1487, %v1489
      %v1491 = vrot.slane %v1477, %v1490
      %v1492 = vcombine.low %v1459, %v1475
      %v1493 = vcombine.high %v1459, %v1475
      %v1495 = vunpack.c.l.s4 1934713408
      %v1496 = vunpack.c.0.s8 %v1495
      %v1497 = vlaneseq
      %v1498 = vshrl.u32 %v1497, 7
      %v1499 = vsub.s32 %v1496, %v1498
      %v1500 = vrot.slane %v1492, %v1499
      %v1502 = vunpack.c.l.s4 1934713408
      %v1503 = vunpack.c.0.s8 %v1502
      %v1504 = vlaneseq
      %v1505 = vshrl.u32 %v1504, 7
      %v1506 = vsub.s32 %v1503, %v1505
      %v1507 = vrot.slane %v1493, %v1506
      %v1508 = vcombine.high %v1484, 0.0
      %v1509 = vcombine.high %v1491, 0.0
      %v1510 = vcombine.high %v1500, 0.0
      %v1511 = vcombine.high %v1507, 0.0
      %v1512 = vcombine.low %v1267, %v1291
      %v1513 = vcombine.high %v1267, %v1291
      %v1515 = vunpack.c.l.s4 1983009808
      %v1516 = vunpack.c.0.s8 %v1515
      %v1517 = vlaneseq
      %v1518 = vshrl.u32 %v1517, 7
      %v1519 = vsub.s32 %v1516, %v1518
      %v1520 = vrot.slane %v1512, %v1519
      %v1522 = vunpack.c.l.s4 1983009808
      %v1523 = vunpack.c.0.s8 %v1522
      %v1524 = vlaneseq
      %v1525 = vshrl.u32 %v1524, 7
      %v1526 = vsub.s32 %v1523, %v1525
      %v1527 = vrot.slane %v1513, %v1526
      %v1528 = vcombine.low %v1279, %v1303
      %v1529 = vcombine.high %v1279, %v1303
      %v1531 = vunpack.c.l.s4 1983009808
      %v1532 = vunpack.c.0.s8 %v1531
      %v1533 = vlaneseq
      %v1534 = vshrl.u32 %v1533, 7
      %v1535 = vsub.s32 %v1532, %v1534
      %v1536 = vrot.slane %v1528, %v1535
      %v1538 = vunpack.c.l.s4 1983009808
      %v1539 = vunpack.c.0.s8 %v1538
      %v1540 = vlaneseq
      %v1541 = vshrl.u32 %v1540, 7
      %v1542 = vsub.s32 %v1539, %v1541
      %v1543 = vrot.slane %v1529, %v1542
      %v1544 = vcombine.low %v1520, %v1536
      %v1545 = vcombine.high %v1520, %v1536
      %v1547 = vunpack.c.l.s4 1934713408
      %v1548 = vunpack.c.0.s8 %v1547
      %v1549 = vlaneseq
      %v1550 = vshrl.u32 %v1549, 7
      %v1551 = vsub.s32 %v1548, %v1550
      %v1552 = vrot.slane %v1544, %v1551
      %v1554 = vunpack.c.l.s4 1934713408
      %v1555 = vunpack.c.0.s8 %v1554
      %v1556 = vlaneseq
      %v1557 = vshrl.u32 %v1556, 7
      %v1558 = vsub.s32 %v1555, %v1557
      %v1559 = vrot.slane %v1545, %v1558
      %v1560 = vcombine.low %v1527, %v1543
      %v1561 = vcombine.high %v1527, %v1543
      %v1563 = vunpack.c.l.s4 1934713408
      %v1564 = vunpack.c.0.s8 %v1563
      %v1565 = vlaneseq
      %v1566 = vshrl.u32 %v1565, 7
      %v1567 = vsub.s32 %v1564, %v1566
      %v1568 = vrot.slane %v1560, %v1567
      %v1570 = vunpack.c.l.s4 1934713408
      %v1571 = vunpack.c.0.s8 %v1570
      %v1572 = vlaneseq
      %v1573 = vshrl.u32 %v1572, 7
      %v1574 = vsub.s32 %v1571, %v1573
      %v1575 = vrot.slane %v1561, %v1574
      %v1576 = vcombine.high %v1552, 0.0
      %v1577 = vcombine.high %v1559, 0.0
      %v1578 = vcombine.high %v1568, 0.0
      %v1579 = vcombine.high %v1575, 0.0
      %v1580 = vcombine.low %v1348, %v1355
      %v1582 = vunpack.c.l.s4 1983009808
      %v1583 = vunpack.c.0.s8 %v1582
      %v1584 = vlaneseq
      %v1585 = vshrl.u32 %v1584, 7
      %v1586 = vsub.s32 %v1583, %v1585
      %v1587 = vrot.slane %v1580, %v1586
      %v1588 = vcombine.low %v1372, %v1373
      %v1590 = vunpack.c.l.s4 1983009808
      %v1591 = vunpack.c.0.s8 %v1590
      %v1592 = vlaneseq
      %v1593 = vshrl.u32 %v1592, 7
      %v1594 = vsub.s32 %v1591, %v1593
      %v1595 = vrot.slane %v1588, %v1594
      %v1596 = vcombine.low %v1364, %v1371
      %v1598 = vunpack.c.l.s4 1983009808
      %v1599 = vunpack.c.0.s8 %v1598
      %v1600 = vlaneseq
      %v1601 = vshrl.u32 %v1600, 7
      %v1602 = vsub.s32 %v1599, %v1601
      %v1603 = vrot.slane %v1596, %v1602
      %v1604 = vcombine.low %v1374, %v1375
      %v1606 = vunpack.c.l.s4 1983009808
      %v1607 = vunpack.c.0.s8 %v1606
      %v1608 = vlaneseq
      %v1609 = vshrl.u32 %v1608, 7
      %v1610 = vsub.s32 %v1607, %v1609
      %v1611 = vrot.slane %v1604, %v1610
      %v1612 = vcombine.low %v1587, %v1595
      %v1613 = vcombine.high %v1587, %v1595
      %v1615 = vunpack.c.l.s4 1934713408
      %v1616 = vunpack.c.0.s8 %v1615
      %v1617 = vlaneseq
      %v1618 = vshrl.u32 %v1617, 7
      %v1619 = vsub.s32 %v1616, %v1618
      %v1620 = vrot.slane %v1612, %v1619
      %v1622 = vunpack.c.l.s4 1934713408
      %v1623 = vunpack.c.0.s8 %v1622
      %v1624 = vlaneseq
      %v1625 = vshrl.u32 %v1624, 7
      %v1626 = vsub.s32 %v1623, %v1625
      %v1627 = vrot.slane %v1613, %v1626
      %v1628 = vcombine.low %v1603, %v1611
      %v1629 = vcombine.high %v1603, %v1611
      %v1631 = vunpack.c.l.s4 1934713408
      %v1632 = vunpack.c.0.s8 %v1631
      %v1633 = vlaneseq
      %v1634 = vshrl.u32 %v1633, 7
      %v1635 = vsub.s32 %v1632, %v1634
      %v1636 = vrot.slane %v1628, %v1635
      %v1638 = vunpack.c.l.s4 1934713408
      %v1639 = vunpack.c.0.s8 %v1638
      %v1640 = vlaneseq
      %v1641 = vshrl.u32 %v1640, 7
      %v1642 = vsub.s32 %v1639, %v1641
      %v1643 = vrot.slane %v1629, %v1642
      %v1644 = vcombine.low %v1620, %v1636
      %v1645 = vcombine.high %v1620, %v1636
      %v1646 = vcombine.low %v1627, %v1643
      %v1647 = vcombine.high %v1627, %v1643
      %v1648 = vcombine.low %v1416, %v1423
      %v1650 = vunpack.c.l.s4 1983009808
      %v1651 = vunpack.c.0.s8 %v1650
      %v1652 = vlaneseq
      %v1653 = vshrl.u32 %v1652, 7
      %v1654 = vsub.s32 %v1651, %v1653
      %v1655 = vrot.slane %v1648, %v1654
      %v1656 = vcombine.low %v1440, %v1441
      %v1658 = vunpack.c.l.s4 1983009808
      %v1659 = vunpack.c.0.s8 %v1658
      %v1660 = vlaneseq
      %v1661 = vshrl.u32 %v1660, 7
      %v1662 = vsub.s32 %v1659, %v1661
      %v1663 = vrot.slane %v1656, %v1662
      %v1664 = vcombine.low %v1432, %v1439
      %v1666 = vunpack.c.l.s4 1983009808
      %v1667 = vunpack.c.0.s8 %v1666
      %v1668 = vlaneseq
      %v1669 = vshrl.u32 %v1668, 7
      %v1670 = vsub.s32 %v1667, %v1669
      %v1671 = vrot.slane %v1664, %v1670
      %v1672 = vcombine.low %v1442, %v1443
      %v1674 = vunpack.c.l.s4 1983009808
      %v1675 = vunpack.c.0.s8 %v1674
      %v1676 = vlaneseq
      %v1677 = vshrl.u32 %v1676, 7
      %v1678 = vsub.s32 %v1675, %v1677
      %v1679 = vrot.slane %v1672, %v1678
      %v1680 = vcombine.low %v1655, %v1663
      %v1681 = vcombine.high %v1655, %v1663
      %v1683 = vunpack.c.l.s4 1934713408
      %v1684 = vunpack.c.0.s8 %v1683
      %v1685 = vlaneseq
      %v1686 = vshrl.u32 %v1685, 7
      %v1687 = vsub.s32 %v1684, %v1686
      %v1688 = vrot.slane %v1680, %v1687
      %v1690 = vunpack.c.l.s4 1934713408
      %v1691 = vunpack.c.0.s8 %v1690
      %v1692 = vlaneseq
      %v1693 = vshrl.u32 %v1692, 7
      %v1694 = vsub.s32 %v1691, %v1693
      %v1695 = vrot.slane %v1681, %v1694
      %v1696 = vcombine.low %v1671, %v1679
      %v1697 = vcombine.high %v1671, %v1679
      %v1699 = vunpack.c.l.s4 1934713408
      %v1700 = vunpack.c.0.s8 %v1699
      %v1701 = vlaneseq
      %v1702 = vshrl.u32 %v1701, 7
      %v1703 = vsub.s32 %v1700, %v1702
      %v1704 = vrot.slane %v1696, %v1703
      %v1706 = vunpack.c.l.s4 1934713408
      %v1707 = vunpack.c.0.s8 %v1706
      %v1708 = vlaneseq
      %v1709 = vshrl.u32 %v1708, 7
      %v1710 = vsub.s32 %v1707, %v1709
      %v1711 = vrot.slane %v1697, %v1710
      %v1712 = vcombine.low %v1688, %v1704
      %v1713 = vcombine.high %v1688, %v1704
      %v1714 = vcombine.low %v1695, %v1711
      %v1715 = vcombine.high %v1695, %v1711
      %v1716 = vcombine.low %v1484, %v1491
      %v1718 = vunpack.c.l.s4 1983009808
      %v1719 = vunpack.c.0.s8 %v1718
      %v1720 = vlaneseq
      %v1721 = vshrl.u32 %v1720, 7
      %v1722 = vsub.s32 %v1719, %v1721
      %v1723 = vrot.slane %v1716, %v1722
      %v1724 = vcombine.low %v1508, %v1509
      %v1726 = vunpack.c.l.s4 1983009808
      %v1727 = vunpack.c.0.s8 %v1726
      %v1728 = vlaneseq
      %v1729 = vshrl.u32 %v1728, 7
      %v1730 = vsub.s32 %v1727, %v1729
      %v1731 = vrot.slane %v1724, %v1730
      %v1732 = vcombine.low %v1500, %v1507
      %v1734 = vunpack.c.l.s4 1983009808
      %v1735 = vunpack.c.0.s8 %v1734
      %v1736 = vlaneseq
      %v1737 = vshrl.u32 %v1736, 7
      %v1738 = vsub.s32 %v1735, %v1737
      %v1739 = vrot.slane %v1732, %v1738
      %v1740 = vcombine.low %v1510, %v1511
      %v1742 = vunpack.c.l.s4 1983009808
      %v1743 = vunpack.c.0.s8 %v1742
      %v1744 = vlaneseq
      %v1745 = vshrl.u32 %v1744, 7
      %v1746 = vsub.s32 %v1743, %v1745
      %v1747 = vrot.slane %v1740, %v1746
      %v1748 = vcombine.low %v1723, %v1731
      %v1749 = vcombine.high %v1723, %v1731
      %v1751 = vunpack.c.l.s4 1934713408
      %v1752 = vunpack.c.0.s8 %v1751
      %v1753 = vlaneseq
      %v1754 = vshrl.u32 %v1753, 7
      %v1755 = vsub.s32 %v1752, %v1754
      %v1756 = vrot.slane %v1748, %v1755
      %v1758 = vunpack.c.l.s4 1934713408
      %v1759 = vunpack.c.0.s8 %v1758
      %v1760 = vlaneseq
      %v1761 = vshrl.u32 %v1760, 7
      %v1762 = vsub.s32 %v1759, %v1761
      %v1763 = vrot.slane %v1749, %v1762
      %v1764 = vcombine.low %v1739, %v1747
      %v1765 = vcombine.high %v1739, %v1747
      %v1767 = vunpack.c.l.s4 1934713408
      %v1768 = vunpack.c.0.s8 %v1767
      %v1769 = vlaneseq
      %v1770 = vshrl.u32 %v1769, 7
      %v1771 = vsub.s32 %v1768, %v1770
      %v1772 = vrot.slane %v1764, %v1771
      %v1774 = vunpack.c.l.s4 1934713408
      %v1775 = vunpack.c.0.s8 %v1774
      %v1776 = vlaneseq
      %v1777 = vshrl.u32 %v1776, 7
      %v1778 = vsub.s32 %v1775, %v1777
      %v1779 = vrot.slane %v1765, %v1778
      %v1780 = vcombine.low %v1756, %v1772
      %v1781 = vcombine.high %v1756, %v1772
      %v1782 = vcombine.low %v1763, %v1779
      %v1783 = vcombine.high %v1763, %v1779
      %v1784 = vcombine.low %v1552, %v1559
      %v1786 = vunpack.c.l.s4 1983009808
      %v1787 = vunpack.c.0.s8 %v1786
      %v1788 = vlaneseq
      %v1789 = vshrl.u32 %v1788, 7
      %v1790 = vsub.s32 %v1787, %v1789
      %v1791 = vrot.slane %v1784, %v1790
      %v1792 = vcombine.low %v1576, %v1577
      %v1794 = vunpack.c.l.s4 1983009808
      %v1795 = vunpack.c.0.s8 %v1794
      %v1796 = vlaneseq
      %v1797 = vshrl.u32 %v1796, 7
      %v1798 = vsub.s32 %v1795, %v1797
      %v1799 = vrot.slane %v1792, %v1798
      %v1800 = vcombine.low %v1568, %v1575
      %v1802 = vunpack.c.l.s4 1983009808
      %v1803 = vunpack.c.0.s8 %v1802
      %v1804 = vlaneseq
      %v1805 = vshrl.u32 %v1804, 7
      %v1806 = vsub.s32 %v1803, %v1805
      %v1807 = vrot.slane %v1800, %v1806
      %v1808 = vcombine.low %v1578, %v1579
      %v1810 = vunpack.c.l.s4 1983009808
      %v1811 = vunpack.c.0.s8 %v1810
      %v1812 = vlaneseq
      %v1813 = vshrl.u32 %v1812, 7
      %v1814 = vsub.s32 %v1811, %v1813
      %v1815 = vrot.slane %v1808, %v1814
      %v1816 = vcombine.low %v1791, %v1799
      %v1817 = vcombine.high %v1791, %v1799
      %v1819 = vunpack.c.l.s4 1934713408
      %v1820 = vunpack.c.0.s8 %v1819
      %v1821 = vlaneseq
      %v1822 = vshrl.u32 %v1821, 7
      %v1823 = vsub.s32 %v1820, %v1822
      %v1824 = vrot.slane %v1816, %v1823
      %v1826 = vunpack.c.l.s4 1934713408
      %v1827 = vunpack.c.0.s8 %v1826
      %v1828 = vlaneseq
      %v1829 = vshrl.u32 %v1828, 7
      %v1830 = vsub.s32 %v1827, %v1829
      %v1831 = vrot.slane %v1817, %v1830
      %v1832 = vcombine.low %v1807, %v1815
      %v1833 = vcombine.high %v1807, %v1815
      %v1835 = vunpack.c.l.s4 1934713408
      %v1836 = vunpack.c.0.s8 %v1835
      %v1837 = vlaneseq
      %v1838 = vshrl.u32 %v1837, 7
      %v1839 = vsub.s32 %v1836, %v1838
      %v1840 = vrot.slane %v1832, %v1839
      %v1842 = vunpack.c.l.s4 1934713408
      %v1843 = vunpack.c.0.s8 %v1842
      %v1844 = vlaneseq
      %v1845 = vshrl.u32 %v1844, 7
      %v1846 = vsub.s32 %v1843, %v1845
      %v1847 = vrot.slane %v1833, %v1846
      %v1848 = vcombine.low %v1824, %v1840
      %v1849 = vcombine.high %v1824, %v1840
      %v1850 = vcombine.low %v1831, %v1847
      %v1851 = vcombine.high %v1831, %v1847
      %v1852 = vpack.c.bf16 %v1712, %v1644
      %v1853 = vpack.c.bf16 %v1713, %v1645
      %v1854 = vpack.c.bf16 %v1714, %v1646
      %v1855 = vpack.c.bf16 %v1715, %v1647
      %v1856 = vpack.c.bf16 %v1848, %v1780
      %v1857 = vpack.c.bf16 %v1849, %v1781
      %v1858 = vpack.c.bf16 %v1850, %v1782
      %v1859 = vpack.c.bf16 %v1851, %v1783
      %v1860 = vlaneseq
      %v1861 = vshrl.u32 %v1860, 7
      %v1862 = vsub.s32 2, %v1861
      %v1863 = vrot.slane %v1044, %v1862
      %v1864 = vmul.f32 %v1187, %v1863
      %v1865 = vmul.f32 %v1191, %v1863
      %v1866 = vmul.f32 %v1197, %v1863
      %v1867 = vmul.f32 %v1201, %v1863
      %v1868 = vlaneseq
      %v1869 = vshrl.u32 %v1868, 7
      %v1870 = vsub.s32 1, %v1869
      %v1871 = vrot.slane %v1044, %v1870
      %v1872 = vadd.f32 %v1864, %v1871
      %v1873 = vadd.f32 %v1865, %v1871
      %v1874 = vadd.f32 %v1866, %v1871
      %v1875 = vadd.f32 %v1867, %v1871
      %1880 = vrot.lane.b32.xlu0 %v1872, 96
      %v1881 = vpop.permute.xlu0 %1880
      %1882 = vrot.lane.b32.xlu0 %v1873, 96
      %v1883 = vpop.permute.xlu0 %1882
      %1884 = vrot.lane.b32.xlu0 %v1874, 96
      %v1885 = vpop.permute.xlu0 %1884
      %1886 = vrot.lane.b32.xlu0 %v1875, 96
      %v1887 = vpop.permute.xlu0 %1886
      %1892 = vrot.lane.b32.xlu0 %v1872, 64
      %v1893 = vpop.permute.xlu0 %1892
      %1894 = vrot.lane.b32.xlu0 %v1873, 64
      %v1895 = vpop.permute.xlu0 %1894
      %1896 = vrot.lane.b32.xlu0 %v1874, 64
      %v1897 = vpop.permute.xlu0 %1896
      %1898 = vrot.lane.b32.xlu0 %v1875, 64
      %v1899 = vpop.permute.xlu0 %1898
      %1904 = vrot.lane.b32.xlu0 %v1872, 32
      %v1905 = vpop.permute.xlu0 %1904
      %1906 = vrot.lane.b32.xlu0 %v1873, 32
      %v1907 = vpop.permute.xlu0 %1906
      %1908 = vrot.lane.b32.xlu0 %v1874, 32
      %v1909 = vpop.permute.xlu0 %1908
      %1910 = vrot.lane.b32.xlu0 %v1875, 32
      %v1911 = vpop.permute.xlu0 %1910
      %v1916 = vcombine.low %v1872, %v1893
      %v1917 = vcombine.high %v1872, %v1893
      %v1919 = vunpack.c.l.s4 1983009808
      %v1920 = vunpack.c.0.s8 %v1919
      %v1921 = vlaneseq
      %v1922 = vshrl.u32 %v1921, 7
      %v1923 = vsub.s32 %v1920, %v1922
      %v1924 = vrot.slane %v1916, %v1923
      %v1926 = vunpack.c.l.s4 1983009808
      %v1927 = vunpack.c.0.s8 %v1926
      %v1928 = vlaneseq
      %v1929 = vshrl.u32 %v1928, 7
      %v1930 = vsub.s32 %v1927, %v1929
      %v1931 = vrot.slane %v1917, %v1930
      %v1932 = vcombine.low %v1881, %v1905
      %v1933 = vcombine.high %v1881, %v1905
      %v1935 = vunpack.c.l.s4 1983009808
      %v1936 = vunpack.c.0.s8 %v1935
      %v1937 = vlaneseq
      %v1938 = vshrl.u32 %v1937, 7
      %v1939 = vsub.s32 %v1936, %v1938
      %v1940 = vrot.slane %v1932, %v1939
      %v1942 = vunpack.c.l.s4 1983009808
      %v1943 = vunpack.c.0.s8 %v1942
      %v1944 = vlaneseq
      %v1945 = vshrl.u32 %v1944, 7
      %v1946 = vsub.s32 %v1943, %v1945
      %v1947 = vrot.slane %v1933, %v1946
      %v1948 = vcombine.low %v1924, %v1940
      %v1949 = vcombine.high %v1924, %v1940
      %v1951 = vunpack.c.l.s4 1934713408
      %v1952 = vunpack.c.0.s8 %v1951
      %v1953 = vlaneseq
      %v1954 = vshrl.u32 %v1953, 7
      %v1955 = vsub.s32 %v1952, %v1954
      %v1956 = vrot.slane %v1948, %v1955
      %v1958 = vunpack.c.l.s4 1934713408
      %v1959 = vunpack.c.0.s8 %v1958
      %v1960 = vlaneseq
      %v1961 = vshrl.u32 %v1960, 7
      %v1962 = vsub.s32 %v1959, %v1961
      %v1963 = vrot.slane %v1949, %v1962
      %v1964 = vcombine.low %v1931, %v1947
      %v1965 = vcombine.high %v1931, %v1947
      %v1967 = vunpack.c.l.s4 1934713408
      %v1968 = vunpack.c.0.s8 %v1967
      %v1969 = vlaneseq
      %v1970 = vshrl.u32 %v1969, 7
      %v1971 = vsub.s32 %v1968, %v1970
      %v1972 = vrot.slane %v1964, %v1971
      %v1974 = vunpack.c.l.s4 1934713408
      %v1975 = vunpack.c.0.s8 %v1974
      %v1976 = vlaneseq
      %v1977 = vshrl.u32 %v1976, 7
      %v1978 = vsub.s32 %v1975, %v1977
      %v1979 = vrot.slane %v1965, %v1978
      %v1980 = vcombine.high %v1956, 0.0
      %v1981 = vcombine.high %v1963, 0.0
      %v1982 = vcombine.high %v1972, 0.0
      %v1983 = vcombine.high %v1979, 0.0
      %v1984 = vcombine.low %v1873, %v1895
      %v1985 = vcombine.high %v1873, %v1895
      %v1987 = vunpack.c.l.s4 1983009808
      %v1988 = vunpack.c.0.s8 %v1987
      %v1989 = vlaneseq
      %v1990 = vshrl.u32 %v1989, 7
      %v1991 = vsub.s32 %v1988, %v1990
      %v1992 = vrot.slane %v1984, %v1991
      %v1994 = vunpack.c.l.s4 1983009808
      %v1995 = vunpack.c.0.s8 %v1994
      %v1996 = vlaneseq
      %v1997 = vshrl.u32 %v1996, 7
      %v1998 = vsub.s32 %v1995, %v1997
      %v1999 = vrot.slane %v1985, %v1998
      %v2000 = vcombine.low %v1883, %v1907
      %v2001 = vcombine.high %v1883, %v1907
      %v2003 = vunpack.c.l.s4 1983009808
      %v2004 = vunpack.c.0.s8 %v2003
      %v2005 = vlaneseq
      %v2006 = vshrl.u32 %v2005, 7
      %v2007 = vsub.s32 %v2004, %v2006
      %v2008 = vrot.slane %v2000, %v2007
      %v2010 = vunpack.c.l.s4 1983009808
      %v2011 = vunpack.c.0.s8 %v2010
      %v2012 = vlaneseq
      %v2013 = vshrl.u32 %v2012, 7
      %v2014 = vsub.s32 %v2011, %v2013
      %v2015 = vrot.slane %v2001, %v2014
      %v2016 = vcombine.low %v1992, %v2008
      %v2017 = vcombine.high %v1992, %v2008
      %v2019 = vunpack.c.l.s4 1934713408
      %v2020 = vunpack.c.0.s8 %v2019
      %v2021 = vlaneseq
      %v2022 = vshrl.u32 %v2021, 7
      %v2023 = vsub.s32 %v2020, %v2022
      %v2024 = vrot.slane %v2016, %v2023
      %v2026 = vunpack.c.l.s4 1934713408
      %v2027 = vunpack.c.0.s8 %v2026
      %v2028 = vlaneseq
      %v2029 = vshrl.u32 %v2028, 7
      %v2030 = vsub.s32 %v2027, %v2029
      %v2031 = vrot.slane %v2017, %v2030
      %v2032 = vcombine.low %v1999, %v2015
      %v2033 = vcombine.high %v1999, %v2015
      %v2035 = vunpack.c.l.s4 1934713408
      %v2036 = vunpack.c.0.s8 %v2035
      %v2037 = vlaneseq
      %v2038 = vshrl.u32 %v2037, 7
      %v2039 = vsub.s32 %v2036, %v2038
      %v2040 = vrot.slane %v2032, %v2039
      %v2042 = vunpack.c.l.s4 1934713408
      %v2043 = vunpack.c.0.s8 %v2042
      %v2044 = vlaneseq
      %v2045 = vshrl.u32 %v2044, 7
      %v2046 = vsub.s32 %v2043, %v2045
      %v2047 = vrot.slane %v2033, %v2046
      %v2048 = vcombine.high %v2024, 0.0
      %v2049 = vcombine.high %v2031, 0.0
      %v2050 = vcombine.high %v2040, 0.0
      %v2051 = vcombine.high %v2047, 0.0
      %v2052 = vcombine.low %v1874, %v1897
      %v2053 = vcombine.high %v1874, %v1897
      %v2055 = vunpack.c.l.s4 1983009808
      %v2056 = vunpack.c.0.s8 %v2055
      %v2057 = vlaneseq
      %v2058 = vshrl.u32 %v2057, 7
      %v2059 = vsub.s32 %v2056, %v2058
      %v2060 = vrot.slane %v2052, %v2059
      %v2062 = vunpack.c.l.s4 1983009808
      %v2063 = vunpack.c.0.s8 %v2062
      %v2064 = vlaneseq
      %v2065 = vshrl.u32 %v2064, 7
      %v2066 = vsub.s32 %v2063, %v2065
      %v2067 = vrot.slane %v2053, %v2066
      %v2068 = vcombine.low %v1885, %v1909
      %v2069 = vcombine.high %v1885, %v1909
      %v2071 = vunpack.c.l.s4 1983009808
      %v2072 = vunpack.c.0.s8 %v2071
      %v2073 = vlaneseq
      %v2074 = vshrl.u32 %v2073, 7
      %v2075 = vsub.s32 %v2072, %v2074
      %v2076 = vrot.slane %v2068, %v2075
      %v2078 = vunpack.c.l.s4 1983009808
      %v2079 = vunpack.c.0.s8 %v2078
      %v2080 = vlaneseq
      %v2081 = vshrl.u32 %v2080, 7
      %v2082 = vsub.s32 %v2079, %v2081
      %v2083 = vrot.slane %v2069, %v2082
      %v2084 = vcombine.low %v2060, %v2076
      %v2085 = vcombine.high %v2060, %v2076
      %v2087 = vunpack.c.l.s4 1934713408
      %v2088 = vunpack.c.0.s8 %v2087
      %v2089 = vlaneseq
      %v2090 = vshrl.u32 %v2089, 7
      %v2091 = vsub.s32 %v2088, %v2090
      %v2092 = vrot.slane %v2084, %v2091
      %v2094 = vunpack.c.l.s4 1934713408
      %v2095 = vunpack.c.0.s8 %v2094
      %v2096 = vlaneseq
      %v2097 = vshrl.u32 %v2096, 7
      %v2098 = vsub.s32 %v2095, %v2097
      %v2099 = vrot.slane %v2085, %v2098
      %v2100 = vcombine.low %v2067, %v2083
      %v2101 = vcombine.high %v2067, %v2083
      %v2103 = vunpack.c.l.s4 1934713408
      %v2104 = vunpack.c.0.s8 %v2103
      %v2105 = vlaneseq
      %v2106 = vshrl.u32 %v2105, 7
      %v2107 = vsub.s32 %v2104, %v2106
      %v2108 = vrot.slane %v2100, %v2107
      %v2110 = vunpack.c.l.s4 1934713408
      %v2111 = vunpack.c.0.s8 %v2110
      %v2112 = vlaneseq
      %v2113 = vshrl.u32 %v2112, 7
      %v2114 = vsub.s32 %v2111, %v2113
      %v2115 = vrot.slane %v2101, %v2114
      %v2116 = vcombine.high %v2092, 0.0
      %v2117 = vcombine.high %v2099, 0.0
      %v2118 = vcombine.high %v2108, 0.0
      %v2119 = vcombine.high %v2115, 0.0
      %v2120 = vcombine.low %v1875, %v1899
      %v2121 = vcombine.high %v1875, %v1899
      %v2123 = vunpack.c.l.s4 1983009808
      %v2124 = vunpack.c.0.s8 %v2123
      %v2125 = vlaneseq
      %v2126 = vshrl.u32 %v2125, 7
      %v2127 = vsub.s32 %v2124, %v2126
      %v2128 = vrot.slane %v2120, %v2127
      %v2130 = vunpack.c.l.s4 1983009808
      %v2131 = vunpack.c.0.s8 %v2130
      %v2132 = vlaneseq
      %v2133 = vshrl.u32 %v2132, 7
      %v2134 = vsub.s32 %v2131, %v2133
      %v2135 = vrot.slane %v2121, %v2134
      %v2136 = vcombine.low %v1887, %v1911
      %v2137 = vcombine.high %v1887, %v1911
      %v2139 = vunpack.c.l.s4 1983009808
      %v2140 = vunpack.c.0.s8 %v2139
      %v2141 = vlaneseq
      %v2142 = vshrl.u32 %v2141, 7
      %v2143 = vsub.s32 %v2140, %v2142
      %v2144 = vrot.slane %v2136, %v2143
      %v2146 = vunpack.c.l.s4 1983009808
      %v2147 = vunpack.c.0.s8 %v2146
      %v2148 = vlaneseq
      %v2149 = vshrl.u32 %v2148, 7
      %v2150 = vsub.s32 %v2147, %v2149
      %v2151 = vrot.slane %v2137, %v2150
      %v2152 = vcombine.low %v2128, %v2144
      %v2153 = vcombine.high %v2128, %v2144
      %v2155 = vunpack.c.l.s4 1934713408
      %v2156 = vunpack.c.0.s8 %v2155
      %v2157 = vlaneseq
      %v2158 = vshrl.u32 %v2157, 7
      %v2159 = vsub.s32 %v2156, %v2158
      %v2160 = vrot.slane %v2152, %v2159
      %v2162 = vunpack.c.l.s4 1934713408
      %v2163 = vunpack.c.0.s8 %v2162
      %v2164 = vlaneseq
      %v2165 = vshrl.u32 %v2164, 7
      %v2166 = vsub.s32 %v2163, %v2165
      %v2167 = vrot.slane %v2153, %v2166
      %v2168 = vcombine.low %v2135, %v2151
      %v2169 = vcombine.high %v2135, %v2151
      %v2171 = vunpack.c.l.s4 1934713408
      %v2172 = vunpack.c.0.s8 %v2171
      %v2173 = vlaneseq
      %v2174 = vshrl.u32 %v2173, 7
      %v2175 = vsub.s32 %v2172, %v2174
      %v2176 = vrot.slane %v2168, %v2175
      %v2178 = vunpack.c.l.s4 1934713408
      %v2179 = vunpack.c.0.s8 %v2178
      %v2180 = vlaneseq
      %v2181 = vshrl.u32 %v2180, 7
      %v2182 = vsub.s32 %v2179, %v2181
      %v2183 = vrot.slane %v2169, %v2182
      %v2184 = vcombine.high %v2160, 0.0
      %v2185 = vcombine.high %v2167, 0.0
      %v2186 = vcombine.high %v2176, 0.0
      %v2187 = vcombine.high %v2183, 0.0
      %v2188 = vcombine.low %v1956, %v1963
      %v2190 = vunpack.c.l.s4 1983009808
      %v2191 = vunpack.c.0.s8 %v2190
      %v2192 = vlaneseq
      %v2193 = vshrl.u32 %v2192, 7
      %v2194 = vsub.s32 %v2191, %v2193
      %v2195 = vrot.slane %v2188, %v2194
      %v2196 = vcombine.low %v1980, %v1981
      %v2198 = vunpack.c.l.s4 1983009808
      %v2199 = vunpack.c.0.s8 %v2198
      %v2200 = vlaneseq
      %v2201 = vshrl.u32 %v2200, 7
      %v2202 = vsub.s32 %v2199, %v2201
      %v2203 = vrot.slane %v2196, %v2202
      %v2204 = vcombine.low %v1972, %v1979
      %v2206 = vunpack.c.l.s4 1983009808
      %v2207 = vunpack.c.0.s8 %v2206
      %v2208 = vlaneseq
      %v2209 = vshrl.u32 %v2208, 7
      %v2210 = vsub.s32 %v2207, %v2209
      %v2211 = vrot.slane %v2204, %v2210
      %v2212 = vcombine.low %v1982, %v1983
      %v2214 = vunpack.c.l.s4 1983009808
      %v2215 = vunpack.c.0.s8 %v2214
      %v2216 = vlaneseq
      %v2217 = vshrl.u32 %v2216, 7
      %v2218 = vsub.s32 %v2215, %v2217
      %v2219 = vrot.slane %v2212, %v2218
      %v2220 = vcombine.low %v2195, %v2203
      %v2221 = vcombine.high %v2195, %v2203
      %v2223 = vunpack.c.l.s4 1934713408
      %v2224 = vunpack.c.0.s8 %v2223
      %v2225 = vlaneseq
      %v2226 = vshrl.u32 %v2225, 7
      %v2227 = vsub.s32 %v2224, %v2226
      %v2228 = vrot.slane %v2220, %v2227
      %v2230 = vunpack.c.l.s4 1934713408
      %v2231 = vunpack.c.0.s8 %v2230
      %v2232 = vlaneseq
      %v2233 = vshrl.u32 %v2232, 7
      %v2234 = vsub.s32 %v2231, %v2233
      %v2235 = vrot.slane %v2221, %v2234
      %v2236 = vcombine.low %v2211, %v2219
      %v2237 = vcombine.high %v2211, %v2219
      %v2239 = vunpack.c.l.s4 1934713408
      %v2240 = vunpack.c.0.s8 %v2239
      %v2241 = vlaneseq
      %v2242 = vshrl.u32 %v2241, 7
      %v2243 = vsub.s32 %v2240, %v2242
      %v2244 = vrot.slane %v2236, %v2243
      %v2246 = vunpack.c.l.s4 1934713408
      %v2247 = vunpack.c.0.s8 %v2246
      %v2248 = vlaneseq
      %v2249 = vshrl.u32 %v2248, 7
      %v2250 = vsub.s32 %v2247, %v2249
      %v2251 = vrot.slane %v2237, %v2250
      %v2252 = vcombine.low %v2228, %v2244
      %v2253 = vcombine.high %v2228, %v2244
      %v2254 = vcombine.low %v2235, %v2251
      %v2255 = vcombine.high %v2235, %v2251
      %v2256 = vcombine.low %v2024, %v2031
      %v2258 = vunpack.c.l.s4 1983009808
      %v2259 = vunpack.c.0.s8 %v2258
      %v2260 = vlaneseq
      %v2261 = vshrl.u32 %v2260, 7
      %v2262 = vsub.s32 %v2259, %v2261
      %v2263 = vrot.slane %v2256, %v2262
      %v2264 = vcombine.low %v2048, %v2049
      %v2266 = vunpack.c.l.s4 1983009808
      %v2267 = vunpack.c.0.s8 %v2266
      %v2268 = vlaneseq
      %v2269 = vshrl.u32 %v2268, 7
      %v2270 = vsub.s32 %v2267, %v2269
      %v2271 = vrot.slane %v2264, %v2270
      %v2272 = vcombine.low %v2040, %v2047
      %v2274 = vunpack.c.l.s4 1983009808
      %v2275 = vunpack.c.0.s8 %v2274
      %v2276 = vlaneseq
      %v2277 = vshrl.u32 %v2276, 7
      %v2278 = vsub.s32 %v2275, %v2277
      %v2279 = vrot.slane %v2272, %v2278
      %v2280 = vcombine.low %v2050, %v2051
      %v2282 = vunpack.c.l.s4 1983009808
      %v2283 = vunpack.c.0.s8 %v2282
      %v2284 = vlaneseq
      %v2285 = vshrl.u32 %v2284, 7
      %v2286 = vsub.s32 %v2283, %v2285
      %v2287 = vrot.slane %v2280, %v2286
      %v2288 = vcombine.low %v2263, %v2271
      %v2289 = vcombine.high %v2263, %v2271
      %v2291 = vunpack.c.l.s4 1934713408
      %v2292 = vunpack.c.0.s8 %v2291
      %v2293 = vlaneseq
      %v2294 = vshrl.u32 %v2293, 7
      %v2295 = vsub.s32 %v2292, %v2294
      %v2296 = vrot.slane %v2288, %v2295
      %v2298 = vunpack.c.l.s4 1934713408
      %v2299 = vunpack.c.0.s8 %v2298
      %v2300 = vlaneseq
      %v2301 = vshrl.u32 %v2300, 7
      %v2302 = vsub.s32 %v2299, %v2301
      %v2303 = vrot.slane %v2289, %v2302
      %v2304 = vcombine.low %v2279, %v2287
      %v2305 = vcombine.high %v2279, %v2287
      %v2307 = vunpack.c.l.s4 1934713408
      %v2308 = vunpack.c.0.s8 %v2307
      %v2309 = vlaneseq
      %v2310 = vshrl.u32 %v2309, 7
      %v2311 = vsub.s32 %v2308, %v2310
      %v2312 = vrot.slane %v2304, %v2311
      %v2314 = vunpack.c.l.s4 1934713408
      %v2315 = vunpack.c.0.s8 %v2314
      %v2316 = vlaneseq
      %v2317 = vshrl.u32 %v2316, 7
      %v2318 = vsub.s32 %v2315, %v2317
      %v2319 = vrot.slane %v2305, %v2318
      %v2320 = vcombine.low %v2296, %v2312
      %v2321 = vcombine.high %v2296, %v2312
      %v2322 = vcombine.low %v2303, %v2319
      %v2323 = vcombine.high %v2303, %v2319
      %v2324 = vcombine.low %v2092, %v2099
      %v2326 = vunpack.c.l.s4 1983009808
      %v2327 = vunpack.c.0.s8 %v2326
      %v2328 = vlaneseq
      %v2329 = vshrl.u32 %v2328, 7
      %v2330 = vsub.s32 %v2327, %v2329
      %v2331 = vrot.slane %v2324, %v2330
      %v2332 = vcombine.low %v2116, %v2117
      %v2334 = vunpack.c.l.s4 1983009808
      %v2335 = vunpack.c.0.s8 %v2334
      %v2336 = vlaneseq
      %v2337 = vshrl.u32 %v2336, 7
      %v2338 = vsub.s32 %v2335, %v2337
      %v2339 = vrot.slane %v2332, %v2338
      %v2340 = vcombine.low %v2108, %v2115
      %v2342 = vunpack.c.l.s4 1983009808
      %v2343 = vunpack.c.0.s8 %v2342
      %v2344 = vlaneseq
      %v2345 = vshrl.u32 %v2344, 7
      %v2346 = vsub.s32 %v2343, %v2345
      %v2347 = vrot.slane %v2340, %v2346
      %v2348 = vcombine.low %v2118, %v2119
      %v2350 = vunpack.c.l.s4 1983009808
      %v2351 = vunpack.c.0.s8 %v2350
      %v2352 = vlaneseq
      %v2353 = vshrl.u32 %v2352, 7
      %v2354 = vsub.s32 %v2351, %v2353
      %v2355 = vrot.slane %v2348, %v2354
      %v2356 = vcombine.low %v2331, %v2339
      %v2357 = vcombine.high %v2331, %v2339
      %v2359 = vunpack.c.l.s4 1934713408
      %v2360 = vunpack.c.0.s8 %v2359
      %v2361 = vlaneseq
      %v2362 = vshrl.u32 %v2361, 7
      %v2363 = vsub.s32 %v2360, %v2362
      %v2364 = vrot.slane %v2356, %v2363
      %v2366 = vunpack.c.l.s4 1934713408
      %v2367 = vunpack.c.0.s8 %v2366
      %v2368 = vlaneseq
      %v2369 = vshrl.u32 %v2368, 7
      %v2370 = vsub.s32 %v2367, %v2369
      %v2371 = vrot.slane %v2357, %v2370
      %v2372 = vcombine.low %v2347, %v2355
      %v2373 = vcombine.high %v2347, %v2355
      %v2375 = vunpack.c.l.s4 1934713408
      %v2376 = vunpack.c.0.s8 %v2375
      %v2377 = vlaneseq
      %v2378 = vshrl.u32 %v2377, 7
      %v2379 = vsub.s32 %v2376, %v2378
      %v2380 = vrot.slane %v2372, %v2379
      %v2382 = vunpack.c.l.s4 1934713408
      %v2383 = vunpack.c.0.s8 %v2382
      %v2384 = vlaneseq
      %v2385 = vshrl.u32 %v2384, 7
      %v2386 = vsub.s32 %v2383, %v2385
      %v2387 = vrot.slane %v2373, %v2386
      %v2388 = vcombine.low %v2364, %v2380
      %v2389 = vcombine.high %v2364, %v2380
      %v2390 = vcombine.low %v2371, %v2387
      %v2391 = vcombine.high %v2371, %v2387
      %v2392 = vcombine.low %v2160, %v2167
      %v2394 = vunpack.c.l.s4 1983009808
      %v2395 = vunpack.c.0.s8 %v2394
      %v2396 = vlaneseq
      %v2397 = vshrl.u32 %v2396, 7
      %v2398 = vsub.s32 %v2395, %v2397
      %v2399 = vrot.slane %v2392, %v2398
      %v2400 = vcombine.low %v2184, %v2185
      %v2402 = vunpack.c.l.s4 1983009808
      %v2403 = vunpack.c.0.s8 %v2402
      %v2404 = vlaneseq
      %v2405 = vshrl.u32 %v2404, 7
      %v2406 = vsub.s32 %v2403, %v2405
      %v2407 = vrot.slane %v2400, %v2406
      %v2408 = vcombine.low %v2176, %v2183
      %v2410 = vunpack.c.l.s4 1983009808
      %v2411 = vunpack.c.0.s8 %v2410
      %v2412 = vlaneseq
      %v2413 = vshrl.u32 %v2412, 7
      %v2414 = vsub.s32 %v2411, %v2413
      %v2415 = vrot.slane %v2408, %v2414
      %v2416 = vcombine.low %v2186, %v2187
      %v2418 = vunpack.c.l.s4 1983009808
      %v2419 = vunpack.c.0.s8 %v2418
      %v2420 = vlaneseq
      %v2421 = vshrl.u32 %v2420, 7
      %v2422 = vsub.s32 %v2419, %v2421
      %v2423 = vrot.slane %v2416, %v2422
      %v2424 = vcombine.low %v2399, %v2407
      %v2425 = vcombine.high %v2399, %v2407
      %v2427 = vunpack.c.l.s4 1934713408
      %v2428 = vunpack.c.0.s8 %v2427
      %v2429 = vlaneseq
      %v2430 = vshrl.u32 %v2429, 7
      %v2431 = vsub.s32 %v2428, %v2430
      %v2432 = vrot.slane %v2424, %v2431
      %v2434 = vunpack.c.l.s4 1934713408
      %v2435 = vunpack.c.0.s8 %v2434
      %v2436 = vlaneseq
      %v2437 = vshrl.u32 %v2436, 7
      %v2438 = vsub.s32 %v2435, %v2437
      %v2439 = vrot.slane %v2425, %v2438
      %v2440 = vcombine.low %v2415, %v2423
      %v2441 = vcombine.high %v2415, %v2423
      %v2443 = vunpack.c.l.s4 1934713408
      %v2444 = vunpack.c.0.s8 %v2443
      %v2445 = vlaneseq
      %v2446 = vshrl.u32 %v2445, 7
      %v2447 = vsub.s32 %v2444, %v2446
      %v2448 = vrot.slane %v2440, %v2447
      %v2450 = vunpack.c.l.s4 1934713408
      %v2451 = vunpack.c.0.s8 %v2450
      %v2452 = vlaneseq
      %v2453 = vshrl.u32 %v2452, 7
      %v2454 = vsub.s32 %v2451, %v2453
      %v2455 = vrot.slane %v2441, %v2454
      %v2456 = vcombine.low %v2432, %v2448
      %v2457 = vcombine.high %v2432, %v2448
      %v2458 = vcombine.low %v2439, %v2455
      %v2459 = vcombine.high %v2439, %v2455
      %v2460 = vpack.c.bf16 %v2320, %v2252
      %v2461 = vpack.c.bf16 %v2321, %v2253
      %v2462 = vpack.c.bf16 %v2322, %v2254
      %v2463 = vpack.c.bf16 %v2323, %v2255
      %v2464 = vpack.c.bf16 %v2456, %v2388
      %v2465 = vpack.c.bf16 %v2457, %v2389
      %v2466 = vpack.c.bf16 %v2458, %v2390
      %v2467 = vpack.c.bf16 %v2459, %v2391
      %v2468 = vlaneseq
      %v2469 = vshrl.u32 %v2468, 7
      %v2470 = vsub.s32 2, %v2469
      %v2471 = vrot.slane %v1045, %v2470
      %v2472 = vmul.f32 %v1238, %v2471
      %v2473 = vmul.f32 %v1241, %v2471
      %v2474 = vmul.f32 %v1246, %v2471
      %v2475 = vmul.f32 %v1249, %v2471
      %v2476 = vlaneseq
      %v2477 = vshrl.u32 %v2476, 7
      %v2478 = vsub.s32 1, %v2477
      %v2479 = vrot.slane %v1045, %v2478
      %v2480 = vadd.f32 %v2472, %v2479
      %v2481 = vadd.f32 %v2473, %v2479
      %v2482 = vadd.f32 %v2474, %v2479
      %v2483 = vadd.f32 %v2475, %v2479
      %2488 = vrot.lane.b32.xlu0 %v2480, 96
      %v2489 = vpop.permute.xlu0 %2488
      %2490 = vrot.lane.b32.xlu0 %v2481, 96
      %v2491 = vpop.permute.xlu0 %2490
      %2492 = vrot.lane.b32.xlu0 %v2482, 96
      %v2493 = vpop.permute.xlu0 %2492
      %2494 = vrot.lane.b32.xlu0 %v2483, 96
      %v2495 = vpop.permute.xlu0 %2494
      %2500 = vrot.lane.b32.xlu0 %v2480, 64
      %v2501 = vpop.permute.xlu0 %2500
      %2502 = vrot.lane.b32.xlu0 %v2481, 64
      %v2503 = vpop.permute.xlu0 %2502
      %2504 = vrot.lane.b32.xlu0 %v2482, 64
      %v2505 = vpop.permute.xlu0 %2504
      %2506 = vrot.lane.b32.xlu0 %v2483, 64
      %v2507 = vpop.permute.xlu0 %2506
      %2512 = vrot.lane.b32.xlu0 %v2480, 32
      %v2513 = vpop.permute.xlu0 %2512
      %2514 = vrot.lane.b32.xlu0 %v2481, 32
      %v2515 = vpop.permute.xlu0 %2514
      %2516 = vrot.lane.b32.xlu0 %v2482, 32
      %v2517 = vpop.permute.xlu0 %2516
      %2518 = vrot.lane.b32.xlu0 %v2483, 32
      %v2519 = vpop.permute.xlu0 %2518
      %v2524 = vcombine.low %v2480, %v2501
      %v2525 = vcombine.high %v2480, %v2501
      %v2527 = vunpack.c.l.s4 1983009808
      %v2528 = vunpack.c.0.s8 %v2527
      %v2529 = vlaneseq
      %v2530 = vshrl.u32 %v2529, 7
      %v2531 = vsub.s32 %v2528, %v2530
      %v2532 = vrot.slane %v2524, %v2531
      %v2534 = vunpack.c.l.s4 1983009808
      %v2535 = vunpack.c.0.s8 %v2534
      %v2536 = vlaneseq
      %v2537 = vshrl.u32 %v2536, 7
      %v2538 = vsub.s32 %v2535, %v2537
      %v2539 = vrot.slane %v2525, %v2538
      %v2540 = vcombine.low %v2489, %v2513
      %v2541 = vcombine.high %v2489, %v2513
      %v2543 = vunpack.c.l.s4 1983009808
      %v2544 = vunpack.c.0.s8 %v2543
      %v2545 = vlaneseq
      %v2546 = vshrl.u32 %v2545, 7
      %v2547 = vsub.s32 %v2544, %v2546
      %v2548 = vrot.slane %v2540, %v2547
      %v2550 = vunpack.c.l.s4 1983009808
      %v2551 = vunpack.c.0.s8 %v2550
      %v2552 = vlaneseq
      %v2553 = vshrl.u32 %v2552, 7
      %v2554 = vsub.s32 %v2551, %v2553
      %v2555 = vrot.slane %v2541, %v2554
      %v2556 = vcombine.low %v2532, %v2548
      %v2557 = vcombine.high %v2532, %v2548
      %v2559 = vunpack.c.l.s4 1934713408
      %v2560 = vunpack.c.0.s8 %v2559
      %v2561 = vlaneseq
      %v2562 = vshrl.u32 %v2561, 7
      %v2563 = vsub.s32 %v2560, %v2562
      %v2564 = vrot.slane %v2556, %v2563
      %v2566 = vunpack.c.l.s4 1934713408
      %v2567 = vunpack.c.0.s8 %v2566
      %v2568 = vlaneseq
      %v2569 = vshrl.u32 %v2568, 7
      %v2570 = vsub.s32 %v2567, %v2569
      %v2571 = vrot.slane %v2557, %v2570
      %v2572 = vcombine.low %v2539, %v2555
      %v2573 = vcombine.high %v2539, %v2555
      %v2575 = vunpack.c.l.s4 1934713408
      %v2576 = vunpack.c.0.s8 %v2575
      %v2577 = vlaneseq
      %v2578 = vshrl.u32 %v2577, 7
      %v2579 = vsub.s32 %v2576, %v2578
      %v2580 = vrot.slane %v2572, %v2579
      %v2582 = vunpack.c.l.s4 1934713408
      %v2583 = vunpack.c.0.s8 %v2582
      %v2584 = vlaneseq
      %v2585 = vshrl.u32 %v2584, 7
      %v2586 = vsub.s32 %v2583, %v2585
      %v2587 = vrot.slane %v2573, %v2586
      %v2588 = vcombine.high %v2564, 0.0
      %v2589 = vcombine.high %v2571, 0.0
      %v2590 = vcombine.high %v2580, 0.0
      %v2591 = vcombine.high %v2587, 0.0
      %v2592 = vcombine.low %v2481, %v2503
      %v2593 = vcombine.high %v2481, %v2503
      %v2595 = vunpack.c.l.s4 1983009808
      %v2596 = vunpack.c.0.s8 %v2595
      %v2597 = vlaneseq
      %v2598 = vshrl.u32 %v2597, 7
      %v2599 = vsub.s32 %v2596, %v2598
      %v2600 = vrot.slane %v2592, %v2599
      %v2602 = vunpack.c.l.s4 1983009808
      %v2603 = vunpack.c.0.s8 %v2602
      %v2604 = vlaneseq
      %v2605 = vshrl.u32 %v2604, 7
      %v2606 = vsub.s32 %v2603, %v2605
      %v2607 = vrot.slane %v2593, %v2606
      %v2608 = vcombine.low %v2491, %v2515
      %v2609 = vcombine.high %v2491, %v2515
      %v2611 = vunpack.c.l.s4 1983009808
      %v2612 = vunpack.c.0.s8 %v2611
      %v2613 = vlaneseq
      %v2614 = vshrl.u32 %v2613, 7
      %v2615 = vsub.s32 %v2612, %v2614
      %v2616 = vrot.slane %v2608, %v2615
      %v2618 = vunpack.c.l.s4 1983009808
      %v2619 = vunpack.c.0.s8 %v2618
      %v2620 = vlaneseq
      %v2621 = vshrl.u32 %v2620, 7
      %v2622 = vsub.s32 %v2619, %v2621
      %v2623 = vrot.slane %v2609, %v2622
      %v2624 = vcombine.low %v2600, %v2616
      %v2625 = vcombine.high %v2600, %v2616
      %v2627 = vunpack.c.l.s4 1934713408
      %v2628 = vunpack.c.0.s8 %v2627
      %v2629 = vlaneseq
      %v2630 = vshrl.u32 %v2629, 7
      %v2631 = vsub.s32 %v2628, %v2630
      %v2632 = vrot.slane %v2624, %v2631
      %v2634 = vunpack.c.l.s4 1934713408
      %v2635 = vunpack.c.0.s8 %v2634
      %v2636 = vlaneseq
      %v2637 = vshrl.u32 %v2636, 7
      %v2638 = vsub.s32 %v2635, %v2637
      %v2639 = vrot.slane %v2625, %v2638
      %v2640 = vcombine.low %v2607, %v2623
      %v2641 = vcombine.high %v2607, %v2623
      %v2643 = vunpack.c.l.s4 1934713408
      %v2644 = vunpack.c.0.s8 %v2643
      %v2645 = vlaneseq
      %v2646 = vshrl.u32 %v2645, 7
      %v2647 = vsub.s32 %v2644, %v2646
      %v2648 = vrot.slane %v2640, %v2647
      %v2650 = vunpack.c.l.s4 1934713408
      %v2651 = vunpack.c.0.s8 %v2650
      %v2652 = vlaneseq
      %v2653 = vshrl.u32 %v2652, 7
      %v2654 = vsub.s32 %v2651, %v2653
      %v2655 = vrot.slane %v2641, %v2654
      %v2656 = vcombine.high %v2632, 0.0
      %v2657 = vcombine.high %v2639, 0.0
      %v2658 = vcombine.high %v2648, 0.0
      %v2659 = vcombine.high %v2655, 0.0
      %v2660 = vcombine.low %v2482, %v2505
      %v2661 = vcombine.high %v2482, %v2505
      %v2663 = vunpack.c.l.s4 1983009808
      %v2664 = vunpack.c.0.s8 %v2663
      %v2665 = vlaneseq
      %v2666 = vshrl.u32 %v2665, 7
      %v2667 = vsub.s32 %v2664, %v2666
      %v2668 = vrot.slane %v2660, %v2667
      %v2670 = vunpack.c.l.s4 1983009808
      %v2671 = vunpack.c.0.s8 %v2670
      %v2672 = vlaneseq
      %v2673 = vshrl.u32 %v2672, 7
      %v2674 = vsub.s32 %v2671, %v2673
      %v2675 = vrot.slane %v2661, %v2674
      %v2676 = vcombine.low %v2493, %v2517
      %v2677 = vcombine.high %v2493, %v2517
      %v2679 = vunpack.c.l.s4 1983009808
      %v2680 = vunpack.c.0.s8 %v2679
      %v2681 = vlaneseq
      %v2682 = vshrl.u32 %v2681, 7
      %v2683 = vsub.s32 %v2680, %v2682
      %v2684 = vrot.slane %v2676, %v2683
      %v2686 = vunpack.c.l.s4 1983009808
      %v2687 = vunpack.c.0.s8 %v2686
      %v2688 = vlaneseq
      %v2689 = vshrl.u32 %v2688, 7
      %v2690 = vsub.s32 %v2687, %v2689
      %v2691 = vrot.slane %v2677, %v2690
      %v2692 = vcombine.low %v2668, %v2684
      %v2693 = vcombine.high %v2668, %v2684
      %v2695 = vunpack.c.l.s4 1934713408
      %v2696 = vunpack.c.0.s8 %v2695
      %v2697 = vlaneseq
      %v2698 = vshrl.u32 %v2697, 7
      %v2699 = vsub.s32 %v2696, %v2698
      %v2700 = vrot.slane %v2692, %v2699
      %v2702 = vunpack.c.l.s4 1934713408
      %v2703 = vunpack.c.0.s8 %v2702
      %v2704 = vlaneseq
      %v2705 = vshrl.u32 %v2704, 7
      %v2706 = vsub.s32 %v2703, %v2705
      %v2707 = vrot.slane %v2693, %v2706
      %v2708 = vcombine.low %v2675, %v2691
      %v2709 = vcombine.high %v2675, %v2691
      %v2711 = vunpack.c.l.s4 1934713408
      %v2712 = vunpack.c.0.s8 %v2711
      %v2713 = vlaneseq
      %v2714 = vshrl.u32 %v2713, 7
      %v2715 = vsub.s32 %v2712, %v2714
      %v2716 = vrot.slane %v2708, %v2715
      %v2718 = vunpack.c.l.s4 1934713408
      %v2719 = vunpack.c.0.s8 %v2718
      %v2720 = vlaneseq
      %v2721 = vshrl.u32 %v2720, 7
      %v2722 = vsub.s32 %v2719, %v2721
      %v2723 = vrot.slane %v2709, %v2722
      %v2724 = vcombine.high %v2700, 0.0
      %v2725 = vcombine.high %v2707, 0.0
      %v2726 = vcombine.high %v2716, 0.0
      %v2727 = vcombine.high %v2723, 0.0
      %v2728 = vcombine.low %v2483, %v2507
      %v2729 = vcombine.high %v2483, %v2507
      %v2731 = vunpack.c.l.s4 1983009808
      %v2732 = vunpack.c.0.s8 %v2731
      %v2733 = vlaneseq
      %v2734 = vshrl.u32 %v2733, 7
      %v2735 = vsub.s32 %v2732, %v2734
      %v2736 = vrot.slane %v2728, %v2735
      %v2738 = vunpack.c.l.s4 1983009808
      %v2739 = vunpack.c.0.s8 %v2738
      %v2740 = vlaneseq
      %v2741 = vshrl.u32 %v2740, 7
      %v2742 = vsub.s32 %v2739, %v2741
      %v2743 = vrot.slane %v2729, %v2742
      %v2744 = vcombine.low %v2495, %v2519
      %v2745 = vcombine.high %v2495, %v2519
      %v2747 = vunpack.c.l.s4 1983009808
      %v2748 = vunpack.c.0.s8 %v2747
      %v2749 = vlaneseq
      %v2750 = vshrl.u32 %v2749, 7
      %v2751 = vsub.s32 %v2748, %v2750
      %v2752 = vrot.slane %v2744, %v2751
      %v2754 = vunpack.c.l.s4 1983009808
      %v2755 = vunpack.c.0.s8 %v2754
      %v2756 = vlaneseq
      %v2757 = vshrl.u32 %v2756, 7
      %v2758 = vsub.s32 %v2755, %v2757
      %v2759 = vrot.slane %v2745, %v2758
      %v2760 = vcombine.low %v2736, %v2752
      %v2761 = vcombine.high %v2736, %v2752
      %v2763 = vunpack.c.l.s4 1934713408
      %v2764 = vunpack.c.0.s8 %v2763
      %v2765 = vlaneseq
      %v2766 = vshrl.u32 %v2765, 7
      %v2767 = vsub.s32 %v2764, %v2766
      %v2768 = vrot.slane %v2760, %v2767
      %v2770 = vunpack.c.l.s4 1934713408
      %v2771 = vunpack.c.0.s8 %v2770
      %v2772 = vlaneseq
      %v2773 = vshrl.u32 %v2772, 7
      %v2774 = vsub.s32 %v2771, %v2773
      %v2775 = vrot.slane %v2761, %v2774
      %v2776 = vcombine.low %v2743, %v2759
      %v2777 = vcombine.high %v2743, %v2759
      %v2779 = vunpack.c.l.s4 1934713408
      %v2780 = vunpack.c.0.s8 %v2779
      %v2781 = vlaneseq
      %v2782 = vshrl.u32 %v2781, 7
      %v2783 = vsub.s32 %v2780, %v2782
      %v2784 = vrot.slane %v2776, %v2783
      %v2786 = vunpack.c.l.s4 1934713408
      %v2787 = vunpack.c.0.s8 %v2786
      %v2788 = vlaneseq
      %v2789 = vshrl.u32 %v2788, 7
      %v2790 = vsub.s32 %v2787, %v2789
      %v2791 = vrot.slane %v2777, %v2790
      %v2792 = vcombine.high %v2768, 0.0
      %v2793 = vcombine.high %v2775, 0.0
      %v2794 = vcombine.high %v2784, 0.0
      %v2795 = vcombine.high %v2791, 0.0
      %v2796 = vcombine.low %v2564, %v2571
      %v2798 = vunpack.c.l.s4 1983009808
      %v2799 = vunpack.c.0.s8 %v2798
      %v2800 = vlaneseq
      %v2801 = vshrl.u32 %v2800, 7
      %v2802 = vsub.s32 %v2799, %v2801
      %v2803 = vrot.slane %v2796, %v2802
      %v2804 = vcombine.low %v2588, %v2589
      %v2806 = vunpack.c.l.s4 1983009808
      %v2807 = vunpack.c.0.s8 %v2806
      %v2808 = vlaneseq
      %v2809 = vshrl.u32 %v2808, 7
      %v2810 = vsub.s32 %v2807, %v2809
      %v2811 = vrot.slane %v2804, %v2810
      %v2812 = vcombine.low %v2580, %v2587
      %v2814 = vunpack.c.l.s4 1983009808
      %v2815 = vunpack.c.0.s8 %v2814
      %v2816 = vlaneseq
      %v2817 = vshrl.u32 %v2816, 7
      %v2818 = vsub.s32 %v2815, %v2817
      %v2819 = vrot.slane %v2812, %v2818
      %v2820 = vcombine.low %v2590, %v2591
      %v2822 = vunpack.c.l.s4 1983009808
      %v2823 = vunpack.c.0.s8 %v2822
      %v2824 = vlaneseq
      %v2825 = vshrl.u32 %v2824, 7
      %v2826 = vsub.s32 %v2823, %v2825
      %v2827 = vrot.slane %v2820, %v2826
      %v2828 = vcombine.low %v2803, %v2811
      %v2829 = vcombine.high %v2803, %v2811
      %v2831 = vunpack.c.l.s4 1934713408
      %v2832 = vunpack.c.0.s8 %v2831
      %v2833 = vlaneseq
      %v2834 = vshrl.u32 %v2833, 7
      %v2835 = vsub.s32 %v2832, %v2834
      %v2836 = vrot.slane %v2828, %v2835
      %v2838 = vunpack.c.l.s4 1934713408
      %v2839 = vunpack.c.0.s8 %v2838
      %v2840 = vlaneseq
      %v2841 = vshrl.u32 %v2840, 7
      %v2842 = vsub.s32 %v2839, %v2841
      %v2843 = vrot.slane %v2829, %v2842
      %v2844 = vcombine.low %v2819, %v2827
      %v2845 = vcombine.high %v2819, %v2827
      %v2847 = vunpack.c.l.s4 1934713408
      %v2848 = vunpack.c.0.s8 %v2847
      %v2849 = vlaneseq
      %v2850 = vshrl.u32 %v2849, 7
      %v2851 = vsub.s32 %v2848, %v2850
      %v2852 = vrot.slane %v2844, %v2851
      %v2854 = vunpack.c.l.s4 1934713408
      %v2855 = vunpack.c.0.s8 %v2854
      %v2856 = vlaneseq
      %v2857 = vshrl.u32 %v2856, 7
      %v2858 = vsub.s32 %v2855, %v2857
      %v2859 = vrot.slane %v2845, %v2858
      %v2860 = vcombine.low %v2836, %v2852
      %v2861 = vcombine.high %v2836, %v2852
      %v2862 = vcombine.low %v2843, %v2859
      %v2863 = vcombine.high %v2843, %v2859
      %v2864 = vcombine.low %v2632, %v2639
      %v2866 = vunpack.c.l.s4 1983009808
      %v2867 = vunpack.c.0.s8 %v2866
      %v2868 = vlaneseq
      %v2869 = vshrl.u32 %v2868, 7
      %v2870 = vsub.s32 %v2867, %v2869
      %v2871 = vrot.slane %v2864, %v2870
      %v2872 = vcombine.low %v2656, %v2657
      %v2874 = vunpack.c.l.s4 1983009808
      %v2875 = vunpack.c.0.s8 %v2874
      %v2876 = vlaneseq
      %v2877 = vshrl.u32 %v2876, 7
      %v2878 = vsub.s32 %v2875, %v2877
      %v2879 = vrot.slane %v2872, %v2878
      %v2880 = vcombine.low %v2648, %v2655
      %v2882 = vunpack.c.l.s4 1983009808
      %v2883 = vunpack.c.0.s8 %v2882
      %v2884 = vlaneseq
      %v2885 = vshrl.u32 %v2884, 7
      %v2886 = vsub.s32 %v2883, %v2885
      %v2887 = vrot.slane %v2880, %v2886
      %v2888 = vcombine.low %v2658, %v2659
      %v2890 = vunpack.c.l.s4 1983009808
      %v2891 = vunpack.c.0.s8 %v2890
      %v2892 = vlaneseq
      %v2893 = vshrl.u32 %v2892, 7
      %v2894 = vsub.s32 %v2891, %v2893
      %v2895 = vrot.slane %v2888, %v2894
      %v2896 = vcombine.low %v2871, %v2879
      %v2897 = vcombine.high %v2871, %v2879
      %v2899 = vunpack.c.l.s4 1934713408
      %v2900 = vunpack.c.0.s8 %v2899
      %v2901 = vlaneseq
      %v2902 = vshrl.u32 %v2901, 7
      %v2903 = vsub.s32 %v2900, %v2902
      %v2904 = vrot.slane %v2896, %v2903
      %v2906 = vunpack.c.l.s4 1934713408
      %v2907 = vunpack.c.0.s8 %v2906
      %v2908 = vlaneseq
      %v2909 = vshrl.u32 %v2908, 7
      %v2910 = vsub.s32 %v2907, %v2909
      %v2911 = vrot.slane %v2897, %v2910
      %v2912 = vcombine.low %v2887, %v2895
      %v2913 = vcombine.high %v2887, %v2895
      %v2915 = vunpack.c.l.s4 1934713408
      %v2916 = vunpack.c.0.s8 %v2915
      %v2917 = vlaneseq
      %v2918 = vshrl.u32 %v2917, 7
      %v2919 = vsub.s32 %v2916, %v2918
      %v2920 = vrot.slane %v2912, %v2919
      %v2922 = vunpack.c.l.s4 1934713408
      %v2923 = vunpack.c.0.s8 %v2922
      %v2924 = vlaneseq
      %v2925 = vshrl.u32 %v2924, 7
      %v2926 = vsub.s32 %v2923, %v2925
      %v2927 = vrot.slane %v2913, %v2926
      %v2928 = vcombine.low %v2904, %v2920
      %v2929 = vcombine.high %v2904, %v2920
      %v2930 = vcombine.low %v2911, %v2927
      %v2931 = vcombine.high %v2911, %v2927
      %v2932 = vcombine.low %v2700, %v2707
      %v2934 = vunpack.c.l.s4 1983009808
      %v2935 = vunpack.c.0.s8 %v2934
      %v2936 = vlaneseq
      %v2937 = vshrl.u32 %v2936, 7
      %v2938 = vsub.s32 %v2935, %v2937
      %v2939 = vrot.slane %v2932, %v2938
      %v2940 = vcombine.low %v2724, %v2725
      %v2942 = vunpack.c.l.s4 1983009808
      %v2943 = vunpack.c.0.s8 %v2942
      %v2944 = vlaneseq
      %v2945 = vshrl.u32 %v2944, 7
      %v2946 = vsub.s32 %v2943, %v2945
      %v2947 = vrot.slane %v2940, %v2946
      %v2948 = vcombine.low %v2716, %v2723
      %v2950 = vunpack.c.l.s4 1983009808
      %v2951 = vunpack.c.0.s8 %v2950
      %v2952 = vlaneseq
      %v2953 = vshrl.u32 %v2952, 7
      %v2954 = vsub.s32 %v2951, %v2953
      %v2955 = vrot.slane %v2948, %v2954
      %v2956 = vcombine.low %v2726, %v2727
      %v2958 = vunpack.c.l.s4 1983009808
      %v2959 = vunpack.c.0.s8 %v2958
      %v2960 = vlaneseq
      %v2961 = vshrl.u32 %v2960, 7
      %v2962 = vsub.s32 %v2959, %v2961
      %v2963 = vrot.slane %v2956, %v2962
      %v2964 = vcombine.low %v2939, %v2947
      %v2965 = vcombine.high %v2939, %v2947
      %v2967 = vunpack.c.l.s4 1934713408
      %v2968 = vunpack.c.0.s8 %v2967
      %v2969 = vlaneseq
      %v2970 = vshrl.u32 %v2969, 7
      %v2971 = vsub.s32 %v2968, %v2970
      %v2972 = vrot.slane %v2964, %v2971
      %v2974 = vunpack.c.l.s4 1934713408
      %v2975 = vunpack.c.0.s8 %v2974
      %v2976 = vlaneseq
      %v2977 = vshrl.u32 %v2976, 7
      %v2978 = vsub.s32 %v2975, %v2977
      %v2979 = vrot.slane %v2965, %v2978
      %v2980 = vcombine.low %v2955, %v2963
      %v2981 = vcombine.high %v2955, %v2963
      %v2983 = vunpack.c.l.s4 1934713408
      %v2984 = vunpack.c.0.s8 %v2983
      %v2985 = vlaneseq
      %v2986 = vshrl.u32 %v2985, 7
      %v2987 = vsub.s32 %v2984, %v2986
      %v2988 = vrot.slane %v2980, %v2987
      %v2990 = vunpack.c.l.s4 1934713408
      %v2991 = vunpack.c.0.s8 %v2990
      %v2992 = vlaneseq
      %v2993 = vshrl.u32 %v2992, 7
      %v2994 = vsub.s32 %v2991, %v2993
      %v2995 = vrot.slane %v2981, %v2994
      %v2996 = vcombine.low %v2972, %v2988
      %v2997 = vcombine.high %v2972, %v2988
      %v2998 = vcombine.low %v2979, %v2995
      %v2999 = vcombine.high %v2979, %v2995
      %v3000 = vcombine.low %v2768, %v2775
      %v3002 = vunpack.c.l.s4 1983009808
      %v3003 = vunpack.c.0.s8 %v3002
      %v3004 = vlaneseq
      %v3005 = vshrl.u32 %v3004, 7
      %v3006 = vsub.s32 %v3003, %v3005
      %v3007 = vrot.slane %v3000, %v3006
      %v3008 = vcombine.low %v2792, %v2793
      %v3010 = vunpack.c.l.s4 1983009808
      %v3011 = vunpack.c.0.s8 %v3010
      %v3012 = vlaneseq
      %v3013 = vshrl.u32 %v3012, 7
      %v3014 = vsub.s32 %v3011, %v3013
      %v3015 = vrot.slane %v3008, %v3014
      %v3016 = vcombine.low %v2784, %v2791
      %v3018 = vunpack.c.l.s4 1983009808
      %v3019 = vunpack.c.0.s8 %v3018
      %v3020 = vlaneseq
      %v3021 = vshrl.u32 %v3020, 7
      %v3022 = vsub.s32 %v3019, %v3021
      %v3023 = vrot.slane %v3016, %v3022
      %v3024 = vcombine.low %v2794, %v2795
      %v3026 = vunpack.c.l.s4 1983009808
      %v3027 = vunpack.c.0.s8 %v3026
      %v3028 = vlaneseq
      %v3029 = vshrl.u32 %v3028, 7
      %v3030 = vsub.s32 %v3027, %v3029
      %v3031 = vrot.slane %v3024, %v3030
      %v3032 = vcombine.low %v3007, %v3015
      %v3033 = vcombine.high %v3007, %v3015
      %v3035 = vunpack.c.l.s4 1934713408
      %v3036 = vunpack.c.0.s8 %v3035
      %v3037 = vlaneseq
      %v3038 = vshrl.u32 %v3037, 7
      %v3039 = vsub.s32 %v3036, %v3038
      %v3040 = vrot.slane %v3032, %v3039
      %v3042 = vunpack.c.l.s4 1934713408
      %v3043 = vunpack.c.0.s8 %v3042
      %v3044 = vlaneseq
      %v3045 = vshrl.u32 %v3044, 7
      %v3046 = vsub.s32 %v3043, %v3045
      %v3047 = vrot.slane %v3033, %v3046
      %v3048 = vcombine.low %v3023, %v3031
      %v3049 = vcombine.high %v3023, %v3031
      %v3051 = vunpack.c.l.s4 1934713408
      %v3052 = vunpack.c.0.s8 %v3051
      %v3053 = vlaneseq
      %v3054 = vshrl.u32 %v3053, 7
      %v3055 = vsub.s32 %v3052, %v3054
      %v3056 = vrot.slane %v3048, %v3055
      %v3058 = vunpack.c.l.s4 1934713408
      %v3059 = vunpack.c.0.s8 %v3058
      %v3060 = vlaneseq
      %v3061 = vshrl.u32 %v3060, 7
      %v3062 = vsub.s32 %v3059, %v3061
      %v3063 = vrot.slane %v3049, %v3062
      %v3064 = vcombine.low %v3040, %v3056
      %v3065 = vcombine.high %v3040, %v3056
      %v3066 = vcombine.low %v3047, %v3063
      %v3067 = vcombine.high %v3047, %v3063
      %v3068 = vpack.c.bf16 %v2928, %v2860
      %v3069 = vpack.c.bf16 %v2929, %v2861
      %v3070 = vpack.c.bf16 %v2930, %v2862
      %v3071 = vpack.c.bf16 %v2931, %v2863
      %v3072 = vpack.c.bf16 %v3064, %v2996
      %v3073 = vpack.c.bf16 %v3065, %v2997
      %v3074 = vpack.c.bf16 %v3066, %v2998
      %v3075 = vpack.c.bf16 %v3067, %v2999
      %vm3076 = vcmask 261120
      %v3078 = vsel %vm3076, %v1852, 0
      %v3081 = vsel %vm3076, %v2460, 0
      %3083 = vmatprep.subr.bf16.mxu0 0
      %3084 = vmatpush1.bf16.xpose.msra.mxu0 %v3081
      %3085 = vmatprep.subr.bf16.mxu0 0
      %3086 = vmatpush1.bf16.xpose.msra.mxu0 0
      %3087 = vmatprep.subr.bf16.mxu0 0
      %3088 = vmatpush1.bf16.xpose.msra.mxu0 0
      %3089 = vmatprep.subr.bf16.mxu0 0
      %3090 = vmatpush1.bf16.xpose.msra.mxu0 0
      %3091 = vmatprep.subr.bf16.mxu0 0
      %3092 = vmatpush1.bf16.xpose.msra.mxu0 0
      %3093 = vmatprep.subr.bf16.mxu0 0
      %3094 = vmatpush1.bf16.xpose.msra.mxu0 0
      %3095 = vmatprep.subr.bf16.mxu0 0
      %3096 = vmatpush1.bf16.xpose.msra.mxu0 0
      %3097 = vmatprep.subr.bf16.mxu0 0
      %3098 = vmatpush1.bf16.xpose.msra.mxu0 0
      %3099 = vmatprep.subr.bf16.mxu0 0
      %3100 = vmatpush1.bf16.xpose.msra.mxu0 0
      %3101 = vmatprep.subr.bf16.mxu0 0
      %3102 = vmatpush1.bf16.xpose.msra.mxu0 0
      %3103 = vmatprep.subr.bf16.mxu0 0
      %3104 = vmatpush1.bf16.xpose.msra.mxu0 0
      %3105 = vmatprep.subr.bf16.mxu0 0
      %3106 = vmatpush1.bf16.xpose.msra.mxu0 0
      %3107 = vmatprep.subr.bf16.mxu0 0
      %3108 = vmatpush1.bf16.xpose.msra.mxu0 0
      %3109 = vmatprep.subr.bf16.mxu0 0
      %3110 = vmatpush1.bf16.xpose.msra.mxu0 0
      %3111 = vmatprep.subr.bf16.mxu0 0
      %3112 = vmatpush1.bf16.xpose.msra.mxu0 0
      %3113 = vmatprep.subr.bf16.mxu0 0
      %3114 = vmatpush1.bf16.xpose.msra.mxu0 0
      %3115 = vmatprep.mubr.bf16.mxu0 0
      %3116 = vmatmul.mubr.bf16.gmra.mrb[0].mxu0 %v3078
      %v3117 = vpop.f32.mrb[0].mxu0
      %v3118 = vadd.f32 0.0, %v3117
      %v3119 = vpop.f32.mrb[0].mxu0
      %v3120 = vpop.f32.mrb[0].mxu0
      %v3121 = vadd.f32 0.0, %v3120
      %v3122 = vpop.f32.mrb[0].mxu0
      %3123 = vdwg.mxu0
      %v3125 = vsel %vm3076, %v1853, 0
      %v3128 = vsel %vm3076, %v2461, 0
      %3130 = vmatprep.subr.bf16.mxu0 0
      %3131 = vmatpush1.bf16.xpose.msra.mxu0 %v3128
      %3132 = vmatprep.subr.bf16.mxu0 0
      %3133 = vmatpush1.bf16.xpose.msra.mxu0 0
      %3134 = vmatprep.subr.bf16.mxu0 0
      %3135 = vmatpush1.bf16.xpose.msra.mxu0 0
      %3136 = vmatprep.subr.bf16.mxu0 0
      %3137 = vmatpush1.bf16.xpose.msra.mxu0 0
      %3138 = vmatprep.subr.bf16.mxu0 0
      %3139 = vmatpush1.bf16.xpose.msra.mxu0 0
      %3140 = vmatprep.subr.bf16.mxu0 0
      %3141 = vmatpush1.bf16.xpose.msra.mxu0 0
      %3142 = vmatprep.subr.bf16.mxu0 0
      %3143 = vmatpush1.bf16.xpose.msra.mxu0 0
      %3144 = vmatprep.subr.bf16.mxu0 0
      %3145 = vmatpush1.bf16.xpose.msra.mxu0 0
      %3146 = vmatprep.subr.bf16.mxu0 0
      %3147 = vmatpush1.bf16.xpose.msra.mxu0 0
      %3148 = vmatprep.subr.bf16.mxu0 0
      %3149 = vmatpush1.bf16.xpose.msra.mxu0 0
      %3150 = vmatprep.subr.bf16.mxu0 0
      %3151 = vmatpush1.bf16.xpose.msra.mxu0 0
      %3152 = vmatprep.subr.bf16.mxu0 0
      %3153 = vmatpush1.bf16.xpose.msra.mxu0 0
      %3154 = vmatprep.subr.bf16.mxu0 0
      %3155 = vmatpush1.bf16.xpose.msra.mxu0 0
      %3156 = vmatprep.subr.bf16.mxu0 0
      %3157 = vmatpush1.bf16.xpose.msra.mxu0 0
      %3158 = vmatprep.subr.bf16.mxu0 0
      %3159 = vmatpush1.bf16.xpose.msra.mxu0 0
      %3160 = vmatprep.subr.bf16.mxu0 0
      %3161 = vmatpush1.bf16.xpose.msra.mxu0 0
      %3162 = vmatprep.mubr.bf16.mxu0 0
      %3163 = vmatmul.mubr.bf16.gmra.mrb[0].mxu0 %v3125
      %v3164 = vpop.f32.mrb[0].mxu0
      %v3165 = vadd.f32 0.0, %v3164
      %v3166 = vpop.f32.mrb[0].mxu0
      %v3167 = vpop.f32.mrb[0].mxu0
      %v3168 = vadd.f32 0.0, %v3167
      %v3169 = vpop.f32.mrb[0].mxu0
      %3170 = vdwg.mxu0
      %v3172 = vsel %vm3076, %v1854, 0
      %v3175 = vsel %vm3076, %v2462, 0
      %3177 = vmatprep.subr.bf16.mxu0 0
      %3178 = vmatpush1.bf16.xpose.msra.mxu0 %v3175
      %3179 = vmatprep.subr.bf16.mxu0 0
      %3180 = vmatpush1.bf16.xpose.msra.mxu0 0
      %3181 = vmatprep.subr.bf16.mxu0 0
      %3182 = vmatpush1.bf16.xpose.msra.mxu0 0
      %3183 = vmatprep.subr.bf16.mxu0 0
      %3184 = vmatpush1.bf16.xpose.msra.mxu0 0
      %3185 = vmatprep.subr.bf16.mxu0 0
      %3186 = vmatpush1.bf16.xpose.msra.mxu0 0
      %3187 = vmatprep.subr.bf16.mxu0 0
      %3188 = vmatpush1.bf16.xpose.msra.mxu0 0
      %3189 = vmatprep.subr.bf16.mxu0 0
      %3190 = vmatpush1.bf16.xpose.msra.mxu0 0
      %3191 = vmatprep.subr.bf16.mxu0 0
      %3192 = vmatpush1.bf16.xpose.msra.mxu0 0
      %3193 = vmatprep.subr.bf16.mxu0 0
      %3194 = vmatpush1.bf16.xpose.msra.mxu0 0
      %3195 = vmatprep.subr.bf16.mxu0 0
      %3196 = vmatpush1.bf16.xpose.msra.mxu0 0
      %3197 = vmatprep.subr.bf16.mxu0 0
      %3198 = vmatpush1.bf16.xpose.msra.mxu0 0
      %3199 = vmatprep.subr.bf16.mxu0 0
      %3200 = vmatpush1.bf16.xpose.msra.mxu0 0
      %3201 = vmatprep.subr.bf16.mxu0 0
      %3202 = vmatpush1.bf16.xpose.msra.mxu0 0
      %3203 = vmatprep.subr.bf16.mxu0 0
      %3204 = vmatpush1.bf16.xpose.msra.mxu0 0
      %3205 = vmatprep.subr.bf16.mxu0 0
      %3206 = vmatpush1.bf16.xpose.msra.mxu0 0
      %3207 = vmatprep.subr.bf16.mxu0 0
      %3208 = vmatpush1.bf16.xpose.msra.mxu0 0
      %3209 = vmatprep.mubr.bf16.mxu0 0
      %3210 = vmatmul.mubr.bf16.gmra.mrb[0].mxu0 %v3172
      %v3211 = vpop.f32.mrb[0].mxu0
      %v3212 = vadd.f32 0.0, %v3211
      %v3213 = vpop.f32.mrb[0].mxu0
      %v3214 = vpop.f32.mrb[0].mxu0
      %v3215 = vadd.f32 0.0, %v3214
      %v3216 = vpop.f32.mrb[0].mxu0
      %3217 = vdwg.mxu0
      %v3219 = vsel %vm3076, %v1855, 0
      %v3222 = vsel %vm3076, %v2463, 0
      %3224 = vmatprep.subr.bf16.mxu0 0
      %3225 = vmatpush1.bf16.xpose.msra.mxu0 %v3222
      %3226 = vmatprep.subr.bf16.mxu0 0
      %3227 = vmatpush1.bf16.xpose.msra.mxu0 0
      %3228 = vmatprep.subr.bf16.mxu0 0
      %3229 = vmatpush1.bf16.xpose.msra.mxu0 0
      %3230 = vmatprep.subr.bf16.mxu0 0
      %3231 = vmatpush1.bf16.xpose.msra.mxu0 0
      %3232 = vmatprep.subr.bf16.mxu0 0
      %3233 = vmatpush1.bf16.xpose.msra.mxu0 0
      %3234 = vmatprep.subr.bf16.mxu0 0
      %3235 = vmatpush1.bf16.xpose.msra.mxu0 0
      %3236 = vmatprep.subr.bf16.mxu0 0
      %3237 = vmatpush1.bf16.xpose.msra.mxu0 0
      %3238 = vmatprep.subr.bf16.mxu0 0
      %3239 = vmatpush1.bf16.xpose.msra.mxu0 0
      %3240 = vmatprep.subr.bf16.mxu0 0
      %3241 = vmatpush1.bf16.xpose.msra.mxu0 0
      %3242 = vmatprep.subr.bf16.mxu0 0
      %3243 = vmatpush1.bf16.xpose.msra.mxu0 0
      %3244 = vmatprep.subr.bf16.mxu0 0
      %3245 = vmatpush1.bf16.xpose.msra.mxu0 0
      %3246 = vmatprep.subr.bf16.mxu0 0
      %3247 = vmatpush1.bf16.xpose.msra.mxu0 0
      %3248 = vmatprep.subr.bf16.mxu0 0
      %3249 = vmatpush1.bf16.xpose.msra.mxu0 0
      %3250 = vmatprep.subr.bf16.mxu0 0
      %3251 = vmatpush1.bf16.xpose.msra.mxu0 0
      %3252 = vmatprep.subr.bf16.mxu0 0
      %3253 = vmatpush1.bf16.xpose.msra.mxu0 0
      %3254 = vmatprep.subr.bf16.mxu0 0
      %3255 = vmatpush1.bf16.xpose.msra.mxu0 0
      %3256 = vmatprep.mubr.bf16.mxu0 0
      %3257 = vmatmul.mubr.bf16.gmra.mrb[0].mxu0 %v3219
      %v3258 = vpop.f32.mrb[0].mxu0
      %v3259 = vadd.f32 0.0, %v3258
      %v3260 = vpop.f32.mrb[0].mxu0
      %v3261 = vpop.f32.mrb[0].mxu0
      %v3262 = vadd.f32 0.0, %v3261
      %v3263 = vpop.f32.mrb[0].mxu0
      %3264 = vdwg.mxu0
      %v3266 = vsel %vm3076, %v1856, 0
      %v3269 = vsel %vm3076, %v2464, 0
      %3271 = vmatprep.subr.bf16.mxu0 0
      %3272 = vmatpush1.bf16.xpose.msra.mxu0 %v3269
      %3273 = vmatprep.subr.bf16.mxu0 0
      %3274 = vmatpush1.bf16.xpose.msra.mxu0 0
      %3275 = vmatprep.subr.bf16.mxu0 0
      %3276 = vmatpush1.bf16.xpose.msra.mxu0 0
      %3277 = vmatprep.subr.bf16.mxu0 0
      %3278 = vmatpush1.bf16.xpose.msra.mxu0 0
      %3279 = vmatprep.subr.bf16.mxu0 0
      %3280 = vmatpush1.bf16.xpose.msra.mxu0 0
      %3281 = vmatprep.subr.bf16.mxu0 0
      %3282 = vmatpush1.bf16.xpose.msra.mxu0 0
      %3283 = vmatprep.subr.bf16.mxu0 0
      %3284 = vmatpush1.bf16.xpose.msra.mxu0 0
      %3285 = vmatprep.subr.bf16.mxu0 0
      %3286 = vmatpush1.bf16.xpose.msra.mxu0 0
      %3287 = vmatprep.subr.bf16.mxu0 0
      %3288 = vmatpush1.bf16.xpose.msra.mxu0 0
      %3289 = vmatprep.subr.bf16.mxu0 0
      %3290 = vmatpush1.bf16.xpose.msra.mxu0 0
      %3291 = vmatprep.subr.bf16.mxu0 0
      %3292 = vmatpush1.bf16.xpose.msra.mxu0 0
      %3293 = vmatprep.subr.bf16.mxu0 0
      %3294 = vmatpush1.bf16.xpose.msra.mxu0 0
      %3295 = vmatprep.subr.bf16.mxu0 0
      %3296 = vmatpush1.bf16.xpose.msra.mxu0 0
      %3297 = vmatprep.subr.bf16.mxu0 0
      %3298 = vmatpush1.bf16.xpose.msra.mxu0 0
      %3299 = vmatprep.subr.bf16.mxu0 0
      %3300 = vmatpush1.bf16.xpose.msra.mxu0 0
      %3301 = vmatprep.subr.bf16.mxu0 0
      %3302 = vmatpush1.bf16.xpose.msra.mxu0 0
      %3303 = vmatprep.mubr.bf16.mxu0 0
      %3304 = vmatmul.mubr.bf16.gmra.mrb[0].mxu0 %v3266
      %v3305 = vpop.f32.mrb[0].mxu0
      %v3306 = vadd.f32 0.0, %v3305
      %v3307 = vpop.f32.mrb[0].mxu0
      %v3308 = vpop.f32.mrb[0].mxu0
      %v3309 = vadd.f32 0.0, %v3308
      %v3310 = vpop.f32.mrb[0].mxu0
      %3311 = vdwg.mxu0
      %v3313 = vsel %vm3076, %v1857, 0
      %v3316 = vsel %vm3076, %v2465, 0
      %3318 = vmatprep.subr.bf16.mxu0 0
      %3319 = vmatpush1.bf16.xpose.msra.mxu0 %v3316
      %3320 = vmatprep.subr.bf16.mxu0 0
      %3321 = vmatpush1.bf16.xpose.msra.mxu0 0
      %3322 = vmatprep.subr.bf16.mxu0 0
      %3323 = vmatpush1.bf16.xpose.msra.mxu0 0
      %3324 = vmatprep.subr.bf16.mxu0 0
      %3325 = vmatpush1.bf16.xpose.msra.mxu0 0
      %3326 = vmatprep.subr.bf16.mxu0 0
      %3327 = vmatpush1.bf16.xpose.msra.mxu0 0
      %3328 = vmatprep.subr.bf16.mxu0 0
      %3329 = vmatpush1.bf16.xpose.msra.mxu0 0
      %3330 = vmatprep.subr.bf16.mxu0 0
      %3331 = vmatpush1.bf16.xpose.msra.mxu0 0
      %3332 = vmatprep.subr.bf16.mxu0 0
      %3333 = vmatpush1.bf16.xpose.msra.mxu0 0
      %3334 = vmatprep.subr.bf16.mxu0 0
      %3335 = vmatpush1.bf16.xpose.msra.mxu0 0
      %3336 = vmatprep.subr.bf16.mxu0 0
      %3337 = vmatpush1.bf16.xpose.msra.mxu0 0
      %3338 = vmatprep.subr.bf16.mxu0 0
      %3339 = vmatpush1.bf16.xpose.msra.mxu0 0
      %3340 = vmatprep.subr.bf16.mxu0 0
      %3341 = vmatpush1.bf16.xpose.msra.mxu0 0
      %3342 = vmatprep.subr.bf16.mxu0 0
      %3343 = vmatpush1.bf16.xpose.msra.mxu0 0
      %3344 = vmatprep.subr.bf16.mxu0 0
      %3345 = vmatpush1.bf16.xpose.msra.mxu0 0
      %3346 = vmatprep.subr.bf16.mxu0 0
      %3347 = vmatpush1.bf16.xpose.msra.mxu0 0
      %3348 = vmatprep.subr.bf16.mxu0 0
      %3349 = vmatpush1.bf16.xpose.msra.mxu0 0
      %3350 = vmatprep.mubr.bf16.mxu0 0
      %3351 = vmatmul.mubr.bf16.gmra.mrb[0].mxu0 %v3313
      %v3352 = vpop.f32.mrb[0].mxu0
      %v3353 = vadd.f32 0.0, %v3352
      %v3354 = vpop.f32.mrb[0].mxu0
      %v3355 = vpop.f32.mrb[0].mxu0
      %v3356 = vadd.f32 0.0, %v3355
      %v3357 = vpop.f32.mrb[0].mxu0
      %3358 = vdwg.mxu0
      %v3360 = vsel %vm3076, %v1858, 0
      %v3363 = vsel %vm3076, %v2466, 0
      %3365 = vmatprep.subr.bf16.mxu0 0
      %3366 = vmatpush1.bf16.xpose.msra.mxu0 %v3363
      %3367 = vmatprep.subr.bf16.mxu0 0
      %3368 = vmatpush1.bf16.xpose.msra.mxu0 0
      %3369 = vmatprep.subr.bf16.mxu0 0
      %3370 = vmatpush1.bf16.xpose.msra.mxu0 0
      %3371 = vmatprep.subr.bf16.mxu0 0
      %3372 = vmatpush1.bf16.xpose.msra.mxu0 0
      %3373 = vmatprep.subr.bf16.mxu0 0
      %3374 = vmatpush1.bf16.xpose.msra.mxu0 0
      %3375 = vmatprep.subr.bf16.mxu0 0
      %3376 = vmatpush1.bf16.xpose.msra.mxu0 0
      %3377 = vmatprep.subr.bf16.mxu0 0
      %3378 = vmatpush1.bf16.xpose.msra.mxu0 0
      %3379 = vmatprep.subr.bf16.mxu0 0
      %3380 = vmatpush1.bf16.xpose.msra.mxu0 0
      %3381 = vmatprep.subr.bf16.mxu0 0
      %3382 = vmatpush1.bf16.xpose.msra.mxu0 0
      %3383 = vmatprep.subr.bf16.mxu0 0
      %3384 = vmatpush1.bf16.xpose.msra.mxu0 0
      %3385 = vmatprep.subr.bf16.mxu0 0
      %3386 = vmatpush1.bf16.xpose.msra.mxu0 0
      %3387 = vmatprep.subr.bf16.mxu0 0
      %3388 = vmatpush1.bf16.xpose.msra.mxu0 0
      %3389 = vmatprep.subr.bf16.mxu0 0
      %3390 = vmatpush1.bf16.xpose.msra.mxu0 0
      %3391 = vmatprep.subr.bf16.mxu0 0
      %3392 = vmatpush1.bf16.xpose.msra.mxu0 0
      %3393 = vmatprep.subr.bf16.mxu0 0
      %3394 = vmatpush1.bf16.xpose.msra.mxu0 0
      %3395 = vmatprep.subr.bf16.mxu0 0
      %3396 = vmatpush1.bf16.xpose.msra.mxu0 0
      %3397 = vmatprep.mubr.bf16.mxu0 0
      %3398 = vmatmul.mubr.bf16.gmra.mrb[0].mxu0 %v3360
      %v3399 = vpop.f32.mrb[0].mxu0
      %v3400 = vadd.f32 0.0, %v3399
      %v3401 = vpop.f32.mrb[0].mxu0
      %v3402 = vpop.f32.mrb[0].mxu0
      %v3403 = vadd.f32 0.0, %v3402
      %v3404 = vpop.f32.mrb[0].mxu0
      %3405 = vdwg.mxu0
      %v3407 = vsel %vm3076, %v1859, 0
      %v3410 = vsel %vm3076, %v2467, 0
      %3412 = vmatprep.subr.bf16.mxu0 0
      %3413 = vmatpush1.bf16.xpose.msra.mxu0 %v3410
      %3414 = vmatprep.subr.bf16.mxu0 0
      %3415 = vmatpush1.bf16.xpose.msra.mxu0 0
      %3416 = vmatprep.subr.bf16.mxu0 0
      %3417 = vmatpush1.bf16.xpose.msra.mxu0 0
      %3418 = vmatprep.subr.bf16.mxu0 0
      %3419 = vmatpush1.bf16.xpose.msra.mxu0 0
      %3420 = vmatprep.subr.bf16.mxu0 0
      %3421 = vmatpush1.bf16.xpose.msra.mxu0 0
      %3422 = vmatprep.subr.bf16.mxu0 0
      %3423 = vmatpush1.bf16.xpose.msra.mxu0 0
      %3424 = vmatprep.subr.bf16.mxu0 0
      %3425 = vmatpush1.bf16.xpose.msra.mxu0 0
      %3426 = vmatprep.subr.bf16.mxu0 0
      %3427 = vmatpush1.bf16.xpose.msra.mxu0 0
      %3428 = vmatprep.subr.bf16.mxu0 0
      %3429 = vmatpush1.bf16.xpose.msra.mxu0 0
      %3430 = vmatprep.subr.bf16.mxu0 0
      %3431 = vmatpush1.bf16.xpose.msra.mxu0 0
      %3432 = vmatprep.subr.bf16.mxu0 0
      %3433 = vmatpush1.bf16.xpose.msra.mxu0 0
      %3434 = vmatprep.subr.bf16.mxu0 0
      %3435 = vmatpush1.bf16.xpose.msra.mxu0 0
      %3436 = vmatprep.subr.bf16.mxu0 0
      %3437 = vmatpush1.bf16.xpose.msra.mxu0 0
      %3438 = vmatprep.subr.bf16.mxu0 0
      %3439 = vmatpush1.bf16.xpose.msra.mxu0 0
      %3440 = vmatprep.subr.bf16.mxu0 0
      %3441 = vmatpush1.bf16.xpose.msra.mxu0 0
      %3442 = vmatprep.subr.bf16.mxu0 0
      %3443 = vmatpush1.bf16.xpose.msra.mxu0 0
      %3444 = vmatprep.mubr.bf16.mxu0 0
      %3445 = vmatmul.mubr.bf16.gmra.mrb[0].mxu0 %v3407
      %v3446 = vpop.f32.mrb[0].mxu0
      %v3447 = vadd.f32 0.0, %v3446
      %v3448 = vpop.f32.mrb[0].mxu0
      %v3449 = vpop.f32.mrb[0].mxu0
      %v3450 = vadd.f32 0.0, %v3449
      %v3451 = vpop.f32.mrb[0].mxu0
      %3452 = vdwg.mxu0
      %v3453 = vlaneseq
      %v3454 = vand.u32 %v3453, 127
      %vm3455 = vcmp.lt.s32.totalorder %v3454, 5
      %v3456 = vsel %vm3455, 1, 0
      %vm3457 = vcmp.eq.s32.totalorder %v3456, 1
      %v3458 = vsel %vm3457, %v3118, -1e+30
      %v3459 = vsel %vm3457, %v3121, -1e+30
      %v3460 = vsel %vm3457, %v3165, -1e+30
      %v3461 = vsel %vm3457, %v3168, -1e+30
      %v3462 = vsel %vm3457, %v3212, -1e+30
      %v3463 = vsel %vm3457, %v3215, -1e+30
      %v3464 = vsel %vm3457, %v3259, -1e+30
      %v3465 = vsel %vm3457, %v3262, -1e+30
      %v3466 = vsel %vm3457, %v3306, -1e+30
      %v3467 = vsel %vm3457, %v3309, -1e+30
      %v3468 = vsel %vm3457, %v3353, -1e+30
      %v3469 = vsel %vm3457, %v3356, -1e+30
      %v3470 = vsel %vm3457, %v3400, -1e+30
      %v3471 = vsel %vm3457, %v3403, -1e+30
      %v3472 = vsel %vm3457, %v3447, -1e+30
      %v3473 = vsel %vm3457, %v3450, -1e+30
      %vm3474 = vcmask 130048
      %v3475 = vsel %vm3474, %v3458, -inf
      %3476 = vmax.xlane.f32.xlu0 %v3475
      %v3477 = vpop.xlane.xlu0 %3476
      %v3478 = vsel %vm3474, %v3459, -inf
      %3479 = vmax.xlane.f32.xlu0 %v3478
      %v3480 = vpop.xlane.xlu0 %3479
      %v3481 = vsel %vm3474, %v3460, -inf
      %3482 = vmax.xlane.f32.xlu0 %v3481
      %v3483 = vpop.xlane.xlu0 %3482
      %v3484 = vsel %vm3474, %v3461, -inf
      %3485 = vmax.xlane.f32.xlu0 %v3484
      %v3486 = vpop.xlane.xlu0 %3485
      %v3487 = vsel %vm3474, %v3462, -inf
      %3488 = vmax.xlane.f32.xlu0 %v3487
      %v3489 = vpop.xlane.xlu0 %3488
      %v3490 = vsel %vm3474, %v3463, -inf
      %3491 = vmax.xlane.f32.xlu0 %v3490
      %v3492 = vpop.xlane.xlu0 %3491
      %v3493 = vsel %vm3474, %v3464, -inf
      %3494 = vmax.xlane.f32.xlu0 %v3493
      %v3495 = vpop.xlane.xlu0 %3494
      %v3496 = vsel %vm3474, %v3465, -inf
      %3497 = vmax.xlane.f32.xlu0 %v3496
      %v3498 = vpop.xlane.xlu0 %3497
      %v3499 = vsel %vm3474, %v3466, -inf
      %3500 = vmax.xlane.f32.xlu0 %v3499
      %v3501 = vpop.xlane.xlu0 %3500
      %v3502 = vsel %vm3474, %v3467, -inf
      %3503 = vmax.xlane.f32.xlu0 %v3502
      %v3504 = vpop.xlane.xlu0 %3503
      %v3505 = vsel %vm3474, %v3468, -inf
      %3506 = vmax.xlane.f32.xlu0 %v3505
      %v3507 = vpop.xlane.xlu0 %3506
      %v3508 = vsel %vm3474, %v3469, -inf
      %3509 = vmax.xlane.f32.xlu0 %v3508
      %v3510 = vpop.xlane.xlu0 %3509
      %v3511 = vsel %vm3474, %v3470, -inf
      %3512 = vmax.xlane.f32.xlu0 %v3511
      %v3513 = vpop.xlane.xlu0 %3512
      %v3514 = vsel %vm3474, %v3471, -inf
      %3515 = vmax.xlane.f32.xlu0 %v3514
      %v3516 = vpop.xlane.xlu0 %3515
      %v3517 = vsel %vm3474, %v3472, -inf
      %3518 = vmax.xlane.f32.xlu0 %v3517
      %v3519 = vpop.xlane.xlu0 %3518
      %v3520 = vsel %vm3474, %v3473, -inf
      %3521 = vmax.xlane.f32.xlu0 %v3520
      %v3522 = vpop.xlane.xlu0 %3521
      %v3523 = vsub.f32 %v3458, %v3477
      %v3524 = vsub.f32 %v3459, %v3480
      %v3525 = vsub.f32 %v3460, %v3483
      %v3526 = vsub.f32 %v3461, %v3486
      %v3527 = vsub.f32 %v3462, %v3489
      %v3528 = vsub.f32 %v3463, %v3492
      %v3529 = vsub.f32 %v3464, %v3495
      %v3530 = vsub.f32 %v3465, %v3498
      %v3531 = vsub.f32 %v3466, %v3501
      %v3532 = vsub.f32 %v3467, %v3504
      %v3533 = vsub.f32 %v3468, %v3507
      %v3534 = vsub.f32 %v3469, %v3510
      %v3535 = vsub.f32 %v3470, %v3513
      %v3536 = vsub.f32 %v3471, %v3516
      %v3537 = vsub.f32 %v3472, %v3519
      %v3538 = vsub.f32 %v3473, %v3522
      %v3539 = vmul.f32 %v3523, 1.442695
      %v3540 = vpow.pop %v3539
      %v3541 = vmul.f32 %v3524, 1.442695
      %v3542 = vpow.pop %v3541
      %v3543 = vmul.f32 %v3525, 1.442695
      %v3544 = vpow.pop %v3543
      %v3545 = vmul.f32 %v3526, 1.442695
      %v3546 = vpow.pop %v3545
      %v3547 = vmul.f32 %v3527, 1.442695
      %v3548 = vpow.pop %v3547
      %v3549 = vmul.f32 %v3528, 1.442695
      %v3550 = vpow.pop %v3549
      %v3551 = vmul.f32 %v3529, 1.442695
      %v3552 = vpow.pop %v3551
      %v3553 = vmul.f32 %v3530, 1.442695
      %v3554 = vpow.pop %v3553
      %v3555 = vmul.f32 %v3531, 1.442695
      %v3556 = vpow.pop %v3555
      %v3557 = vmul.f32 %v3532, 1.442695
      %v3558 = vpow.pop %v3557
      %v3559 = vmul.f32 %v3533, 1.442695
      %v3560 = vpow.pop %v3559
      %v3561 = vmul.f32 %v3534, 1.442695
      %v3562 = vpow.pop %v3561
      %v3563 = vmul.f32 %v3535, 1.442695
      %v3564 = vpow.pop %v3563
      %v3565 = vmul.f32 %v3536, 1.442695
      %v3566 = vpow.pop %v3565
      %v3567 = vmul.f32 %v3537, 1.442695
      %v3568 = vpow.pop %v3567
      %v3569 = vmul.f32 %v3538, 1.442695
      %v3570 = vpow.pop %v3569
      %v3571 = vsel %vm3474, %v3540, 0.0
      %3572 = vadd.xlane.f32.xlu0 %v3571
      %v3573 = vpop.xlane.xlu0 %3572
      %v3574 = vsel %vm3474, %v3542, 0.0
      %3575 = vadd.xlane.f32.xlu0 %v3574
      %v3576 = vpop.xlane.xlu0 %3575
      %v3577 = vsel %vm3474, %v3544, 0.0
      %3578 = vadd.xlane.f32.xlu0 %v3577
      %v3579 = vpop.xlane.xlu0 %3578
      %v3580 = vsel %vm3474, %v3546, 0.0
      %3581 = vadd.xlane.f32.xlu0 %v3580
      %v3582 = vpop.xlane.xlu0 %3581
      %v3583 = vsel %vm3474, %v3548, 0.0
      %3584 = vadd.xlane.f32.xlu0 %v3583
      %v3585 = vpop.xlane.xlu0 %3584
      %v3586 = vsel %vm3474, %v3550, 0.0
      %3587 = vadd.xlane.f32.xlu0 %v3586
      %v3588 = vpop.xlane.xlu0 %3587
      %v3589 = vsel %vm3474, %v3552, 0.0
      %3590 = vadd.xlane.f32.xlu0 %v3589
      %v3591 = vpop.xlane.xlu0 %3590
      %v3592 = vsel %vm3474, %v3554, 0.0
      %3593 = vadd.xlane.f32.xlu0 %v3592
      %v3594 = vpop.xlane.xlu0 %3593
      %v3595 = vsel %vm3474, %v3556, 0.0
      %3596 = vadd.xlane.f32.xlu0 %v3595
      %v3597 = vpop.xlane.xlu0 %3596
      %v3598 = vsel %vm3474, %v3558, 0.0
      %3599 = vadd.xlane.f32.xlu0 %v3598
      %v3600 = vpop.xlane.xlu0 %3599
      %v3601 = vsel %vm3474, %v3560, 0.0
      %3602 = vadd.xlane.f32.xlu0 %v3601
      %v3603 = vpop.xlane.xlu0 %3602
      %v3604 = vsel %vm3474, %v3562, 0.0
      %3605 = vadd.xlane.f32.xlu0 %v3604
      %v3606 = vpop.xlane.xlu0 %3605
      %v3607 = vsel %vm3474, %v3564, 0.0
      %3608 = vadd.xlane.f32.xlu0 %v3607
      %v3609 = vpop.xlane.xlu0 %3608
      %v3610 = vsel %vm3474, %v3566, 0.0
      %3611 = vadd.xlane.f32.xlu0 %v3610
      %v3612 = vpop.xlane.xlu0 %3611
      %v3613 = vsel %vm3474, %v3568, 0.0
      %3614 = vadd.xlane.f32.xlu0 %v3613
      %v3615 = vpop.xlane.xlu0 %3614
      %v3616 = vsel %vm3474, %v3570, 0.0
      %3617 = vadd.xlane.f32.xlu0 %v3616
      %v3618 = vpop.xlane.xlu0 %3617
      %v3619 = vrcp.pop %v3573
      %v3620 = vrcp.pop %v3576
      %v3621 = vrcp.pop %v3579
      %v3622 = vrcp.pop %v3582
      %v3623 = vrcp.pop %v3585
      %v3624 = vrcp.pop %v3588
      %v3625 = vrcp.pop %v3591
      %v3626 = vrcp.pop %v3594
      %v3627 = vrcp.pop %v3597
      %v3628 = vrcp.pop %v3600
      %v3629 = vrcp.pop %v3603
      %v3630 = vrcp.pop %v3606
      %v3631 = vrcp.pop %v3609
      %v3632 = vrcp.pop %v3612
      %v3633 = vrcp.pop %v3615
      %v3634 = vrcp.pop %v3618
      %v3635 = vmul.f32 %v3540, %v3619
      %v3636 = vmul.f32 %v3542, %v3620
      %v3637 = vmul.f32 %v3544, %v3621
      %v3638 = vmul.f32 %v3546, %v3622
      %v3639 = vmul.f32 %v3548, %v3623
      %v3640 = vmul.f32 %v3550, %v3624
      %v3641 = vmul.f32 %v3552, %v3625
      %v3642 = vmul.f32 %v3554, %v3626
      %v3643 = vmul.f32 %v3556, %v3627
      %v3644 = vmul.f32 %v3558, %v3628
      %v3645 = vmul.f32 %v3560, %v3629
      %v3646 = vmul.f32 %v3562, %v3630
      %v3647 = vmul.f32 %v3564, %v3631
      %v3648 = vmul.f32 %v3566, %v3632
      %v3649 = vmul.f32 %v3568, %v3633
      %v3650 = vmul.f32 %v3570, %v3634
      %v3651 = vpack.c.bf16 %v3636, %v3635
      %v3652 = vpack.c.bf16 %v3638, %v3637
      %v3653 = vpack.c.bf16 %v3640, %v3639
      %v3654 = vpack.c.bf16 %v3642, %v3641
      %v3655 = vpack.c.bf16 %v3644, %v3643
      %v3656 = vpack.c.bf16 %v3646, %v3645
      %v3657 = vpack.c.bf16 %v3648, %v3647
      %v3658 = vpack.c.bf16 %v3650, %v3649
      %v3660 = vsel %vm3474, %v3651, 0
      %3662 = vmatprep.subr.bf16.mxu0 0
      %3663 = vmatpush1.bf16.msra.mxu0 %v3068
      %3664 = vmatprep.subr.bf16.mxu0 0
      %3665 = vmatpush1.bf16.msra.mxu0 0
      %3666 = vmatprep.subr.bf16.mxu0 0
      %3667 = vmatpush1.bf16.msra.mxu0 0
      %3668 = vmatprep.subr.bf16.mxu0 0
      %3669 = vmatpush1.bf16.msra.mxu0 0
      %3670 = vmatprep.subr.bf16.mxu0 0
      %3671 = vmatpush1.bf16.msra.mxu0 0
      %3672 = vmatprep.subr.bf16.mxu0 0
      %3673 = vmatpush1.bf16.msra.mxu0 0
      %3674 = vmatprep.subr.bf16.mxu0 0
      %3675 = vmatpush1.bf16.msra.mxu0 0
      %3676 = vmatprep.subr.bf16.mxu0 0
      %3677 = vmatpush1.bf16.msra.mxu0 0
      %3678 = vmatprep.subr.bf16.mxu0 0
      %3679 = vmatpush1.bf16.msra.mxu0 0
      %3680 = vmatprep.subr.bf16.mxu0 0
      %3681 = vmatpush1.bf16.msra.mxu0 0
      %3682 = vmatprep.subr.bf16.mxu0 0
      %3683 = vmatpush1.bf16.msra.mxu0 0
      %3684 = vmatprep.subr.bf16.mxu0 0
      %3685 = vmatpush1.bf16.msra.mxu0 0
      %3686 = vmatprep.subr.bf16.mxu0 0
      %3687 = vmatpush1.bf16.msra.mxu0 0
      %3688 = vmatprep.subr.bf16.mxu0 0
      %3689 = vmatpush1.bf16.msra.mxu0 0
      %3690 = vmatprep.subr.bf16.mxu0 0
      %3691 = vmatpush1.bf16.msra.mxu0 0
      %3692 = vmatprep.subr.bf16.mxu0 0
      %3693 = vmatpush1.bf16.msra.mxu0 0
      %3694 = vmatprep.mubr.bf16.mxu0 0
      %3695 = vmatmul.mubr.bf16.gmra.mrb[0].mxu0 %v3660
      %v3696 = vpop.f32.mrb[0].mxu0
      %v3697 = vadd.f32 0.0, %v3696
      %v3698 = vpop.f32.mrb[0].mxu0
      %v3699 = vpop.f32.mrb[0].mxu0
      %v3700 = vadd.f32 0.0, %v3699
      %v3701 = vpop.f32.mrb[0].mxu0
      %3702 = vdwg.mxu0
      %v3704 = vsel %vm3474, %v3652, 0
      %3706 = vmatprep.subr.bf16.mxu0 0
      %3707 = vmatpush1.bf16.msra.mxu0 %v3069
      %3708 = vmatprep.subr.bf16.mxu0 0
      %3709 = vmatpush1.bf16.msra.mxu0 0
      %3710 = vmatprep.subr.bf16.mxu0 0
      %3711 = vmatpush1.bf16.msra.mxu0 0
      %3712 = vmatprep.subr.bf16.mxu0 0
      %3713 = vmatpush1.bf16.msra.mxu0 0
      %3714 = vmatprep.subr.bf16.mxu0 0
      %3715 = vmatpush1.bf16.msra.mxu0 0
      %3716 = vmatprep.subr.bf16.mxu0 0
      %3717 = vmatpush1.bf16.msra.mxu0 0
      %3718 = vmatprep.subr.bf16.mxu0 0
      %3719 = vmatpush1.bf16.msra.mxu0 0
      %3720 = vmatprep.subr.bf16.mxu0 0
      %3721 = vmatpush1.bf16.msra.mxu0 0
      %3722 = vmatprep.subr.bf16.mxu0 0
      %3723 = vmatpush1.bf16.msra.mxu0 0
      %3724 = vmatprep.subr.bf16.mxu0 0
      %3725 = vmatpush1.bf16.msra.mxu0 0
      %3726 = vmatprep.subr.bf16.mxu0 0
      %3727 = vmatpush1.bf16.msra.mxu0 0
      %3728 = vmatprep.subr.bf16.mxu0 0
      %3729 = vmatpush1.bf16.msra.mxu0 0
      %3730 = vmatprep.subr.bf16.mxu0 0
      %3731 = vmatpush1.bf16.msra.mxu0 0
      %3732 = vmatprep.subr.bf16.mxu0 0
      %3733 = vmatpush1.bf16.msra.mxu0 0
      %3734 = vmatprep.subr.bf16.mxu0 0
      %3735 = vmatpush1.bf16.msra.mxu0 0
      %3736 = vmatprep.subr.bf16.mxu0 0
      %3737 = vmatpush1.bf16.msra.mxu0 0
      %3738 = vmatprep.mubr.bf16.mxu0 0
      %3739 = vmatmul.mubr.bf16.gmra.mrb[0].mxu0 %v3704
      %v3740 = vpop.f32.mrb[0].mxu0
      %v3741 = vadd.f32 0.0, %v3740
      %v3742 = vpop.f32.mrb[0].mxu0
      %v3743 = vpop.f32.mrb[0].mxu0
      %v3744 = vadd.f32 0.0, %v3743
      %v3745 = vpop.f32.mrb[0].mxu0
      %3746 = vdwg.mxu0
      %v3748 = vsel %vm3474, %v3653, 0
      %3750 = vmatprep.subr.bf16.mxu0 0
      %3751 = vmatpush1.bf16.msra.mxu0 %v3070
      %3752 = vmatprep.subr.bf16.mxu0 0
      %3753 = vmatpush1.bf16.msra.mxu0 0
      %3754 = vmatprep.subr.bf16.mxu0 0
      %3755 = vmatpush1.bf16.msra.mxu0 0
      %3756 = vmatprep.subr.bf16.mxu0 0
      %3757 = vmatpush1.bf16.msra.mxu0 0
      %3758 = vmatprep.subr.bf16.mxu0 0
      %3759 = vmatpush1.bf16.msra.mxu0 0
      %3760 = vmatprep.subr.bf16.mxu0 0
      %3761 = vmatpush1.bf16.msra.mxu0 0
      %3762 = vmatprep.subr.bf16.mxu0 0
      %3763 = vmatpush1.bf16.msra.mxu0 0
      %3764 = vmatprep.subr.bf16.mxu0 0
      %3765 = vmatpush1.bf16.msra.mxu0 0
      %3766 = vmatprep.subr.bf16.mxu0 0
      %3767 = vmatpush1.bf16.msra.mxu0 0
      %3768 = vmatprep.subr.bf16.mxu0 0
      %3769 = vmatpush1.bf16.msra.mxu0 0
      %3770 = vmatprep.subr.bf16.mxu0 0
      %3771 = vmatpush1.bf16.msra.mxu0 0
      %3772 = vmatprep.subr.bf16.mxu0 0
      %3773 = vmatpush1.bf16.msra.mxu0 0
      %3774 = vmatprep.subr.bf16.mxu0 0
      %3775 = vmatpush1.bf16.msra.mxu0 0
      %3776 = vmatprep.subr.bf16.mxu0 0
      %3777 = vmatpush1.bf16.msra.mxu0 0
      %3778 = vmatprep.subr.bf16.mxu0 0
      %3779 = vmatpush1.bf16.msra.mxu0 0
      %3780 = vmatprep.subr.bf16.mxu0 0
      %3781 = vmatpush1.bf16.msra.mxu0 0
      %3782 = vmatprep.mubr.bf16.mxu0 0
      %3783 = vmatmul.mubr.bf16.gmra.mrb[0].mxu0 %v3748
      %v3784 = vpop.f32.mrb[0].mxu0
      %v3785 = vadd.f32 0.0, %v3784
      %v3786 = vpop.f32.mrb[0].mxu0
      %v3787 = vpop.f32.mrb[0].mxu0
      %v3788 = vadd.f32 0.0, %v3787
      %v3789 = vpop.f32.mrb[0].mxu0
      %3790 = vdwg.mxu0
      %v3792 = vsel %vm3474, %v3654, 0
      %3794 = vmatprep.subr.bf16.mxu0 0
      %3795 = vmatpush1.bf16.msra.mxu0 %v3071
      %3796 = vmatprep.subr.bf16.mxu0 0
      %3797 = vmatpush1.bf16.msra.mxu0 0
      %3798 = vmatprep.subr.bf16.mxu0 0
      %3799 = vmatpush1.bf16.msra.mxu0 0
      %3800 = vmatprep.subr.bf16.mxu0 0
      %3801 = vmatpush1.bf16.msra.mxu0 0
      %3802 = vmatprep.subr.bf16.mxu0 0
      %3803 = vmatpush1.bf16.msra.mxu0 0
      %3804 = vmatprep.subr.bf16.mxu0 0
      %3805 = vmatpush1.bf16.msra.mxu0 0
      %3806 = vmatprep.subr.bf16.mxu0 0
      %3807 = vmatpush1.bf16.msra.mxu0 0
      %3808 = vmatprep.subr.bf16.mxu0 0
      %3809 = vmatpush1.bf16.msra.mxu0 0
      %3810 = vmatprep.subr.bf16.mxu0 0
      %3811 = vmatpush1.bf16.msra.mxu0 0
      %3812 = vmatprep.subr.bf16.mxu0 0
      %3813 = vmatpush1.bf16.msra.mxu0 0
      %3814 = vmatprep.subr.bf16.mxu0 0
      %3815 = vmatpush1.bf16.msra.mxu0 0
      %3816 = vmatprep.subr.bf16.mxu0 0
      %3817 = vmatpush1.bf16.msra.mxu0 0
      %3818 = vmatprep.subr.bf16.mxu0 0
      %3819 = vmatpush1.bf16.msra.mxu0 0
      %3820 = vmatprep.subr.bf16.mxu0 0
      %3821 = vmatpush1.bf16.msra.mxu0 0
      %3822 = vmatprep.subr.bf16.mxu0 0
      %3823 = vmatpush1.bf16.msra.mxu0 0
      %3824 = vmatprep.subr.bf16.mxu0 0
      %3825 = vmatpush1.bf16.msra.mxu0 0
      %3826 = vmatprep.mubr.bf16.mxu0 0
      %3827 = vmatmul.mubr.bf16.gmra.mrb[0].mxu0 %v3792
      %v3828 = vpop.f32.mrb[0].mxu0
      %v3829 = vadd.f32 0.0, %v3828
      %v3830 = vpop.f32.mrb[0].mxu0
      %v3831 = vpop.f32.mrb[0].mxu0
      %v3832 = vadd.f32 0.0, %v3831
      %v3833 = vpop.f32.mrb[0].mxu0
      %3834 = vdwg.mxu0
      %v3836 = vsel %vm3474, %v3655, 0
      %3838 = vmatprep.subr.bf16.mxu0 0
      %3839 = vmatpush1.bf16.msra.mxu0 %v3072
      %3840 = vmatprep.subr.bf16.mxu0 0
      %3841 = vmatpush1.bf16.msra.mxu0 0
      %3842 = vmatprep.subr.bf16.mxu0 0
      %3843 = vmatpush1.bf16.msra.mxu0 0
      %3844 = vmatprep.subr.bf16.mxu0 0
      %3845 = vmatpush1.bf16.msra.mxu0 0
      %3846 = vmatprep.subr.bf16.mxu0 0
      %3847 = vmatpush1.bf16.msra.mxu0 0
      %3848 = vmatprep.subr.bf16.mxu0 0
      %3849 = vmatpush1.bf16.msra.mxu0 0
      %3850 = vmatprep.subr.bf16.mxu0 0
      %3851 = vmatpush1.bf16.msra.mxu0 0
      %3852 = vmatprep.subr.bf16.mxu0 0
      %3853 = vmatpush1.bf16.msra.mxu0 0
      %3854 = vmatprep.subr.bf16.mxu0 0
      %3855 = vmatpush1.bf16.msra.mxu0 0
      %3856 = vmatprep.subr.bf16.mxu0 0
      %3857 = vmatpush1.bf16.msra.mxu0 0
      %3858 = vmatprep.subr.bf16.mxu0 0
      %3859 = vmatpush1.bf16.msra.mxu0 0
      %3860 = vmatprep.subr.bf16.mxu0 0
      %3861 = vmatpush1.bf16.msra.mxu0 0
      %3862 = vmatprep.subr.bf16.mxu0 0
      %3863 = vmatpush1.bf16.msra.mxu0 0
      %3864 = vmatprep.subr.bf16.mxu0 0
      %3865 = vmatpush1.bf16.msra.mxu0 0
      %3866 = vmatprep.subr.bf16.mxu0 0
      %3867 = vmatpush1.bf16.msra.mxu0 0
      %3868 = vmatprep.subr.bf16.mxu0 0
      %3869 = vmatpush1.bf16.msra.mxu0 0
      %3870 = vmatprep.mubr.bf16.mxu0 0
      %3871 = vmatmul.mubr.bf16.gmra.mrb[0].mxu0 %v3836
      %v3872 = vpop.f32.mrb[0].mxu0
      %v3873 = vadd.f32 0.0, %v3872
      %v3874 = vpop.f32.mrb[0].mxu0
      %v3875 = vpop.f32.mrb[0].mxu0
      %v3876 = vadd.f32 0.0, %v3875
      %v3877 = vpop.f32.mrb[0].mxu0
      %3878 = vdwg.mxu0
      %v3880 = vsel %vm3474, %v3656, 0
      %3882 = vmatprep.subr.bf16.mxu0 0
      %3883 = vmatpush1.bf16.msra.mxu0 %v3073
      %3884 = vmatprep.subr.bf16.mxu0 0
      %3885 = vmatpush1.bf16.msra.mxu0 0
      %3886 = vmatprep.subr.bf16.mxu0 0
      %3887 = vmatpush1.bf16.msra.mxu0 0
      %3888 = vmatprep.subr.bf16.mxu0 0
      %3889 = vmatpush1.bf16.msra.mxu0 0
      %3890 = vmatprep.subr.bf16.mxu0 0
      %3891 = vmatpush1.bf16.msra.mxu0 0
      %3892 = vmatprep.subr.bf16.mxu0 0
      %3893 = vmatpush1.bf16.msra.mxu0 0
      %3894 = vmatprep.subr.bf16.mxu0 0
      %3895 = vmatpush1.bf16.msra.mxu0 0
      %3896 = vmatprep.subr.bf16.mxu0 0
      %3897 = vmatpush1.bf16.msra.mxu0 0
      %3898 = vmatprep.subr.bf16.mxu0 0
      %3899 = vmatpush1.bf16.msra.mxu0 0
      %3900 = vmatprep.subr.bf16.mxu0 0
      %3901 = vmatpush1.bf16.msra.mxu0 0
      %3902 = vmatprep.subr.bf16.mxu0 0
      %3903 = vmatpush1.bf16.msra.mxu0 0
      %3904 = vmatprep.subr.bf16.mxu0 0
      %3905 = vmatpush1.bf16.msra.mxu0 0
      %3906 = vmatprep.subr.bf16.mxu0 0
      %3907 = vmatpush1.bf16.msra.mxu0 0
      %3908 = vmatprep.subr.bf16.mxu0 0
      %3909 = vmatpush1.bf16.msra.mxu0 0
      %3910 = vmatprep.subr.bf16.mxu0 0
      %3911 = vmatpush1.bf16.msra.mxu0 0
      %3912 = vmatprep.subr.bf16.mxu0 0
      %3913 = vmatpush1.bf16.msra.mxu0 0
      %3914 = vmatprep.mubr.bf16.mxu0 0
      %3915 = vmatmul.mubr.bf16.gmra.mrb[0].mxu0 %v3880
      %v3916 = vpop.f32.mrb[0].mxu0
      %v3917 = vadd.f32 0.0, %v3916
      %v3918 = vpop.f32.mrb[0].mxu0
      %v3919 = vpop.f32.mrb[0].mxu0
      %v3920 = vadd.f32 0.0, %v3919
      %v3921 = vpop.f32.mrb[0].mxu0
      %3922 = vdwg.mxu0
      %v3924 = vsel %vm3474, %v3657, 0
      %3926 = vmatprep.subr.bf16.mxu0 0
      %3927 = vmatpush1.bf16.msra.mxu0 %v3074
      %3928 = vmatprep.subr.bf16.mxu0 0
      %3929 = vmatpush1.bf16.msra.mxu0 0
      %3930 = vmatprep.subr.bf16.mxu0 0
      %3931 = vmatpush1.bf16.msra.mxu0 0
      %3932 = vmatprep.subr.bf16.mxu0 0
      %3933 = vmatpush1.bf16.msra.mxu0 0
      %3934 = vmatprep.subr.bf16.mxu0 0
      %3935 = vmatpush1.bf16.msra.mxu0 0
      %3936 = vmatprep.subr.bf16.mxu0 0
      %3937 = vmatpush1.bf16.msra.mxu0 0
      %3938 = vmatprep.subr.bf16.mxu0 0
      %3939 = vmatpush1.bf16.msra.mxu0 0
      %3940 = vmatprep.subr.bf16.mxu0 0
      %3941 = vmatpush1.bf16.msra.mxu0 0
      %3942 = vmatprep.subr.bf16.mxu0 0
      %3943 = vmatpush1.bf16.msra.mxu0 0
      %3944 = vmatprep.subr.bf16.mxu0 0
      %3945 = vmatpush1.bf16.msra.mxu0 0
      %3946 = vmatprep.subr.bf16.mxu0 0
      %3947 = vmatpush1.bf16.msra.mxu0 0
      %3948 = vmatprep.subr.bf16.mxu0 0
      %3949 = vmatpush1.bf16.msra.mxu0 0
      %3950 = vmatprep.subr.bf16.mxu0 0
      %3951 = vmatpush1.bf16.msra.mxu0 0
      %3952 = vmatprep.subr.bf16.mxu0 0
      %3953 = vmatpush1.bf16.msra.mxu0 0
      %3954 = vmatprep.subr.bf16.mxu0 0
      %3955 = vmatpush1.bf16.msra.mxu0 0
      %3956 = vmatprep.subr.bf16.mxu0 0
      %3957 = vmatpush1.bf16.msra.mxu0 0
      %3958 = vmatprep.mubr.bf16.mxu0 0
      %3959 = vmatmul.mubr.bf16.gmra.mrb[0].mxu0 %v3924
      %v3960 = vpop.f32.mrb[0].mxu0
      %v3961 = vadd.f32 0.0, %v3960
      %v3962 = vpop.f32.mrb[0].mxu0
      %v3963 = vpop.f32.mrb[0].mxu0
      %v3964 = vadd.f32 0.0, %v3963
      %v3965 = vpop.f32.mrb[0].mxu0
      %3966 = vdwg.mxu0
      %v3968 = vsel %vm3474, %v3658, 0
      %3970 = vmatprep.subr.bf16.mxu0 0
      %3971 = vmatpush1.bf16.msra.mxu0 %v3075
      %3972 = vmatprep.subr.bf16.mxu0 0
      %3973 = vmatpush1.bf16.msra.mxu0 0
      %3974 = vmatprep.subr.bf16.mxu0 0
      %3975 = vmatpush1.bf16.msra.mxu0 0
      %3976 = vmatprep.subr.bf16.mxu0 0
      %3977 = vmatpush1.bf16.msra.mxu0 0
      %3978 = vmatprep.subr.bf16.mxu0 0
      %3979 = vmatpush1.bf16.msra.mxu0 0
      %3980 = vmatprep.subr.bf16.mxu0 0
      %3981 = vmatpush1.bf16.msra.mxu0 0
      %3982 = vmatprep.subr.bf16.mxu0 0
      %3983 = vmatpush1.bf16.msra.mxu0 0
      %3984 = vmatprep.subr.bf16.mxu0 0
      %3985 = vmatpush1.bf16.msra.mxu0 0
      %3986 = vmatprep.subr.bf16.mxu0 0
      %3987 = vmatpush1.bf16.msra.mxu0 0
      %3988 = vmatprep.subr.bf16.mxu0 0
      %3989 = vmatpush1.bf16.msra.mxu0 0
      %3990 = vmatprep.subr.bf16.mxu0 0
      %3991 = vmatpush1.bf16.msra.mxu0 0
      %3992 = vmatprep.subr.bf16.mxu0 0
      %3993 = vmatpush1.bf16.msra.mxu0 0
      %3994 = vmatprep.subr.bf16.mxu0 0
      %3995 = vmatpush1.bf16.msra.mxu0 0
      %3996 = vmatprep.subr.bf16.mxu0 0
      %3997 = vmatpush1.bf16.msra.mxu0 0
      %3998 = vmatprep.subr.bf16.mxu0 0
      %3999 = vmatpush1.bf16.msra.mxu0 0
      %4000 = vmatprep.subr.bf16.mxu0 0
      %4001 = vmatpush1.bf16.msra.mxu0 0
      %4002 = vmatprep.mubr.bf16.mxu0 0
      %4003 = vmatmul.mubr.bf16.gmra.mrb[0].mxu0 %v3968
      %v4004 = vpop.f32.mrb[0].mxu0
      %v4005 = vadd.f32 0.0, %v4004
      %v4006 = vpop.f32.mrb[0].mxu0
      %v4007 = vpop.f32.mrb[0].mxu0
      %v4008 = vadd.f32 0.0, %v4007
      %v4009 = vpop.f32.mrb[0].mxu0
      %4010 = vdwg.mxu0
      %v4011 = vcombine.low %v3697, %v3785
      %v4012 = vcombine.high %v3697, %v3785
      %v4014 = vunpack.c.l.s4 1983009808
      %v4015 = vunpack.c.0.s8 %v4014
      %v4016 = vlaneseq
      %v4017 = vshrl.u32 %v4016, 7
      %v4018 = vsub.s32 %v4015, %v4017
      %v4019 = vrot.slane %v4011, %v4018
      %v4021 = vunpack.c.l.s4 1983009808
      %v4022 = vunpack.c.0.s8 %v4021
      %v4023 = vlaneseq
      %v4024 = vshrl.u32 %v4023, 7
      %v4025 = vsub.s32 %v4022, %v4024
      %v4026 = vrot.slane %v4012, %v4025
      %v4027 = vcombine.low %v3741, %v3829
      %v4028 = vcombine.high %v3741, %v3829
      %v4030 = vunpack.c.l.s4 1983009808
      %v4031 = vunpack.c.0.s8 %v4030
      %v4032 = vlaneseq
      %v4033 = vshrl.u32 %v4032, 7
      %v4034 = vsub.s32 %v4031, %v4033
      %v4035 = vrot.slane %v4027, %v4034
      %v4037 = vunpack.c.l.s4 1983009808
      %v4038 = vunpack.c.0.s8 %v4037
      %v4039 = vlaneseq
      %v4040 = vshrl.u32 %v4039, 7
      %v4041 = vsub.s32 %v4038, %v4040
      %v4042 = vrot.slane %v4028, %v4041
      %v4043 = vcombine.low %v4019, %v4035
      %v4044 = vcombine.high %v4019, %v4035
      %v4046 = vunpack.c.l.s4 1934713408
      %v4047 = vunpack.c.0.s8 %v4046
      %v4048 = vlaneseq
      %v4049 = vshrl.u32 %v4048, 7
      %v4050 = vsub.s32 %v4047, %v4049
      %v4051 = vrot.slane %v4043, %v4050
      %v4053 = vunpack.c.l.s4 1934713408
      %v4054 = vunpack.c.0.s8 %v4053
      %v4055 = vlaneseq
      %v4056 = vshrl.u32 %v4055, 7
      %v4057 = vsub.s32 %v4054, %v4056
      %v4058 = vrot.slane %v4044, %v4057
      %v4059 = vcombine.low %v4026, %v4042
      %v4060 = vcombine.high %v4026, %v4042
      %v4062 = vunpack.c.l.s4 1934713408
      %v4063 = vunpack.c.0.s8 %v4062
      %v4064 = vlaneseq
      %v4065 = vshrl.u32 %v4064, 7
      %v4066 = vsub.s32 %v4063, %v4065
      %v4067 = vrot.slane %v4059, %v4066
      %v4069 = vunpack.c.l.s4 1934713408
      %v4070 = vunpack.c.0.s8 %v4069
      %v4071 = vlaneseq
      %v4072 = vshrl.u32 %v4071, 7
      %v4073 = vsub.s32 %v4070, %v4072
      %v4074 = vrot.slane %v4060, %v4073
      %v4075 = vcombine.high %v4051, 0.0
      %v4076 = vcombine.high %v4058, 0.0
      %v4077 = vcombine.high %v4067, 0.0
      %v4078 = vcombine.high %v4074, 0.0
      %v4079 = vcombine.low %v3700, %v3788
      %v4080 = vcombine.high %v3700, %v3788
      %v4082 = vunpack.c.l.s4 1983009808
      %v4083 = vunpack.c.0.s8 %v4082
      %v4084 = vlaneseq
      %v4085 = vshrl.u32 %v4084, 7
      %v4086 = vsub.s32 %v4083, %v4085
      %v4087 = vrot.slane %v4079, %v4086
      %v4089 = vunpack.c.l.s4 1983009808
      %v4090 = vunpack.c.0.s8 %v4089
      %v4091 = vlaneseq
      %v4092 = vshrl.u32 %v4091, 7
      %v4093 = vsub.s32 %v4090, %v4092
      %v4094 = vrot.slane %v4080, %v4093
      %v4095 = vcombine.low %v3744, %v3832
      %v4096 = vcombine.high %v3744, %v3832
      %v4098 = vunpack.c.l.s4 1983009808
      %v4099 = vunpack.c.0.s8 %v4098
      %v4100 = vlaneseq
      %v4101 = vshrl.u32 %v4100, 7
      %v4102 = vsub.s32 %v4099, %v4101
      %v4103 = vrot.slane %v4095, %v4102
      %v4105 = vunpack.c.l.s4 1983009808
      %v4106 = vunpack.c.0.s8 %v4105
      %v4107 = vlaneseq
      %v4108 = vshrl.u32 %v4107, 7
      %v4109 = vsub.s32 %v4106, %v4108
      %v4110 = vrot.slane %v4096, %v4109
      %v4111 = vcombine.low %v4087, %v4103
      %v4112 = vcombine.high %v4087, %v4103
      %v4114 = vunpack.c.l.s4 1934713408
      %v4115 = vunpack.c.0.s8 %v4114
      %v4116 = vlaneseq
      %v4117 = vshrl.u32 %v4116, 7
      %v4118 = vsub.s32 %v4115, %v4117
      %v4119 = vrot.slane %v4111, %v4118
      %v4121 = vunpack.c.l.s4 1934713408
      %v4122 = vunpack.c.0.s8 %v4121
      %v4123 = vlaneseq
      %v4124 = vshrl.u32 %v4123, 7
      %v4125 = vsub.s32 %v4122, %v4124
      %v4126 = vrot.slane %v4112, %v4125
      %v4127 = vcombine.low %v4094, %v4110
      %v4128 = vcombine.high %v4094, %v4110
      %v4130 = vunpack.c.l.s4 1934713408
      %v4131 = vunpack.c.0.s8 %v4130
      %v4132 = vlaneseq
      %v4133 = vshrl.u32 %v4132, 7
      %v4134 = vsub.s32 %v4131, %v4133
      %v4135 = vrot.slane %v4127, %v4134
      %v4137 = vunpack.c.l.s4 1934713408
      %v4138 = vunpack.c.0.s8 %v4137
      %v4139 = vlaneseq
      %v4140 = vshrl.u32 %v4139, 7
      %v4141 = vsub.s32 %v4138, %v4140
      %v4142 = vrot.slane %v4128, %v4141
      %v4143 = vcombine.high %v4119, 0.0
      %v4144 = vcombine.high %v4126, 0.0
      %v4145 = vcombine.high %v4135, 0.0
      %v4146 = vcombine.high %v4142, 0.0
      %v4147 = vcombine.low %v3873, %v3961
      %v4148 = vcombine.high %v3873, %v3961
      %v4150 = vunpack.c.l.s4 1983009808
      %v4151 = vunpack.c.0.s8 %v4150
      %v4152 = vlaneseq
      %v4153 = vshrl.u32 %v4152, 7
      %v4154 = vsub.s32 %v4151, %v4153
      %v4155 = vrot.slane %v4147, %v4154
      %v4157 = vunpack.c.l.s4 1983009808
      %v4158 = vunpack.c.0.s8 %v4157
      %v4159 = vlaneseq
      %v4160 = vshrl.u32 %v4159, 7
      %v4161 = vsub.s32 %v4158, %v4160
      %v4162 = vrot.slane %v4148, %v4161
      %v4163 = vcombine.low %v3917, %v4005
      %v4164 = vcombine.high %v3917, %v4005
      %v4166 = vunpack.c.l.s4 1983009808
      %v4167 = vunpack.c.0.s8 %v4166
      %v4168 = vlaneseq
      %v4169 = vshrl.u32 %v4168, 7
      %v4170 = vsub.s32 %v4167, %v4169
      %v4171 = vrot.slane %v4163, %v4170
      %v4173 = vunpack.c.l.s4 1983009808
      %v4174 = vunpack.c.0.s8 %v4173
      %v4175 = vlaneseq
      %v4176 = vshrl.u32 %v4175, 7
      %v4177 = vsub.s32 %v4174, %v4176
      %v4178 = vrot.slane %v4164, %v4177
      %v4179 = vcombine.low %v4155, %v4171
      %v4180 = vcombine.high %v4155, %v4171
      %v4182 = vunpack.c.l.s4 1934713408
      %v4183 = vunpack.c.0.s8 %v4182
      %v4184 = vlaneseq
      %v4185 = vshrl.u32 %v4184, 7
      %v4186 = vsub.s32 %v4183, %v4185
      %v4187 = vrot.slane %v4179, %v4186
      %v4189 = vunpack.c.l.s4 1934713408
      %v4190 = vunpack.c.0.s8 %v4189
      %v4191 = vlaneseq
      %v4192 = vshrl.u32 %v4191, 7
      %v4193 = vsub.s32 %v4190, %v4192
      %v4194 = vrot.slane %v4180, %v4193
      %v4195 = vcombine.low %v4162, %v4178
      %v4196 = vcombine.high %v4162, %v4178
      %v4198 = vunpack.c.l.s4 1934713408
      %v4199 = vunpack.c.0.s8 %v4198
      %v4200 = vlaneseq
      %v4201 = vshrl.u32 %v4200, 7
      %v4202 = vsub.s32 %v4199, %v4201
      %v4203 = vrot.slane %v4195, %v4202
      %v4205 = vunpack.c.l.s4 1934713408
      %v4206 = vunpack.c.0.s8 %v4205
      %v4207 = vlaneseq
      %v4208 = vshrl.u32 %v4207, 7
      %v4209 = vsub.s32 %v4206, %v4208
      %v4210 = vrot.slane %v4196, %v4209
      %v4211 = vcombine.high %v4187, 0.0
      %v4212 = vcombine.high %v4194, 0.0
      %v4213 = vcombine.high %v4203, 0.0
      %v4214 = vcombine.high %v4210, 0.0
      %v4215 = vcombine.low %v3876, %v3964
      %v4216 = vcombine.high %v3876, %v3964
      %v4218 = vunpack.c.l.s4 1983009808
      %v4219 = vunpack.c.0.s8 %v4218
      %v4220 = vlaneseq
      %v4221 = vshrl.u32 %v4220, 7
      %v4222 = vsub.s32 %v4219, %v4221
      %v4223 = vrot.slane %v4215, %v4222
      %v4225 = vunpack.c.l.s4 1983009808
      %v4226 = vunpack.c.0.s8 %v4225
      %v4227 = vlaneseq
      %v4228 = vshrl.u32 %v4227, 7
      %v4229 = vsub.s32 %v4226, %v4228
      %v4230 = vrot.slane %v4216, %v4229
      %v4231 = vcombine.low %v3920, %v4008
      %v4232 = vcombine.high %v3920, %v4008
      %v4234 = vunpack.c.l.s4 1983009808
      %v4235 = vunpack.c.0.s8 %v4234
      %v4236 = vlaneseq
      %v4237 = vshrl.u32 %v4236, 7
      %v4238 = vsub.s32 %v4235, %v4237
      %v4239 = vrot.slane %v4231, %v4238
      %v4241 = vunpack.c.l.s4 1983009808
      %v4242 = vunpack.c.0.s8 %v4241
      %v4243 = vlaneseq
      %v4244 = vshrl.u32 %v4243, 7
      %v4245 = vsub.s32 %v4242, %v4244
      %v4246 = vrot.slane %v4232, %v4245
      %v4247 = vcombine.low %v4223, %v4239
      %v4248 = vcombine.high %v4223, %v4239
      %v4250 = vunpack.c.l.s4 1934713408
      %v4251 = vunpack.c.0.s8 %v4250
      %v4252 = vlaneseq
      %v4253 = vshrl.u32 %v4252, 7
      %v4254 = vsub.s32 %v4251, %v4253
      %v4255 = vrot.slane %v4247, %v4254
      %v4257 = vunpack.c.l.s4 1934713408
      %v4258 = vunpack.c.0.s8 %v4257
      %v4259 = vlaneseq
      %v4260 = vshrl.u32 %v4259, 7
      %v4261 = vsub.s32 %v4258, %v4260
      %v4262 = vrot.slane %v4248, %v4261
      %v4263 = vcombine.low %v4230, %v4246
      %v4264 = vcombine.high %v4230, %v4246
      %v4266 = vunpack.c.l.s4 1934713408
      %v4267 = vunpack.c.0.s8 %v4266
      %v4268 = vlaneseq
      %v4269 = vshrl.u32 %v4268, 7
      %v4270 = vsub.s32 %v4267, %v4269
      %v4271 = vrot.slane %v4263, %v4270
      %v4273 = vunpack.c.l.s4 1934713408
      %v4274 = vunpack.c.0.s8 %v4273
      %v4275 = vlaneseq
      %v4276 = vshrl.u32 %v4275, 7
      %v4277 = vsub.s32 %v4274, %v4276
      %v4278 = vrot.slane %v4264, %v4277
      %v4279 = vcombine.high %v4255, 0.0
      %v4280 = vcombine.high %v4262, 0.0
      %v4281 = vcombine.high %v4271, 0.0
      %v4282 = vcombine.high %v4278, 0.0
      %v4283 = vcombine.low %v4051, %v4058
      %v4285 = vunpack.c.l.s4 1983009808
      %v4286 = vunpack.c.0.s8 %v4285
      %v4287 = vlaneseq
      %v4288 = vshrl.u32 %v4287, 7
      %v4289 = vsub.s32 %v4286, %v4288
      %v4290 = vrot.slane %v4283, %v4289
      %v4291 = vcombine.low %v4075, %v4076
      %v4293 = vunpack.c.l.s4 1983009808
      %v4294 = vunpack.c.0.s8 %v4293
      %v4295 = vlaneseq
      %v4296 = vshrl.u32 %v4295, 7
      %v4297 = vsub.s32 %v4294, %v4296
      %v4298 = vrot.slane %v4291, %v4297
      %v4299 = vcombine.low %v4067, %v4074
      %v4301 = vunpack.c.l.s4 1983009808
      %v4302 = vunpack.c.0.s8 %v4301
      %v4303 = vlaneseq
      %v4304 = vshrl.u32 %v4303, 7
      %v4305 = vsub.s32 %v4302, %v4304
      %v4306 = vrot.slane %v4299, %v4305
      %v4307 = vcombine.low %v4077, %v4078
      %v4309 = vunpack.c.l.s4 1983009808
      %v4310 = vunpack.c.0.s8 %v4309
      %v4311 = vlaneseq
      %v4312 = vshrl.u32 %v4311, 7
      %v4313 = vsub.s32 %v4310, %v4312
      %v4314 = vrot.slane %v4307, %v4313
      %v4315 = vcombine.low %v4290, %v4298
      %v4316 = vcombine.high %v4290, %v4298
      %v4318 = vunpack.c.l.s4 1934713408
      %v4319 = vunpack.c.0.s8 %v4318
      %v4320 = vlaneseq
      %v4321 = vshrl.u32 %v4320, 7
      %v4322 = vsub.s32 %v4319, %v4321
      %v4323 = vrot.slane %v4315, %v4322
      %v4325 = vunpack.c.l.s4 1934713408
      %v4326 = vunpack.c.0.s8 %v4325
      %v4327 = vlaneseq
      %v4328 = vshrl.u32 %v4327, 7
      %v4329 = vsub.s32 %v4326, %v4328
      %v4330 = vrot.slane %v4316, %v4329
      %v4331 = vcombine.low %v4306, %v4314
      %v4332 = vcombine.high %v4306, %v4314
      %v4334 = vunpack.c.l.s4 1934713408
      %v4335 = vunpack.c.0.s8 %v4334
      %v4336 = vlaneseq
      %v4337 = vshrl.u32 %v4336, 7
      %v4338 = vsub.s32 %v4335, %v4337
      %v4339 = vrot.slane %v4331, %v4338
      %v4341 = vunpack.c.l.s4 1934713408
      %v4342 = vunpack.c.0.s8 %v4341
      %v4343 = vlaneseq
      %v4344 = vshrl.u32 %v4343, 7
      %v4345 = vsub.s32 %v4342, %v4344
      %v4346 = vrot.slane %v4332, %v4345
      %v4347 = vcombine.low %v4323, %v4339
      %v4348 = vcombine.high %v4323, %v4339
      %v4349 = vcombine.low %v4330, %v4346
      %v4350 = vcombine.high %v4330, %v4346
      %v4351 = vcombine.low %v4119, %v4126
      %v4353 = vunpack.c.l.s4 1983009808
      %v4354 = vunpack.c.0.s8 %v4353
      %v4355 = vlaneseq
      %v4356 = vshrl.u32 %v4355, 7
      %v4357 = vsub.s32 %v4354, %v4356
      %v4358 = vrot.slane %v4351, %v4357
      %v4359 = vcombine.low %v4143, %v4144
      %v4361 = vunpack.c.l.s4 1983009808
      %v4362 = vunpack.c.0.s8 %v4361
      %v4363 = vlaneseq
      %v4364 = vshrl.u32 %v4363, 7
      %v4365 = vsub.s32 %v4362, %v4364
      %v4366 = vrot.slane %v4359, %v4365
      %v4367 = vcombine.low %v4135, %v4142
      %v4369 = vunpack.c.l.s4 1983009808
      %v4370 = vunpack.c.0.s8 %v4369
      %v4371 = vlaneseq
      %v4372 = vshrl.u32 %v4371, 7
      %v4373 = vsub.s32 %v4370, %v4372
      %v4374 = vrot.slane %v4367, %v4373
      %v4375 = vcombine.low %v4145, %v4146
      %v4377 = vunpack.c.l.s4 1983009808
      %v4378 = vunpack.c.0.s8 %v4377
      %v4379 = vlaneseq
      %v4380 = vshrl.u32 %v4379, 7
      %v4381 = vsub.s32 %v4378, %v4380
      %v4382 = vrot.slane %v4375, %v4381
      %v4383 = vcombine.low %v4358, %v4366
      %v4384 = vcombine.high %v4358, %v4366
      %v4386 = vunpack.c.l.s4 1934713408
      %v4387 = vunpack.c.0.s8 %v4386
      %v4388 = vlaneseq
      %v4389 = vshrl.u32 %v4388, 7
      %v4390 = vsub.s32 %v4387, %v4389
      %v4391 = vrot.slane %v4383, %v4390
      %v4393 = vunpack.c.l.s4 1934713408
      %v4394 = vunpack.c.0.s8 %v4393
      %v4395 = vlaneseq
      %v4396 = vshrl.u32 %v4395, 7
      %v4397 = vsub.s32 %v4394, %v4396
      %v4398 = vrot.slane %v4384, %v4397
      %v4399 = vcombine.low %v4374, %v4382
      %v4400 = vcombine.high %v4374, %v4382
      %v4402 = vunpack.c.l.s4 1934713408
      %v4403 = vunpack.c.0.s8 %v4402
      %v4404 = vlaneseq
      %v4405 = vshrl.u32 %v4404, 7
      %v4406 = vsub.s32 %v4403, %v4405
      %v4407 = vrot.slane %v4399, %v4406
      %v4409 = vunpack.c.l.s4 1934713408
      %v4410 = vunpack.c.0.s8 %v4409
      %v4411 = vlaneseq
      %v4412 = vshrl.u32 %v4411, 7
      %v4413 = vsub.s32 %v4410, %v4412
      %v4414 = vrot.slane %v4400, %v4413
      %v4415 = vcombine.low %v4391, %v4407
      %v4416 = vcombine.high %v4391, %v4407
      %v4417 = vcombine.low %v4398, %v4414
      %v4418 = vcombine.high %v4398, %v4414
      %v4419 = vcombine.low %v4187, %v4194
      %v4421 = vunpack.c.l.s4 1983009808
      %v4422 = vunpack.c.0.s8 %v4421
      %v4423 = vlaneseq
      %v4424 = vshrl.u32 %v4423, 7
      %v4425 = vsub.s32 %v4422, %v4424
      %v4426 = vrot.slane %v4419, %v4425
      %v4427 = vcombine.low %v4211, %v4212
      %v4429 = vunpack.c.l.s4 1983009808
      %v4430 = vunpack.c.0.s8 %v4429
      %v4431 = vlaneseq
      %v4432 = vshrl.u32 %v4431, 7
      %v4433 = vsub.s32 %v4430, %v4432
      %v4434 = vrot.slane %v4427, %v4433
      %v4435 = vcombine.low %v4203, %v4210
      %v4437 = vunpack.c.l.s4 1983009808
      %v4438 = vunpack.c.0.s8 %v4437
      %v4439 = vlaneseq
      %v4440 = vshrl.u32 %v4439, 7
      %v4441 = vsub.s32 %v4438, %v4440
      %v4442 = vrot.slane %v4435, %v4441
      %v4443 = vcombine.low %v4213, %v4214
      %v4445 = vunpack.c.l.s4 1983009808
      %v4446 = vunpack.c.0.s8 %v4445
      %v4447 = vlaneseq
      %v4448 = vshrl.u32 %v4447, 7
      %v4449 = vsub.s32 %v4446, %v4448
      %v4450 = vrot.slane %v4443, %v4449
      %v4451 = vcombine.low %v4426, %v4434
      %v4452 = vcombine.high %v4426, %v4434
      %v4454 = vunpack.c.l.s4 1934713408
      %v4455 = vunpack.c.0.s8 %v4454
      %v4456 = vlaneseq
      %v4457 = vshrl.u32 %v4456, 7
      %v4458 = vsub.s32 %v4455, %v4457
      %v4459 = vrot.slane %v4451, %v4458
      %v4461 = vunpack.c.l.s4 1934713408
      %v4462 = vunpack.c.0.s8 %v4461
      %v4463 = vlaneseq
      %v4464 = vshrl.u32 %v4463, 7
      %v4465 = vsub.s32 %v4462, %v4464
      %v4466 = vrot.slane %v4452, %v4465
      %v4467 = vcombine.low %v4442, %v4450
      %v4468 = vcombine.high %v4442, %v4450
      %v4470 = vunpack.c.l.s4 1934713408
      %v4471 = vunpack.c.0.s8 %v4470
      %v4472 = vlaneseq
      %v4473 = vshrl.u32 %v4472, 7
      %v4474 = vsub.s32 %v4471, %v4473
      %v4475 = vrot.slane %v4467, %v4474
      %v4477 = vunpack.c.l.s4 1934713408
      %v4478 = vunpack.c.0.s8 %v4477
      %v4479 = vlaneseq
      %v4480 = vshrl.u32 %v4479, 7
      %v4481 = vsub.s32 %v4478, %v4480
      %v4482 = vrot.slane %v4468, %v4481
      %v4483 = vcombine.low %v4459, %v4475
      %v4484 = vcombine.high %v4459, %v4475
      %v4485 = vcombine.low %v4466, %v4482
      %v4486 = vcombine.high %v4466, %v4482
      %v4487 = vcombine.low %v4255, %v4262
      %v4489 = vunpack.c.l.s4 1983009808
      %v4490 = vunpack.c.0.s8 %v4489
      %v4491 = vlaneseq
      %v4492 = vshrl.u32 %v4491, 7
      %v4493 = vsub.s32 %v4490, %v4492
      %v4494 = vrot.slane %v4487, %v4493
      %v4495 = vcombine.low %v4279, %v4280
      %v4497 = vunpack.c.l.s4 1983009808
      %v4498 = vunpack.c.0.s8 %v4497
      %v4499 = vlaneseq
      %v4500 = vshrl.u32 %v4499, 7
      %v4501 = vsub.s32 %v4498, %v4500
      %v4502 = vrot.slane %v4495, %v4501
      %v4503 = vcombine.low %v4271, %v4278
      %v4505 = vunpack.c.l.s4 1983009808
      %v4506 = vunpack.c.0.s8 %v4505
      %v4507 = vlaneseq
      %v4508 = vshrl.u32 %v4507, 7
      %v4509 = vsub.s32 %v4506, %v4508
      %v4510 = vrot.slane %v4503, %v4509
      %v4511 = vcombine.low %v4281, %v4282
      %v4513 = vunpack.c.l.s4 1983009808
      %v4514 = vunpack.c.0.s8 %v4513
      %v4515 = vlaneseq
      %v4516 = vshrl.u32 %v4515, 7
      %v4517 = vsub.s32 %v4514, %v4516
      %v4518 = vrot.slane %v4511, %v4517
      %v4519 = vcombine.low %v4494, %v4502
      %v4520 = vcombine.high %v4494, %v4502
      %v4522 = vunpack.c.l.s4 1934713408
      %v4523 = vunpack.c.0.s8 %v4522
      %v4524 = vlaneseq
      %v4525 = vshrl.u32 %v4524, 7
      %v4526 = vsub.s32 %v4523, %v4525
      %v4527 = vrot.slane %v4519, %v4526
      %v4529 = vunpack.c.l.s4 1934713408
      %v4530 = vunpack.c.0.s8 %v4529
      %v4531 = vlaneseq
      %v4532 = vshrl.u32 %v4531, 7
      %v4533 = vsub.s32 %v4530, %v4532
      %v4534 = vrot.slane %v4520, %v4533
      %v4535 = vcombine.low %v4510, %v4518
      %v4536 = vcombine.high %v4510, %v4518
      %v4538 = vunpack.c.l.s4 1934713408
      %v4539 = vunpack.c.0.s8 %v4538
      %v4540 = vlaneseq
      %v4541 = vshrl.u32 %v4540, 7
      %v4542 = vsub.s32 %v4539, %v4541
      %v4543 = vrot.slane %v4535, %v4542
      %v4545 = vunpack.c.l.s4 1934713408
      %v4546 = vunpack.c.0.s8 %v4545
      %v4547 = vlaneseq
      %v4548 = vshrl.u32 %v4547, 7
      %v4549 = vsub.s32 %v4546, %v4548
      %v4550 = vrot.slane %v4536, %v4549
      %v4551 = vcombine.low %v4527, %v4543
      %v4552 = vcombine.high %v4527, %v4543
      %v4553 = vcombine.low %v4534, %v4550
      %v4554 = vcombine.high %v4534, %v4550
      %4559 = vrot.lane.b32.xlu0 %v4348, 32
      %v4560 = vpop.permute.xlu0 %4559
      %4561 = vrot.lane.b32.xlu0 %v4416, 32
      %v4562 = vpop.permute.xlu0 %4561
      %4563 = vrot.lane.b32.xlu0 %v4484, 32
      %v4564 = vpop.permute.xlu0 %4563
      %4565 = vrot.lane.b32.xlu0 %v4552, 32
      %v4566 = vpop.permute.xlu0 %4565
      %4575 = vrot.lane.b32.xlu0 %v4349, 64
      %v4576 = vpop.permute.xlu0 %4575
      %4577 = vrot.lane.b32.xlu0 %v4417, 64
      %v4578 = vpop.permute.xlu0 %4577
      %4579 = vrot.lane.b32.xlu0 %v4485, 64
      %v4580 = vpop.permute.xlu0 %4579
      %4581 = vrot.lane.b32.xlu0 %v4553, 64
      %v4582 = vpop.permute.xlu0 %4581
      %4591 = vrot.lane.b32.xlu0 %v4350, 96
      %v4592 = vpop.permute.xlu0 %4591
      %4593 = vrot.lane.b32.xlu0 %v4418, 96
      %v4594 = vpop.permute.xlu0 %4593
      %4595 = vrot.lane.b32.xlu0 %v4486, 96
      %v4596 = vpop.permute.xlu0 %4595
      %4597 = vrot.lane.b32.xlu0 %v4554, 96
      %v4598 = vpop.permute.xlu0 %4597
      %v4603 = vsel %vm3076, %v4347, %v4560
      %v4604 = vsel %vm3076, %v4415, %v4562
      %v4605 = vsel %vm3076, %v4483, %v4564
      %v4606 = vsel %vm3076, %v4551, %v4566
      %vm4607 = vcmask 523264
      %v4608 = vsel %vm4607, %v4603, %v4576
      %v4609 = vsel %vm4607, %v4604, %v4578
      %v4610 = vsel %vm4607, %v4605, %v4580
      %v4611 = vsel %vm4607, %v4606, %v4582
      %vm4612 = vcmask 785408
      %v4613 = vsel %vm4612, %v4608, %v4592
      %v4614 = vsel %vm4612, %v4609, %v4594
      %v4615 = vsel %vm4612, %v4610, %v4596
      %v4616 = vsel %vm4612, %v4611, %v4598
      %v4617 = vpack.c.bf16 %v4614, %v4613
      %v4618 = vpack.c.bf16 %v4616, %v4615
      %v4619 = vld [vmem:[%s387] sm:$0xff]
      %v4620 = vld [vmem:[%s387 + $0x8] sm:$0xff]
      %v4621 = vld [vmem:[%s387 + $0x10] sm:$0xff]
      %v4622 = vld [vmem:[%s387 + $0x18] sm:$0xff]
      %v4623 = vunpack.c.l.s8.bf16 %v4619
      %v4624 = vunpack.c.h.s8.bf16 %v4619
      %v4625 = vunpack.c.l.s8.bf16 %v4620
      %v4626 = vunpack.c.h.s8.bf16 %v4620
      %v4627 = vunpack.c.l.s8.bf16 %v4621
      %v4628 = vunpack.c.h.s8.bf16 %v4621
      %v4629 = vunpack.c.l.s8.bf16 %v4622
      %v4630 = vunpack.c.h.s8.bf16 %v4622
      %4631 = vmatprep.subr.bf16.mxu0 0
      %4632 = vmatpush1.bf16.msra.mxu0 %v4623
      %4633 = vmatprep.subr.bf16.mxu0 0
      %4634 = vmatpush1.bf16.msra.mxu0 %v4624
      %4635 = vmatprep.subr.bf16.mxu0 0
      %4636 = vmatpush1.bf16.msra.mxu0 %v4625
      %4637 = vmatprep.subr.bf16.mxu0 0
      %4638 = vmatpush1.bf16.msra.mxu0 %v4626
      %4639 = vmatprep.subr.bf16.mxu0 0
      %4640 = vmatpush1.bf16.msra.mxu0 %v4627
      %4641 = vmatprep.subr.bf16.mxu0 0
      %4642 = vmatpush1.bf16.msra.mxu0 %v4628
      %4643 = vmatprep.subr.bf16.mxu0 0
      %4644 = vmatpush1.bf16.msra.mxu0 %v4629
      %4645 = vmatprep.subr.bf16.mxu0 0
      %4646 = vmatpush1.bf16.msra.mxu0 %v4630
      %4647 = vmatprep.subr.bf16.mxu0 0
      %4648 = vmatpush1.bf16.msra.mxu0 0
      %4649 = vmatprep.subr.bf16.mxu0 0
      %4650 = vmatpush1.bf16.msra.mxu0 0
      %4651 = vmatprep.subr.bf16.mxu0 0
      %4652 = vmatpush1.bf16.msra.mxu0 0
      %4653 = vmatprep.subr.bf16.mxu0 0
      %4654 = vmatpush1.bf16.msra.mxu0 0
      %4655 = vmatprep.subr.bf16.mxu0 0
      %4656 = vmatpush1.bf16.msra.mxu0 0
      %4657 = vmatprep.subr.bf16.mxu0 0
      %4658 = vmatpush1.bf16.msra.mxu0 0
      %4659 = vmatprep.subr.bf16.mxu0 0
      %4660 = vmatpush1.bf16.msra.mxu0 0
      %4661 = vmatprep.subr.bf16.mxu0 0
      %4662 = vmatpush1.bf16.msra.mxu0 0
      %4663 = vmatprep.mubr.bf16.mxu0 0
      %4664 = vmatmul.mubr.bf16.gmra.mrb[0].mxu0 %v4617
      %v4665 = vpop.f32.mrb[0].mxu0
      %v4666 = vadd.f32 0.0, %v4665
      %v4667 = vpop.f32.mrb[0].mxu0
      %v4668 = vpop.f32.mrb[0].mxu0
      %v4669 = vadd.f32 0.0, %v4668
      %v4670 = vpop.f32.mrb[0].mxu0
      %4671 = vmatprep.mubr.bf16.mxu0 0
      %4672 = vmatmul.mubr.bf16.gmra.mrb[0].mxu0 %v4618
      %v4673 = vpop.f32.mrb[0].mxu0
      %v4674 = vadd.f32 0.0, %v4673
      %v4675 = vpop.f32.mrb[0].mxu0
      %v4676 = vpop.f32.mrb[0].mxu0
      %v4677 = vadd.f32 0.0, %v4676
      %v4678 = vpop.f32.mrb[0].mxu0
      %4679 = vdwg.mxu0
      %v4680 = vlaneseq
      %v4681 = vshrl.u32 %v4680, 7
      %v4682 = vsub.s32 2, %v4681
      %v4683 = vrot.slane %v1046, %v4682
      %v4684 = vmul.f32 %v4666, %v4683
      %v4685 = vmul.f32 %v4669, %v4683
      %v4686 = vmul.f32 %v4674, %v4683
      %v4687 = vmul.f32 %v4677, %v4683
      %v4688 = vlaneseq
      %v4689 = vshrl.u32 %v4688, 7
      %v4690 = vsub.s32 1, %v4689
      %v4691 = vrot.slane %v1046, %v4690
      %v4692 = vadd.f32 %v4684, %v4691
      %v4693 = vadd.f32 %v4685, %v4691
      %v4694 = vadd.f32 %v4686, %v4691
      %v4695 = vadd.f32 %v4687, %v4691
      %v4696 = vadd.f32 %v1047, %v4692
      %v4697 = vadd.f32 %v1048, %v4693
      %v4698 = vadd.f32 %v1049, %v4694
      %v4699 = vadd.f32 %v1050, %v4695
      %4700 = vadd.xlane.f32.xlu0 %v4696
      %v4701 = vpop.xlane.xlu0 %4700
      %4702 = vadd.xlane.f32.xlu0 %v4697
      %v4703 = vpop.xlane.xlu0 %4702
      %4704 = vadd.xlane.f32.xlu0 %v4698
      %v4705 = vpop.xlane.xlu0 %4704
      %4706 = vadd.xlane.f32.xlu0 %v4699
      %v4707 = vpop.xlane.xlu0 %4706
      %v4708 = vmul.f32 %v4701, %v1059
      %v4709 = vmul.f32 %v4703, %v1059
      %v4710 = vmul.f32 %v4705, %v1059
      %v4711 = vmul.f32 %v4707, %v1059
      %v4712 = vsub.f32 %v4696, %v4708
      %v4713 = vsub.f32 %v4697, %v4709
      %v4714 = vsub.f32 %v4698, %v4710
      %v4715 = vsub.f32 %v4699, %v4711
      %v4716 = vmul.f32 %v4712, %v4712
      %v4717 = vmul.f32 %v4713, %v4713
      %v4718 = vmul.f32 %v4714, %v4714
      %v4719 = vmul.f32 %v4715, %v4715
      %4720 = vadd.xlane.f32.xlu0 %v4716
      %v4721 = vpop.xlane.xlu0 %4720
      %4722 = vadd.xlane.f32.xlu0 %v4717
      %v4723 = vpop.xlane.xlu0 %4722
      %4724 = vadd.xlane.f32.xlu0 %v4718
      %v4725 = vpop.xlane.xlu0 %4724
      %4726 = vadd.xlane.f32.xlu0 %v4719
      %v4727 = vpop.xlane.xlu0 %4726
      %v4728 = vmul.f32 %v4721, %v1059
      %v4729 = vmul.f32 %v4723, %v1059
      %v4730 = vmul.f32 %v4725, %v1059
      %v4731 = vmul.f32 %v4727, %v1059
      %v4732 = vadd.f32 %v4728, 1e-05
      %v4733 = vadd.f32 %v4729, 1e-05
      %v4734 = vadd.f32 %v4730, 1e-05
      %v4735 = vadd.f32 %v4731, 1e-05
      %v4736 = vrsqrt.pop %v4732
      %v4737 = vrsqrt.pop %v4733
      %v4738 = vrsqrt.pop %v4734
      %v4739 = vrsqrt.pop %v4735
      %v4740 = vmul.f32 %v4712, %v4736
      %v4741 = vmul.f32 %v4713, %v4737
      %v4742 = vmul.f32 %v4714, %v4738
      %v4743 = vmul.f32 %v4715, %v4739
      %v4744 = vlaneseq
      %v4745 = vshrl.u32 %v4744, 7
      %v4746 = vsub.s32 0, %v4745
      %v4747 = vrot.slane %v1045, %v4746
      %v4748 = vmul.f32 %v4740, %v4747
      %v4749 = vmul.f32 %v4741, %v4747
      %v4750 = vmul.f32 %v4742, %v4747
      %v4751 = vmul.f32 %v4743, %v4747
      %v4752 = vlaneseq
      %v4753 = vshrl.u32 %v4752, 7
      %v4754 = vsub.s32 0, %v4753
      %v4755 = vrot.slane %v1046, %v4754
      %v4756 = vadd.f32 %v4748, %v4755
      %v4757 = vadd.f32 %v4749, %v4755
      %v4758 = vadd.f32 %v4750, %v4755
      %v4759 = vadd.f32 %v4751, %v4755
      %v4760 = vpack.c.bf16 %v4757, %v4756
      %v4761 = vpack.c.bf16 %v4759, %v4758
      %v4762 = vld [vmem:[%s392] sm:$0xff]
      %v4763 = vld [vmem:[%s392 + $0x8] sm:$0xff]
      %v4764 = vld [vmem:[%s392 + $0x10] sm:$0xff]
      %v4765 = vld [vmem:[%s392 + $0x18] sm:$0xff]
      %v4766 = vld [vmem:[%s392 + $0x20] sm:$0xff]
      %v4767 = vld [vmem:[%s392 + $0x28] sm:$0xff]
      %v4768 = vld [vmem:[%s392 + $0x30] sm:$0xff]
      %v4769 = vld [vmem:[%s392 + $0x38] sm:$0xff]
      %v4770 = vld [vmem:[%s392 + $0x40] sm:$0xff]
      %v4771 = vld [vmem:[%s392 + $0x48] sm:$0xff]
      %v4772 = vld [vmem:[%s392 + $0x50] sm:$0xff]
      %v4773 = vld [vmem:[%s392 + $0x58] sm:$0xff]
      %v4774 = vld [vmem:[%s392 + $0x60] sm:$0xff]
      %v4775 = vld [vmem:[%s392 + $0x68] sm:$0xff]
      %v4776 = vld [vmem:[%s392 + $0x70] sm:$0xff]
      %v4777 = vld [vmem:[%s392 + $0x78] sm:$0xff]
      %v4778 = vunpack.c.l.s8.bf16 %v4762
      %v4779 = vunpack.c.l.s8.bf16 %v4763
      %v4780 = vunpack.c.l.s8.bf16 %v4764
      %v4781 = vunpack.c.l.s8.bf16 %v4765
      %v4782 = vunpack.c.h.s8.bf16 %v4762
      %v4783 = vunpack.c.h.s8.bf16 %v4763
      %v4784 = vunpack.c.h.s8.bf16 %v4764
      %v4785 = vunpack.c.h.s8.bf16 %v4765
      %v4786 = vunpack.c.l.s8.bf16 %v4766
      %v4787 = vunpack.c.l.s8.bf16 %v4767
      %v4788 = vunpack.c.l.s8.bf16 %v4768
      %v4789 = vunpack.c.l.s8.bf16 %v4769
      %v4790 = vunpack.c.h.s8.bf16 %v4766
      %v4791 = vunpack.c.h.s8.bf16 %v4767
      %v4792 = vunpack.c.h.s8.bf16 %v4768
      %v4793 = vunpack.c.h.s8.bf16 %v4769
      %v4794 = vunpack.c.l.s8.bf16 %v4770
      %v4795 = vunpack.c.l.s8.bf16 %v4771
      %v4796 = vunpack.c.l.s8.bf16 %v4772
      %v4797 = vunpack.c.l.s8.bf16 %v4773
      %v4798 = vunpack.c.h.s8.bf16 %v4770
      %v4799 = vunpack.c.h.s8.bf16 %v4771
      %v4800 = vunpack.c.h.s8.bf16 %v4772
      %v4801 = vunpack.c.h.s8.bf16 %v4773
      %v4802 = vunpack.c.l.s8.bf16 %v4774
      %v4803 = vunpack.c.l.s8.bf16 %v4775
      %v4804 = vunpack.c.l.s8.bf16 %v4776
      %v4805 = vunpack.c.l.s8.bf16 %v4777
      %v4806 = vunpack.c.h.s8.bf16 %v4774
      %v4807 = vunpack.c.h.s8.bf16 %v4775
      %v4808 = vunpack.c.h.s8.bf16 %v4776
      %v4809 = vunpack.c.h.s8.bf16 %v4777
      %4810 = vmatprep.subr.bf16.mxu0 %v4779
      %4811 = vmatpush1.bf16.msra.mxu0 %v4778
      %4812 = vmatprep.subr.bf16.mxu0 %v4783
      %4813 = vmatpush1.bf16.msra.mxu0 %v4782
      %4814 = vmatprep.subr.bf16.mxu0 %v4787
      %4815 = vmatpush1.bf16.msra.mxu0 %v4786
      %4816 = vmatprep.subr.bf16.mxu0 %v4791
      %4817 = vmatpush1.bf16.msra.mxu0 %v4790
      %4818 = vmatprep.subr.bf16.mxu0 %v4795
      %4819 = vmatpush1.bf16.msra.mxu0 %v4794
      %4820 = vmatprep.subr.bf16.mxu0 %v4799
      %4821 = vmatpush1.bf16.msra.mxu0 %v4798
      %4822 = vmatprep.subr.bf16.mxu0 %v4803
      %4823 = vmatpush1.bf16.msra.mxu0 %v4802
      %4824 = vmatprep.subr.bf16.mxu0 %v4807
      %4825 = vmatpush1.bf16.msra.mxu0 %v4806
      %4826 = vmatprep.subr.bf16.mxu0 0
      %4827 = vmatpush1.bf16.msra.mxu0 0
      %4828 = vmatprep.subr.bf16.mxu0 0
      %4829 = vmatpush1.bf16.msra.mxu0 0
      %4830 = vmatprep.subr.bf16.mxu0 0
      %4831 = vmatpush1.bf16.msra.mxu0 0
      %4832 = vmatprep.subr.bf16.mxu0 0
      %4833 = vmatpush1.bf16.msra.mxu0 0
      %4834 = vmatprep.subr.bf16.mxu0 0
      %4835 = vmatpush1.bf16.msra.mxu0 0
      %4836 = vmatprep.subr.bf16.mxu0 0
      %4837 = vmatpush1.bf16.msra.mxu0 0
      %4838 = vmatprep.subr.bf16.mxu0 0
      %4839 = vmatpush1.bf16.msra.mxu0 0
      %4840 = vmatprep.subr.bf16.mxu0 0
      %4841 = vmatpush1.bf16.msra.mxu0 0
      %4842 = vmatprep.mubr.bf16.mxu0 0
      %4843 = vmatmul.mubr.bf16.gmra.mrb[0].mxu0 %v4760
      %v4844 = vpop.f32.mrb[0].mxu0
      %v4845 = vadd.f32 0.0, %v4844
      %v4846 = vpop.f32.mrb[0].mxu0
      %v4847 = vadd.f32 0.0, %v4846
      %v4848 = vpop.f32.mrb[0].mxu0
      %v4849 = vadd.f32 0.0, %v4848
      %v4850 = vpop.f32.mrb[0].mxu0
      %v4851 = vadd.f32 0.0, %v4850
      %4852 = vmatprep.mubr.bf16.mxu0 0
      %4853 = vmatmul.mubr.bf16.gmra.mrb[0].mxu0 %v4761
      %v4854 = vpop.f32.mrb[0].mxu0
      %v4855 = vadd.f32 0.0, %v4854
      %v4856 = vpop.f32.mrb[0].mxu0
      %v4857 = vadd.f32 0.0, %v4856
      %v4858 = vpop.f32.mrb[0].mxu0
      %v4859 = vadd.f32 0.0, %v4858
      %v4860 = vpop.f32.mrb[0].mxu0
      %v4861 = vadd.f32 0.0, %v4860
      %4862 = vdwg.mxu0
      %4863 = vmatprep.subr.bf16.mxu0 %v4781
      %4864 = vmatpush1.bf16.msra.mxu0 %v4780
      %4865 = vmatprep.subr.bf16.mxu0 %v4785
      %4866 = vmatpush1.bf16.msra.mxu0 %v4784
      %4867 = vmatprep.subr.bf16.mxu0 %v4789
      %4868 = vmatpush1.bf16.msra.mxu0 %v4788
      %4869 = vmatprep.subr.bf16.mxu0 %v4793
      %4870 = vmatpush1.bf16.msra.mxu0 %v4792
      %4871 = vmatprep.subr.bf16.mxu0 %v4797
      %4872 = vmatpush1.bf16.msra.mxu0 %v4796
      %4873 = vmatprep.subr.bf16.mxu0 %v4801
      %4874 = vmatpush1.bf16.msra.mxu0 %v4800
      %4875 = vmatprep.subr.bf16.mxu0 %v4805
      %4876 = vmatpush1.bf16.msra.mxu0 %v4804
      %4877 = vmatprep.subr.bf16.mxu0 %v4809
      %4878 = vmatpush1.bf16.msra.mxu0 %v4808
      %4879 = vmatprep.subr.bf16.mxu0 0
      %4880 = vmatpush1.bf16.msra.mxu0 0
      %4881 = vmatprep.subr.bf16.mxu0 0
      %4882 = vmatpush1.bf16.msra.mxu0 0
      %4883 = vmatprep.subr.bf16.mxu0 0
      %4884 = vmatpush1.bf16.msra.mxu0 0
      %4885 = vmatprep.subr.bf16.mxu0 0
      %4886 = vmatpush1.bf16.msra.mxu0 0
      %4887 = vmatprep.subr.bf16.mxu0 0
      %4888 = vmatpush1.bf16.msra.mxu0 0
      %4889 = vmatprep.subr.bf16.mxu0 0
      %4890 = vmatpush1.bf16.msra.mxu0 0
      %4891 = vmatprep.subr.bf16.mxu0 0
      %4892 = vmatpush1.bf16.msra.mxu0 0
      %4893 = vmatprep.subr.bf16.mxu0 0
      %4894 = vmatpush1.bf16.msra.mxu0 0
      %4895 = vmatprep.mubr.bf16.mxu0 0
      %4896 = vmatmul.mubr.bf16.gmra.mrb[0].mxu0 %v4760
      %v4897 = vpop.f32.mrb[0].mxu0
      %v4898 = vadd.f32 0.0, %v4897
      %v4899 = vpop.f32.mrb[0].mxu0
      %v4900 = vadd.f32 0.0, %v4899
      %v4901 = vpop.f32.mrb[0].mxu0
      %v4902 = vadd.f32 0.0, %v4901
      %v4903 = vpop.f32.mrb[0].mxu0
      %v4904 = vadd.f32 0.0, %v4903
      %4905 = vmatprep.mubr.bf16.mxu0 0
      %4906 = vmatmul.mubr.bf16.gmra.mrb[0].mxu0 %v4761
      %v4907 = vpop.f32.mrb[0].mxu0
      %v4908 = vadd.f32 0.0, %v4907
      %v4909 = vpop.f32.mrb[0].mxu0
      %v4910 = vadd.f32 0.0, %v4909
      %v4911 = vpop.f32.mrb[0].mxu0
      %v4912 = vadd.f32 0.0, %v4911
      %v4913 = vpop.f32.mrb[0].mxu0
      %v4914 = vadd.f32 0.0, %v4913
      %4915 = vdwg.mxu0
      %v4916 = vlaneseq
      %v4917 = vshrl.u32 %v4916, 7
      %v4918 = vsub.s32 4, %v4917
      %v4919 = vrot.slane %v1043, %v4918
      %v4920 = vlaneseq
      %v4921 = vshrl.u32 %v4920, 7
      %v4922 = vsub.s32 4, %v4921
      %v4923 = vrot.slane %v1044, %v4922
      %v4924 = vlaneseq
      %v4925 = vshrl.u32 %v4924, 7
      %v4926 = vsub.s32 4, %v4925
      %v4927 = vrot.slane %v1045, %v4926
      %v4928 = vlaneseq
      %v4929 = vshrl.u32 %v4928, 7
      %v4930 = vsub.s32 4, %v4929
      %v4931 = vrot.slane %v1046, %v4930
      %v4932 = vmul.f32 %v4845, %v4919
      %v4933 = vmul.f32 %v4847, %v4923
      %v4934 = vmul.f32 %v4898, %v4927
      %v4935 = vmul.f32 %v4900, %v4931
      %v4936 = vmul.f32 %v4849, %v4919
      %v4937 = vmul.f32 %v4851, %v4923
      %v4938 = vmul.f32 %v4902, %v4927
      %v4939 = vmul.f32 %v4904, %v4931
      %v4940 = vmul.f32 %v4855, %v4919
      %v4941 = vmul.f32 %v4857, %v4923
      %v4942 = vmul.f32 %v4908, %v4927
      %v4943 = vmul.f32 %v4910, %v4931
      %v4944 = vmul.f32 %v4859, %v4919
      %v4945 = vmul.f32 %v4861, %v4923
      %v4946 = vmul.f32 %v4912, %v4927
      %v4947 = vmul.f32 %v4914, %v4931
      %v4948 = vlaneseq
      %v4949 = vshrl.u32 %v4948, 7
      %v4950 = vsub.s32 3, %v4949
      %v4951 = vrot.slane %v1043, %v4950
      %v4952 = vlaneseq
      %v4953 = vshrl.u32 %v4952, 7
      %v4954 = vsub.s32 3, %v4953
      %v4955 = vrot.slane %v1044, %v4954
      %v4956 = vlaneseq
      %v4957 = vshrl.u32 %v4956, 7
      %v4958 = vsub.s32 3, %v4957
      %v4959 = vrot.slane %v1045, %v4958
      %v4960 = vlaneseq
      %v4961 = vshrl.u32 %v4960, 7
      %v4962 = vsub.s32 3, %v4961
      %v4963 = vrot.slane %v1046, %v4962
      %v4964 = vadd.f32 %v4932, %v4951
      %v4965 = vadd.f32 %v4933, %v4955
      %v4966 = vadd.f32 %v4934, %v4959
      %v4967 = vadd.f32 %v4935, %v4963
      %v4968 = vadd.f32 %v4936, %v4951
      %v4969 = vadd.f32 %v4937, %v4955
      %v4970 = vadd.f32 %v4938, %v4959
      %v4971 = vadd.f32 %v4939, %v4963
      %v4972 = vadd.f32 %v4940, %v4951
      %v4973 = vadd.f32 %v4941, %v4955
      %v4974 = vadd.f32 %v4942, %v4959
      %v4975 = vadd.f32 %v4943, %v4963
      %v4976 = vadd.f32 %v4944, %v4951
      %v4977 = vadd.f32 %v4945, %v4955
      %v4978 = vadd.f32 %v4946, %v4959
      %v4979 = vadd.f32 %v4947, %v4963
      %v4980 = vmul.f32 %v4964, 0.5
      %v4981 = vmul.f32 %v4965, 0.5
      %v4982 = vmul.f32 %v4966, 0.5
      %v4983 = vmul.f32 %v4967, 0.5
      %v4984 = vmul.f32 %v4968, 0.5
      %v4985 = vmul.f32 %v4969, 0.5
      %v4986 = vmul.f32 %v4970, 0.5
      %v4987 = vmul.f32 %v4971, 0.5
      %v4988 = vmul.f32 %v4972, 0.5
      %v4989 = vmul.f32 %v4973, 0.5
      %v4990 = vmul.f32 %v4974, 0.5
      %v4991 = vmul.f32 %v4975, 0.5
      %v4992 = vmul.f32 %v4976, 0.5
      %v4993 = vmul.f32 %v4977, 0.5
      %v4994 = vmul.f32 %v4978, 0.5
      %v4995 = vmul.f32 %v4979, 0.5
      %v4996 = vmul.f32 %v4964, 0.70710677
      %v4997 = vmul.f32 %v4965, 0.70710677
      %v4998 = vmul.f32 %v4966, 0.70710677
      %v4999 = vmul.f32 %v4967, 0.70710677
      %v5000 = vmul.f32 %v4968, 0.70710677
      %v5001 = vmul.f32 %v4969, 0.70710677
      %v5002 = vmul.f32 %v4970, 0.70710677
      %v5003 = vmul.f32 %v4971, 0.70710677
      %v5004 = vmul.f32 %v4972, 0.70710677
      %v5005 = vmul.f32 %v4973, 0.70710677
      %v5006 = vmul.f32 %v4974, 0.70710677
      %v5007 = vmul.f32 %v4975, 0.70710677
      %v5008 = vmul.f32 %v4976, 0.70710677
      %v5009 = vmul.f32 %v4977, 0.70710677
      %v5010 = vmul.f32 %v4978, 0.70710677
      %v5011 = vmul.f32 %v4979, 0.70710677
      %v5012 = verf.f32.pop %v4996
      %v5013 = verf.f32.pop %v4997
      %v5014 = verf.f32.pop %v4998
      %v5015 = verf.f32.pop %v4999
      %v5016 = verf.f32.pop %v5000
      %v5017 = verf.f32.pop %v5001
      %v5018 = verf.f32.pop %v5002
      %v5019 = verf.f32.pop %v5003
      %v5020 = verf.f32.pop %v5004
      %v5021 = verf.f32.pop %v5005
      %v5022 = verf.f32.pop %v5006
      %v5023 = verf.f32.pop %v5007
      %v5024 = verf.f32.pop %v5008
      %v5025 = verf.f32.pop %v5009
      %v5026 = verf.f32.pop %v5010
      %v5027 = verf.f32.pop %v5011
      %v5028 = vadd.f32 %v5012, 1.0
      %v5029 = vadd.f32 %v5013, 1.0
      %v5030 = vadd.f32 %v5014, 1.0
      %v5031 = vadd.f32 %v5015, 1.0
      %v5032 = vadd.f32 %v5016, 1.0
      %v5033 = vadd.f32 %v5017, 1.0
      %v5034 = vadd.f32 %v5018, 1.0
      %v5035 = vadd.f32 %v5019, 1.0
      %v5036 = vadd.f32 %v5020, 1.0
      %v5037 = vadd.f32 %v5021, 1.0
      %v5038 = vadd.f32 %v5022, 1.0
      %v5039 = vadd.f32 %v5023, 1.0
      %v5040 = vadd.f32 %v5024, 1.0
      %v5041 = vadd.f32 %v5025, 1.0
      %v5042 = vadd.f32 %v5026, 1.0
      %v5043 = vadd.f32 %v5027, 1.0
      %v5044 = vmul.f32 %v4980, %v5028
      %v5045 = vmul.f32 %v4981, %v5029
      %v5046 = vmul.f32 %v4982, %v5030
      %v5047 = vmul.f32 %v4983, %v5031
      %v5048 = vmul.f32 %v4984, %v5032
      %v5049 = vmul.f32 %v4985, %v5033
      %v5050 = vmul.f32 %v4986, %v5034
      %v5051 = vmul.f32 %v4987, %v5035
      %v5052 = vmul.f32 %v4988, %v5036
      %v5053 = vmul.f32 %v4989, %v5037
      %v5054 = vmul.f32 %v4990, %v5038
      %v5055 = vmul.f32 %v4991, %v5039
      %v5056 = vmul.f32 %v4992, %v5040
      %v5057 = vmul.f32 %v4993, %v5041
      %v5058 = vmul.f32 %v4994, %v5042
      %v5059 = vmul.f32 %v4995, %v5043
      %v5060 = vpack.c.bf16 %v5048, %v5044
      %v5061 = vpack.c.bf16 %v5049, %v5045
      %v5062 = vpack.c.bf16 %v5050, %v5046
      %v5063 = vpack.c.bf16 %v5051, %v5047
      %v5064 = vpack.c.bf16 %v5056, %v5052
      %v5065 = vpack.c.bf16 %v5057, %v5053
      %v5066 = vpack.c.bf16 %v5058, %v5054
      %v5067 = vpack.c.bf16 %v5059, %v5055
      %v5068 = vld [vmem:[%s397] sm:$0xff]
      %v5069 = vld [vmem:[%s397 + $0x8] sm:$0xff]
      %v5070 = vld [vmem:[%s397 + $0x10] sm:$0xff]
      %v5071 = vld [vmem:[%s397 + $0x18] sm:$0xff]
      %v5072 = vld [vmem:[%s397 + $0x20] sm:$0xff]
      %v5073 = vld [vmem:[%s397 + $0x28] sm:$0xff]
      %v5074 = vld [vmem:[%s397 + $0x30] sm:$0xff]
      %v5075 = vld [vmem:[%s397 + $0x38] sm:$0xff]
      %v5076 = vld [vmem:[%s397 + $0x40] sm:$0xff]
      %v5077 = vld [vmem:[%s397 + $0x48] sm:$0xff]
      %v5078 = vld [vmem:[%s397 + $0x50] sm:$0xff]
      %v5079 = vld [vmem:[%s397 + $0x58] sm:$0xff]
      %v5080 = vld [vmem:[%s397 + $0x60] sm:$0xff]
      %v5081 = vld [vmem:[%s397 + $0x68] sm:$0xff]
      %v5082 = vld [vmem:[%s397 + $0x70] sm:$0xff]
      %v5083 = vld [vmem:[%s397 + $0x78] sm:$0xff]
      %v5084 = vunpack.c.l.s8.bf16 %v5068
      %v5085 = vunpack.c.h.s8.bf16 %v5068
      %v5086 = vunpack.c.l.s8.bf16 %v5069
      %v5087 = vunpack.c.h.s8.bf16 %v5069
      %v5088 = vunpack.c.l.s8.bf16 %v5070
      %v5089 = vunpack.c.h.s8.bf16 %v5070
      %v5090 = vunpack.c.l.s8.bf16 %v5071
      %v5091 = vunpack.c.h.s8.bf16 %v5071
      %v5092 = vunpack.c.l.s8.bf16 %v5072
      %v5093 = vunpack.c.h.s8.bf16 %v5072
      %v5094 = vunpack.c.l.s8.bf16 %v5073
      %v5095 = vunpack.c.h.s8.bf16 %v5073
      %v5096 = vunpack.c.l.s8.bf16 %v5074
      %v5097 = vunpack.c.h.s8.bf16 %v5074
      %v5098 = vunpack.c.l.s8.bf16 %v5075
      %v5099 = vunpack.c.h.s8.bf16 %v5075
      %v5100 = vunpack.c.l.s8.bf16 %v5076
      %v5101 = vunpack.c.h.s8.bf16 %v5076
      %v5102 = vunpack.c.l.s8.bf16 %v5077
      %v5103 = vunpack.c.h.s8.bf16 %v5077
      %v5104 = vunpack.c.l.s8.bf16 %v5078
      %v5105 = vunpack.c.h.s8.bf16 %v5078
      %v5106 = vunpack.c.l.s8.bf16 %v5079
      %v5107 = vunpack.c.h.s8.bf16 %v5079
      %v5108 = vunpack.c.l.s8.bf16 %v5080
      %v5109 = vunpack.c.h.s8.bf16 %v5080
      %v5110 = vunpack.c.l.s8.bf16 %v5081
      %v5111 = vunpack.c.h.s8.bf16 %v5081
      %v5112 = vunpack.c.l.s8.bf16 %v5082
      %v5113 = vunpack.c.h.s8.bf16 %v5082
      %v5114 = vunpack.c.l.s8.bf16 %v5083
      %v5115 = vunpack.c.h.s8.bf16 %v5083
      %5116 = vmatprep.subr.bf16.mxu0 0
      %5117 = vmatpush1.bf16.msra.mxu0 %v5084
      %5118 = vmatprep.subr.bf16.mxu0 0
      %5119 = vmatpush1.bf16.msra.mxu0 %v5085
      %5120 = vmatprep.subr.bf16.mxu0 0
      %5121 = vmatpush1.bf16.msra.mxu0 %v5086
      %5122 = vmatprep.subr.bf16.mxu0 0
      %5123 = vmatpush1.bf16.msra.mxu0 %v5087
      %5124 = vmatprep.subr.bf16.mxu0 0
      %5125 = vmatpush1.bf16.msra.mxu0 %v5088
      %5126 = vmatprep.subr.bf16.mxu0 0
      %5127 = vmatpush1.bf16.msra.mxu0 %v5089
      %5128 = vmatprep.subr.bf16.mxu0 0
      %5129 = vmatpush1.bf16.msra.mxu0 %v5090
      %5130 = vmatprep.subr.bf16.mxu0 0
      %5131 = vmatpush1.bf16.msra.mxu0 %v5091
      %5132 = vmatprep.subr.bf16.mxu0 0
      %5133 = vmatpush1.bf16.msra.mxu0 %v5092
      %5134 = vmatprep.subr.bf16.mxu0 0
      %5135 = vmatpush1.bf16.msra.mxu0 %v5093
      %5136 = vmatprep.subr.bf16.mxu0 0
      %5137 = vmatpush1.bf16.msra.mxu0 %v5094
      %5138 = vmatprep.subr.bf16.mxu0 0
      %5139 = vmatpush1.bf16.msra.mxu0 %v5095
      %5140 = vmatprep.subr.bf16.mxu0 0
      %5141 = vmatpush1.bf16.msra.mxu0 %v5096
      %5142 = vmatprep.subr.bf16.mxu0 0
      %5143 = vmatpush1.bf16.msra.mxu0 %v5097
      %5144 = vmatprep.subr.bf16.mxu0 0
      %5145 = vmatpush1.bf16.msra.mxu0 %v5098
      %5146 = vmatprep.subr.bf16.mxu0 0
      %5147 = vmatpush1.bf16.msra.mxu0 %v5099
      %5148 = vmatprep.mubr.bf16.mxu0 %v5061
      %5149 = vmatmul.mubr.bf16.gmra.mrb[0].mxu0 %v5060
      %v5150 = vpop.f32.mrb[0].mxu0
      %v5151 = vadd.f32 0.0, %v5150
      %v5152 = vpop.f32.mrb[0].mxu0
      %v5153 = vpop.f32.mrb[0].mxu0
      %v5154 = vadd.f32 0.0, %v5153
      %v5155 = vpop.f32.mrb[0].mxu0
      %5156 = vmatprep.mubr.bf16.mxu0 %v5065
      %5157 = vmatmul.mubr.bf16.gmra.mrb[0].mxu0 %v5064
      %v5158 = vpop.f32.mrb[0].mxu0
      %v5159 = vadd.f32 0.0, %v5158
      %v5160 = vpop.f32.mrb[0].mxu0
      %v5161 = vpop.f32.mrb[0].mxu0
      %v5162 = vadd.f32 0.0, %v5161
      %v5163 = vpop.f32.mrb[0].mxu0
      %5164 = vdwg.mxu0
      %5165 = vmatprep.subr.bf16.mxu0 0
      %5166 = vmatpush1.bf16.msra.mxu0 %v5100
      %5167 = vmatprep.subr.bf16.mxu0 0
      %5168 = vmatpush1.bf16.msra.mxu0 %v5101
      %5169 = vmatprep.subr.bf16.mxu0 0
      %5170 = vmatpush1.bf16.msra.mxu0 %v5102
      %5171 = vmatprep.subr.bf16.mxu0 0
      %5172 = vmatpush1.bf16.msra.mxu0 %v5103
      %5173 = vmatprep.subr.bf16.mxu0 0
      %5174 = vmatpush1.bf16.msra.mxu0 %v5104
      %5175 = vmatprep.subr.bf16.mxu0 0
      %5176 = vmatpush1.bf16.msra.mxu0 %v5105
      %5177 = vmatprep.subr.bf16.mxu0 0
      %5178 = vmatpush1.bf16.msra.mxu0 %v5106
      %5179 = vmatprep.subr.bf16.mxu0 0
      %5180 = vmatpush1.bf16.msra.mxu0 %v5107
      %5181 = vmatprep.subr.bf16.mxu0 0
      %5182 = vmatpush1.bf16.msra.mxu0 %v5108
      %5183 = vmatprep.subr.bf16.mxu0 0
      %5184 = vmatpush1.bf16.msra.mxu0 %v5109
      %5185 = vmatprep.subr.bf16.mxu0 0
      %5186 = vmatpush1.bf16.msra.mxu0 %v5110
      %5187 = vmatprep.subr.bf16.mxu0 0
      %5188 = vmatpush1.bf16.msra.mxu0 %v5111
      %5189 = vmatprep.subr.bf16.mxu0 0
      %5190 = vmatpush1.bf16.msra.mxu0 %v5112
      %5191 = vmatprep.subr.bf16.mxu0 0
      %5192 = vmatpush1.bf16.msra.mxu0 %v5113
      %5193 = vmatprep.subr.bf16.mxu0 0
      %5194 = vmatpush1.bf16.msra.mxu0 %v5114
      %5195 = vmatprep.subr.bf16.mxu0 0
      %5196 = vmatpush1.bf16.msra.mxu0 %v5115
      %5197 = vmatprep.mubr.bf16.mxu0 %v5063
      %5198 = vmatmul.mubr.bf16.gmra.mrb[0].mxu0 %v5062
      %v5199 = vpop.f32.mrb[0].mxu0
      %v5200 = vadd.f32 %v5151, %v5199
      %v5201 = vpop.f32.mrb[0].mxu0
      %v5202 = vpop.f32.mrb[0].mxu0
      %v5203 = vadd.f32 %v5154, %v5202
      %v5204 = vpop.f32.mrb[0].mxu0
      %5205 = vmatprep.mubr.bf16.mxu0 %v5067
      %5206 = vmatmul.mubr.bf16.gmra.mrb[0].mxu0 %v5066
      %v5207 = vpop.f32.mrb[0].mxu0
      %v5208 = vadd.f32 %v5159, %v5207
      %v5209 = vpop.f32.mrb[0].mxu0
      %v5210 = vpop.f32.mrb[0].mxu0
      %v5211 = vadd.f32 %v5162, %v5210
      %v5212 = vpop.f32.mrb[0].mxu0
      %5213 = vdwg.mxu0
      %v5214 = vlaneseq
      %v5215 = vshrl.u32 %v5214, 7
      %v5216 = vsub.s32 5, %v5215
      %v5217 = vrot.slane %v1044, %v5216
      %v5218 = vmul.f32 %v5200, %v5217
      %v5219 = vmul.f32 %v5203, %v5217
      %v5220 = vmul.f32 %v5208, %v5217
      %v5221 = vmul.f32 %v5211, %v5217
      %v5222 = vlaneseq
      %v5223 = vshrl.u32 %v5222, 7
      %v5224 = vsub.s32 5, %v5223
      %v5225 = vrot.slane %v1043, %v5224
      %v5226 = vadd.f32 %v5218, %v5225
      %v5227 = vadd.f32 %v5219, %v5225
      %v5228 = vadd.f32 %v5220, %v5225
      %v5229 = vadd.f32 %v5221, %v5225
      %v5230 = vadd.f32 %v4696, %v5226
      %v5231 = vadd.f32 %v4697, %v5227
      %v5232 = vadd.f32 %v4698, %v5228
      %v5233 = vadd.f32 %v4699, %v5229
      %5234 = vst [vmem:[#allocation2] sm:$0xff] %v5230
      %5235 = vst [vmem:[#allocation2 + $0x8] sm:$0xff] %v5231
      %5236 = vst [vmem:[#allocation2 + $0x10] sm:$0xff] %v5232
      %5237 = vst [vmem:[#allocation2 + $0x18] sm:$0xff] %v5233
      %p5238 = scmp.eq.s32.totalorder %s20, 1
      // Predicated region
      $region61: #{vision_transformer_med_forward.1} parent=55 // pred_check
        %p5239 = pneg %p5238
      $region62: #{vision_transformer_med_forward.1} parent=55 // pred_check_branch
        %5241 = sbr.rel (%p5239) target = $region64
      $region63: #{vision_transformer_med_forward.1} parent=55 // pred_region
        %v5242 = vld [vmem:[%s2 + $0x12] sm:$0x1]
        %v5243 = vld [vmem:[%s2 + $0x13] sm:$0x1]
        %5244 = vadd.xlane.f32.xlu0 %v5230
        %v5245 = vpop.xlane.xlu0 %5244
        %5246 = vadd.xlane.f32.xlu0 %v5231
        %v5247 = vpop.xlane.xlu0 %5246
        %5248 = vadd.xlane.f32.xlu0 %v5232
        %v5249 = vpop.xlane.xlu0 %5248
        %5250 = vadd.xlane.f32.xlu0 %v5233
        %v5251 = vpop.xlane.xlu0 %5250
        %v5252 = vmul.f32 %v5245, %v1059
        %v5253 = vmul.f32 %v5247, %v1059
        %v5254 = vmul.f32 %v5249, %v1059
        %v5255 = vmul.f32 %v5251, %v1059
        %v5256 = vsub.f32 %v5230, %v5252
        %v5257 = vsub.f32 %v5231, %v5253
        %v5258 = vsub.f32 %v5232, %v5254
        %v5259 = vsub.f32 %v5233, %v5255
        %v5260 = vmul.f32 %v5256, %v5256
        %v5261 = vmul.f32 %v5257, %v5257
        %v5262 = vmul.f32 %v5258, %v5258
        %v5263 = vmul.f32 %v5259, %v5259
        %5264 = vadd.xlane.f32.xlu0 %v5260
        %v5265 = vpop.xlane.xlu0 %5264
        %5266 = vadd.xlane.f32.xlu0 %v5261
        %v5267 = vpop.xlane.xlu0 %5266
        %5268 = vadd.xlane.f32.xlu0 %v5262
        %v5269 = vpop.xlane.xlu0 %5268
        %5270 = vadd.xlane.f32.xlu0 %v5263
        %v5271 = vpop.xlane.xlu0 %5270
        %v5272 = vmul.f32 %v5265, %v1059
        %v5273 = vmul.f32 %v5267, %v1059
        %v5274 = vmul.f32 %v5269, %v1059
        %v5275 = vmul.f32 %v5271, %v1059
        %v5276 = vadd.f32 %v5272, 1e-05
        %v5277 = vadd.f32 %v5273, 1e-05
        %v5278 = vadd.f32 %v5274, 1e-05
        %v5279 = vadd.f32 %v5275, 1e-05
        %v5280 = vrsqrt.pop %v5276
        %v5281 = vrsqrt.pop %v5277
        %v5282 = vrsqrt.pop %v5278
        %v5283 = vrsqrt.pop %v5279
        %v5284 = vmul.f32 %v5256, %v5280
        %v5285 = vmul.f32 %v5257, %v5281
        %v5286 = vmul.f32 %v5258, %v5282
        %v5287 = vmul.f32 %v5259, %v5283
        %v5288 = vlaneseq
        %v5289 = vshrl.u32 %v5288, 7
        %v5290 = vsub.s32 0, %v5289
        %v5291 = vrot.slane %v5242, %v5290
        %v5292 = vmul.f32 %v5284, %v5291
        %v5293 = vmul.f32 %v5285, %v5291
        %v5294 = vmul.f32 %v5286, %v5291
        %v5295 = vmul.f32 %v5287, %v5291
        %v5296 = vlaneseq
        %v5297 = vshrl.u32 %v5296, 7
        %v5298 = vsub.s32 0, %v5297
        %v5299 = vrot.slane %v5243, %v5298
        %v5300 = vadd.f32 %v5292, %v5299
        %v5301 = vadd.f32 %v5293, %v5299
        %v5302 = vadd.f32 %v5294, %v5299
        %v5303 = vadd.f32 %v5295, %v5299
        %v5304 = vpack.c.bf16 %v5301, %v5300
        %v5305 = vpack.c.bf16 %v5303, %v5302
        %v5306 = vld [vmem:[%s3] sm:$0xf]
        %v5307 = vld [vmem:[%s3 + $0x4] sm:$0xf]
        %v5308 = vld [vmem:[%s3 + $0x8] sm:$0xf]
        %v5309 = vld [vmem:[%s3 + $0xc] sm:$0xf]
        %v5310 = vld [vmem:[%s3 + $0x10] sm:$0xf]
        %v5311 = vld [vmem:[%s3 + $0x14] sm:$0xf]
        %v5312 = vld [vmem:[%s3 + $0x18] sm:$0xf]
        %v5313 = vld [vmem:[%s3 + $0x1c] sm:$0xf]
        %v5314 = vld [vmem:[%s3 + $0x20] sm:$0xf]
        %v5315 = vld [vmem:[%s3 + $0x24] sm:$0xf]
        %v5316 = vld [vmem:[%s3 + $0x28] sm:$0xf]
        %v5317 = vld [vmem:[%s3 + $0x2c] sm:$0xf]
        %v5318 = vld [vmem:[%s3 + $0x30] sm:$0xf]
        %v5319 = vld [vmem:[%s3 + $0x34] sm:$0xf]
        %v5320 = vld [vmem:[%s3 + $0x38] sm:$0xf]
        %v5321 = vld [vmem:[%s3 + $0x3c] sm:$0xf]
        %v5338 = vunpack.c.l.b16 %v5306
        %v5339 = vunpack.c.l.b16 %v5307
        %v5340 = vunpack.c.l.b16 %v5308
        %v5341 = vunpack.c.l.b16 %v5309
        %v5342 = vunpack.c.l.b16 %v5310
        %v5343 = vunpack.c.l.b16 %v5311
        %v5344 = vunpack.c.l.b16 %v5312
        %v5345 = vunpack.c.l.b16 %v5313
        %v5346 = vunpack.c.l.b16 %v5314
        %v5347 = vunpack.c.l.b16 %v5315
        %v5348 = vunpack.c.l.b16 %v5316
        %v5349 = vunpack.c.l.b16 %v5317
        %v5350 = vunpack.c.l.b16 %v5318
        %v5351 = vunpack.c.l.b16 %v5319
        %v5352 = vunpack.c.l.b16 %v5320
        %v5353 = vunpack.c.l.b16 %v5321
        %v5354 = vpack.c.b16 %v5339, %v5338
        %v5355 = vpack.c.b16 %v5341, %v5340
        %v5356 = vpack.c.b16 %v5343, %v5342
        %v5357 = vpack.c.b16 %v5345, %v5344
        %v5358 = vpack.c.b16 %v5347, %v5346
        %v5359 = vpack.c.b16 %v5349, %v5348
        %v5360 = vpack.c.b16 %v5351, %v5350
        %v5361 = vpack.c.b16 %v5353, %v5352
        %5370 = vmatprep.subr.bf16.mxu0 0
        %5371 = vmatpush1.bf16.msra.mxu0 %v5354
        %5372 = vmatprep.subr.bf16.mxu0 0
        %5373 = vmatpush1.bf16.msra.mxu0 %v5355
        %5374 = vmatprep.subr.bf16.mxu0 0
        %5375 = vmatpush1.bf16.msra.mxu0 %v5356
        %5376 = vmatprep.subr.bf16.mxu0 0
        %5377 = vmatpush1.bf16.msra.mxu0 %v5357
        %5378 = vmatprep.subr.bf16.mxu0 0
        %5379 = vmatpush1.bf16.msra.mxu0 %v5358
        %5380 = vmatprep.subr.bf16.mxu0 0
        %5381 = vmatpush1.bf16.msra.mxu0 %v5359
        %5382 = vmatprep.subr.bf16.mxu0 0
        %5383 = vmatpush1.bf16.msra.mxu0 %v5360
        %5384 = vmatprep.subr.bf16.mxu0 0
        %5385 = vmatpush1.bf16.msra.mxu0 %v5361
        %5386 = vmatprep.subr.bf16.mxu0 0
        %5387 = vmatpush1.bf16.msra.mxu0 0
        %5388 = vmatprep.subr.bf16.mxu0 0
        %5389 = vmatpush1.bf16.msra.mxu0 0
        %5390 = vmatprep.subr.bf16.mxu0 0
        %5391 = vmatpush1.bf16.msra.mxu0 0
        %5392 = vmatprep.subr.bf16.mxu0 0
        %5393 = vmatpush1.bf16.msra.mxu0 0
        %5394 = vmatprep.subr.bf16.mxu0 0
        %5395 = vmatpush1.bf16.msra.mxu0 0
        %5396 = vmatprep.subr.bf16.mxu0 0
        %5397 = vmatpush1.bf16.msra.mxu0 0
        %5398 = vmatprep.subr.bf16.mxu0 0
        %5399 = vmatpush1.bf16.msra.mxu0 0
        %5400 = vmatprep.subr.bf16.mxu0 0
        %5401 = vmatpush1.bf16.msra.mxu0 0
        %5402 = vmatprep.mubr.bf16.mxu0 0
        %5403 = vmatmul.mubr.bf16.gmra.mrb[0].mxu0 %v5304
        %v5404 = vpop.f32.mrb[0].mxu0
        %v5405 = vadd.f32 0.0, %v5404
        %v5406 = vpop.f32.mrb[0].mxu0
        %v5407 = vpop.f32.mrb[0].mxu0
        %v5408 = vadd.f32 0.0, %v5407
        %v5409 = vpop.f32.mrb[0].mxu0
        %5410 = vmatprep.mubr.bf16.mxu0 0
        %5411 = vmatmul.mubr.bf16.gmra.mrb[0].mxu0 %v5305
        %v5412 = vpop.f32.mrb[0].mxu0
        %v5413 = vadd.f32 0.0, %v5412
        %v5414 = vpop.f32.mrb[0].mxu0
        %v5415 = vpop.f32.mrb[0].mxu0
        %v5416 = vadd.f32 0.0, %v5415
        %v5417 = vpop.f32.mrb[0].mxu0
        %5418 = vdwg.mxu0
        %5419 = vst [vmem:[%s9] sm:$0xff] %v5405
        %5420 = vst [vmem:[%s9 + $0x8] sm:$0xff] %v5408
        %5421 = vst [vmem:[%s9 + $0x10] sm:$0xff] %v5413
        %5422 = vst [vmem:[%s9 + $0x18] sm:$0xff] %v5416
      $region64: #{vision_transformer_med_forward.1} parent=55 // pred_fallthru
        _
      // Predicated region
      $region65: #{vision_transformer_med_forward.1} parent=55 // pred_check
        %p5423 = pneg %p247
      $region66: #{vision_transformer_med_forward.1} parent=55 // pred_check_branch
        %5425 = sbr.rel (%p5423) target = $region68
      $region67: #{vision_transformer_med_forward.1} parent=55 // pred_region
        _
      $region68: #{vision_transformer_med_forward.1} parent=55 // pred_fallthru
        _
      // Predicated region
      $region69: #{vision_transformer_med_forward.1} parent=55 // pred_check
        %p5426 = pneg %p247
      $region70: #{vision_transformer_med_forward.1} parent=55 // pred_check_branch
        %5428 = sbr.rel (%p5426) target = $region72
      $region71: #{vision_transformer_med_forward.1} parent=55 // pred_region
        _
      $region72: #{vision_transformer_med_forward.1} parent=55 // pred_fallthru
        _
    $region56: #{vision_transformer_med_forward.1} parent=5 // pred_fallthru
      _
    %p5429 = scmp.le.s32.totalorder 2, %s15
    // Predicated region
    $region73: #{vision_transformer_med_forward.1} parent=5 // pred_check
      %p5430 = pneg %p5429
    $region74: #{vision_transformer_med_forward.1} parent=5 // pred_check_branch
      %5432 = sbr.rel (%p5430) target = $region76
    $region75: #{vision_transformer_med_forward.1} parent=5 // pred_region
      %s5433 = ssub.s32 %s15, 2
    $region76: #{vision_transformer_med_forward.1} parent=5 // pred_fallthru
      _
  $region6: #{vision_transformer_med_forward.1} parent=0 // loop_footer
    %s19 = sadd.s32 1, %s15
  $region7: #{vision_transformer_med_forward.1} parent=0 // loop_footer_branch
    %14 = sbr.rel target = $region3
  $region8: #{vision_transformer_med_forward.1} parent=0 // loop_exit
    _

</llo_original>
